<compile_context>
chip_gen: v7x
topology: tpu7x:2x2x1
jax: 0.10.0
libtpu: 0.0.40
codegen_flags: <defaults>
</compile_context>

<pallas_src>
import math

import jax
import jax.numpy as jnp
from jax.experimental import pallas as pl
from jax.experimental.pallas import tpu as pltpu

# ---- mini-BERT config (small, synthetic) ----
VOCAB = 100
TYPE_VOCAB = 2
MAX_POS = 16
B = 2          # batch
S = 8          # sequence length
H = 32         # hidden size
NUM_HEADS = 4
HEAD_DIM = H // NUM_HEADS
INTER = 64     # FFN intermediate size
NUM_LAYERS = 2
LN_EPS = 1e-12
ATTN_SCALE = 1.0 / math.sqrt(HEAD_DIM)


# ----------------------------- fused kernel -----------------------------

def _layernorm(y, g, b):
    mu = jnp.mean(y, axis=-1, keepdims=True)
    var = jnp.mean((y - mu) ** 2, axis=-1, keepdims=True)
    return (y - mu) * jax.lax.rsqrt(var + LN_EPS) * g + b


def fused_bert_kernel(x_ref, mask_ref, embg_ref, embb_ref,
                      wq_ref, bq_ref, wk_ref, bk_ref, wv_ref, bv_ref,
                      wo_ref, bo_ref, ln1g_ref, ln1b_ref,
                      w1_ref, b1_ref, w2_ref, b2_ref, ln2g_ref, ln2b_ref,
                      o_ref):
    # x_ref: (B*S, H) embeddings; mask_ref: (B, S) with 1.0 = keep, 0.0 = pad.
    # Per-layer weight refs carry a leading layer axis (statically indexed).

    # Additive key mask — computed ONCE for the whole fused forward (hoisted).
    neg = (1.0 - mask_ref[...]) * (-1e9)                        # (B, S)

    # Embedding LayerNorm.
    x = _layernorm(x_ref[...], embg_ref[...], embb_ref[...])    # (B*S, H)

    for l in range(NUM_LAYERS):            # static unroll; weights indexed statically
        # ---------------- multi-head self-attention ----------------
        # Fold 1/sqrt(head_dim) into q once.
        q = (jnp.dot(x, wq_ref[l], preferred_element_type=jnp.float32)
             + bq_ref[l]) * ATTN_SCALE
        k = jnp.dot(x, wk_ref[l], preferred_element_type=jnp.float32) + bk_ref[l]
        v = jnp.dot(x, wv_ref[l], preferred_element_type=jnp.float32) + bv_ref[l]

        ctx_rows = []
        for b in range(B):                 # static: attention is block-diagonal in batch
            r0 = b * S
            qb = q[r0:r0 + S, :]
            kb = k[r0:r0 + S, :]
            vb = v[r0:r0 + S, :]
            negb = neg[b:b + 1, :]         # (1, S) key mask for this batch element
            head_ctx = []
            for h in range(NUM_HEADS):     # static; HEAD_DIM=8 tiles are tiny anyway
                c0 = h * HEAD_DIM
                qh = qb[:, c0:c0 + HEAD_DIM]
                kh = kb[:, c0:c0 + HEAD_DIM]
                vh = vb[:, c0:c0 + HEAD_DIM]
                s = jnp.dot(qh, kh.T, preferred_element_type=jnp.float32) + negb
                s = s - jnp.max(s, axis=-1, keepdims=True)
                p = jnp.exp(s)
                p = p * pl.reciprocal(jnp.sum(p, axis=-1, keepdims=True), approx=True)
                head_ctx.append(jnp.dot(p, vh, preferred_element_type=jnp.float32))
            ctx_rows.append(jnp.concatenate(head_ctx, axis=-1))  # (S, H)
        ctx = jnp.concatenate(ctx_rows, axis=0)                  # (B*S, H)

        # One output projection on the concatenated context (not per-head partials).
        attn_out = jnp.dot(ctx, wo_ref[l], preferred_element_type=jnp.float32) + bo_ref[l]
        x = _layernorm(x + attn_out, ln1g_ref[l], ln1b_ref[l])

        # ---------------- feed-forward ----------------
        h1 = jnp.dot(x, w1_ref[l], preferred_element_type=jnp.float32) + b1_ref[l]
        # TODO(synk): HF BERT uses exact erf-GELU; tanh-approx GELU kept for robust Mosaic lowering.
        h1 = jax.nn.gelu(h1, approximate=True)
        y = jnp.dot(h1, w2_ref[l], preferred_element_type=jnp.float32) + b2_ref[l]
        x = _layernorm(x + y, ln2g_ref[l], ln2b_ref[l])

    o_ref[...] = x


# --------------------------- pallas wrapper ---------------------------

def _fs(shape):
    """Full-array BlockSpec (single grid step)."""
    nd = len(shape)
    return pl.BlockSpec(shape, lambda i, _nd=nd: (0,) * _nd)


def fused_forward_pallas(emb2d, mask2d, params, stacked):
    in_arrays = (
        emb2d, mask2d, params["emb_ln_g"], params["emb_ln_b"],
        stacked["wq"], stacked["bq"], stacked["wk"], stacked["bk"],
        stacked["wv"], stacked["bv"], stacked["wo"], stacked["bo"],
        stacked["attn_ln_g"], stacked["attn_ln_b"],
        stacked["w1"], stacked["b1"], stacked["w2"], stacked["b2"],
        stacked["ffn_ln_g"], stacked["ffn_ln_b"],
    )
    return pl.pallas_call(
        fused_bert_kernel,
        out_shape=jax.ShapeDtypeStruct((B * S, H), jnp.float32),
        grid_spec=pltpu.PrefetchScalarGridSpec(
            num_scalar_prefetch=0, grid=(1,),
            in_specs=[_fs(a.shape) for a in in_arrays],
            out_specs=_fs((B * S, H))),
        compiler_params=pltpu.CompilerParams(
            dimension_semantics=("arbitrary",)),   # trivial work: don't shard across TCs (v7x)
    )(*in_arrays)


# --------------------------- params + forward ---------------------------

def init_params(key):
    def nrm(k, shape):
        return 0.02 * jax.random.normal(k, shape, jnp.float32)

    keys = iter(jax.random.split(key, 8 + NUM_LAYERS * 8))
    params = {
        "word_emb": nrm(next(keys), (VOCAB, H)),
        "pos_emb": nrm(next(keys), (MAX_POS, H)),
        "type_emb": nrm(next(keys), (TYPE_VOCAB, H)),
        "emb_ln_g": jnp.ones((1, H), jnp.float32),
        "emb_ln_b": jnp.zeros((1, H), jnp.float32),
        "layers": [],
    }
    for _ in range(NUM_LAYERS):
        lp = {
            "wq": nrm(next(keys), (H, H)), "bq": jnp.zeros((1, H), jnp.float32),
            "wk": nrm(next(keys), (H, H)), "bk": jnp.zeros((1, H), jnp.float32),
            "wv": nrm(next(keys), (H, H)), "bv": jnp.zeros((1, H), jnp.float32),
            "wo": nrm(next(keys), (H, H)), "bo": jnp.zeros((1, H), jnp.float32),
            "attn_ln_g": jnp.ones((1, H), jnp.float32),
            "attn_ln_b": jnp.zeros((1, H), jnp.float32),
            "w1": nrm(next(keys), (H, INTER)), "b1": jnp.zeros((1, INTER), jnp.float32),
            "w2": nrm(next(keys), (INTER, H)), "b2": jnp.zeros((1, H), jnp.float32),
            "ffn_ln_g": jnp.ones((1, H), jnp.float32),
            "ffn_ln_b": jnp.zeros((1, H), jnp.float32),
        }
        params["layers"].append(lp)
    return params


def text_embedding_forward(params, text):
    """Returns last_hidden_state [B, S, H] — mirrors TextEmbedding.forward."""
    input_ids = text["input_ids"]
    attention_mask = text["attention_mask"].astype(jnp.float32)
    token_type_ids = text["token_type_ids"]

    # Embedding table lookups stay as XLA gathers (glue); everything downstream
    # (embed-LN + all encoder layers) is ONE fused Pallas kernel.
    pos_ids = jnp.arange(S)
    emb = (params["word_emb"][input_ids]
           + params["pos_emb"][pos_ids][None, :, :]
           + params["type_emb"][token_type_ids])            # (B, S, H)
    emb2d = emb.reshape(B * S, H)                           # contiguous activation slab
    mask2d = attention_mask                                 # (B, S)

    stacked = {k: jnp.stack([lp[k] for lp in params["layers"]], axis=0)
               for k in params["layers"][0]}
    out2d = fused_forward_pallas(emb2d, mask2d, params, stacked)
    return out2d.reshape(B, S, H)                           # last_hidden_state


# --------------------------- pure-JAX reference ---------------------------

def reference_forward(params, text):
    input_ids = text["input_ids"]
    am = text["attention_mask"].astype(jnp.float32)
    tt = text["token_type_ids"]

    def ln(y, g, b):
        mu = jnp.mean(y, axis=-1, keepdims=True)
        var = jnp.mean((y - mu) ** 2, axis=-1, keepdims=True)
        return (y - mu) * jax.lax.rsqrt(var + LN_EPS) * g + b

    emb = (params["word_emb"][input_ids]
           + params["pos_emb"][jnp.arange(S)][None, :, :]
           + params["type_emb"][tt])
    x = ln(emb, params["emb_ln_g"], params["emb_ln_b"])
    neg = (1.0 - am)[:, None, None, :] * (-1e9)             # (B,1,1,S)
    for lp in params["layers"]:
        q = x @ lp["wq"] + lp["bq"]
        k = x @ lp["wk"] + lp["bk"]
        v = x @ lp["wv"] + lp["bv"]

        def split(t):
            return t.reshape(B, S, NUM_HEADS, HEAD_DIM).transpose(0, 2, 1, 3)

        qh, kh, vh = split(q), split(k), split(v)
        s = jnp.einsum("bhqd,bhkd->bhqk", qh, kh) * ATTN_SCALE + neg
        p = jax.nn.softmax(s, axis=-1)
        ctx = jnp.einsum("bhqk,bhkd->bhqd", p, vh).transpose(0, 2, 1, 3).reshape(B, S, H)
        x = ln(x + ctx @ lp["wo"] + lp["bo"], lp["attn_ln_g"], lp["attn_ln_b"])
        h1 = jax.nn.gelu(x @ lp["w1"] + lp["b1"], approximate=True)
        x = ln(x + h1 @ lp["w2"] + lp["b2"], lp["ffn_ln_g"], lp["ffn_ln_b"])
    return x


if __name__ == "__main__":
    key = jax.random.PRNGKey(0)
    pkey, ikey = jax.random.split(key)

    params = init_params(pkey)
    text = {
        "input_ids": jax.random.randint(ikey, (B, S), 0, VOCAB, dtype=jnp.int32),
        "attention_mask": jnp.array([[1] * S, [1] * (S - 2) + [0] * 2], dtype=jnp.int32),
        "token_type_ids": jnp.zeros((B, S), dtype=jnp.int32),
    }

    out = jax.block_until_ready(text_embedding_forward(params, text))
    assert out.shape == (B, S, H) and out.dtype == jnp.float32
    assert bool(jnp.all(jnp.isfinite(out)))

    ref = jax.block_until_ready(reference_forward(params, text))
    max_err = float(jnp.max(jnp.abs(out - ref)))
    assert max_err < 5e-2, f"mismatch vs pure-JAX reference: {max_err}"

    print("KERNEL_OK")
</pallas_src>

<mosaic_0001>
module attributes {stable_mosaic.version = 11 : i64} {
  func.func @fused_bert_kernel(%arg0: i32, %arg1: memref<16x32xf32, #tpu.memory_space<vmem>>, %arg2: memref<2x8xf32, #tpu.memory_space<vmem>>, %arg3: memref<1x32xf32, #tpu.memory_space<vmem>>, %arg4: memref<1x32xf32, #tpu.memory_space<vmem>>, %arg5: memref<2x32x32xf32, #tpu.memory_space<vmem>>, %arg6: memref<2x1x32xf32, #tpu.memory_space<vmem>>, %arg7: memref<2x32x32xf32, #tpu.memory_space<vmem>>, %arg8: memref<2x1x32xf32, #tpu.memory_space<vmem>>, %arg9: memref<2x32x32xf32, #tpu.memory_space<vmem>>, %arg10: memref<2x1x32xf32, #tpu.memory_space<vmem>>, %arg11: memref<2x32x32xf32, #tpu.memory_space<vmem>>, %arg12: memref<2x1x32xf32, #tpu.memory_space<vmem>>, %arg13: memref<2x1x32xf32, #tpu.memory_space<vmem>>, %arg14: memref<2x1x32xf32, #tpu.memory_space<vmem>>, %arg15: memref<2x32x64xf32, #tpu.memory_space<vmem>>, %arg16: memref<2x1x64xf32, #tpu.memory_space<vmem>>, %arg17: memref<2x64x32xf32, #tpu.memory_space<vmem>>, %arg18: memref<2x1x32xf32, #tpu.memory_space<vmem>>, %arg19: memref<2x1x32xf32, #tpu.memory_space<vmem>>, %arg20: memref<2x1x32xf32, #tpu.memory_space<vmem>>, %arg21: memref<16x32xf32, #tpu.memory_space<vmem>>) attributes {dimension_semantics = [#tpu.dimension_semantics<arbitrary>], iteration_bounds = array<i64: 1>, scalar_prefetch = 0 : i64, scratch_operands = 0 : i64, tpu.core_type = #tpu.core_type<tc>, window_params = [{pipeline_mode = #tpu.pipeline_mode<synchronous>, transform_indices = @transform_0, window_bounds = array<i64: 16, 32>}, {pipeline_mode = #tpu.pipeline_mode<synchronous>, transform_indices = @transform_1, window_bounds = array<i64: 2, 8>}, {pipeline_mode = #tpu.pipeline_mode<synchronous>, transform_indices = @transform_2, window_bounds = array<i64: 1, 32>}, {pipeline_mode = #tpu.pipeline_mode<synchronous>, transform_indices = @transform_3, window_bounds = array<i64: 1, 32>}, {pipeline_mode = #tpu.pipeline_mode<synchronous>, transform_indices = @transform_4, window_bounds = array<i64: 2, 32, 32>}, {pipeline_mode = #tpu.pipeline_mode<synchronous>, transform_indices = @transform_5, window_bounds = array<i64: 2, 1, 32>}, {pipeline_mode = #tpu.pipeline_mode<synchronous>, transform_indices = @transform_6, window_bounds = array<i64: 2, 32, 32>}, {pipeline_mode = #tpu.pipeline_mode<synchronous>, transform_indices = @transform_7, window_bounds = array<i64: 2, 1, 32>}, {pipeline_mode = #tpu.pipeline_mode<synchronous>, transform_indices = @transform_8, window_bounds = array<i64: 2, 32, 32>}, {pipeline_mode = #tpu.pipeline_mode<synchronous>, transform_indices = @transform_9, window_bounds = array<i64: 2, 1, 32>}, {pipeline_mode = #tpu.pipeline_mode<synchronous>, transform_indices = @transform_10, window_bounds = array<i64: 2, 32, 32>}, {pipeline_mode = #tpu.pipeline_mode<synchronous>, transform_indices = @transform_11, window_bounds = array<i64: 2, 1, 32>}, {pipeline_mode = #tpu.pipeline_mode<synchronous>, transform_indices = @transform_12, window_bounds = array<i64: 2, 1, 32>}, {pipeline_mode = #tpu.pipeline_mode<synchronous>, transform_indices = @transform_13, window_bounds = array<i64: 2, 1, 32>}, {pipeline_mode = #tpu.pipeline_mode<synchronous>, transform_indices = @transform_14, window_bounds = array<i64: 2, 32, 64>}, {pipeline_mode = #tpu.pipeline_mode<synchronous>, transform_indices = @transform_15, window_bounds = array<i64: 2, 1, 64>}, {pipeline_mode = #tpu.pipeline_mode<synchronous>, transform_indices = @transform_16, window_bounds = array<i64: 2, 64, 32>}, {pipeline_mode = #tpu.pipeline_mode<synchronous>, transform_indices = @transform_17, window_bounds = array<i64: 2, 1, 32>}, {pipeline_mode = #tpu.pipeline_mode<synchronous>, transform_indices = @transform_18, window_bounds = array<i64: 2, 1, 32>}, {pipeline_mode = #tpu.pipeline_mode<synchronous>, transform_indices = @transform_19, window_bounds = array<i64: 2, 1, 32>}, {pipeline_mode = #tpu.pipeline_mode<synchronous>, transform_indices = @transform_20, window_bounds = array<i64: 16, 32>}]} {
    %c0 = arith.constant 0 : index
    %c0_0 = arith.constant 0 : index
    %0 = vector.load %arg2[%c0, %c0_0] : memref<2x8xf32, #tpu.memory_space<vmem>>, vector<2x8xf32>
    %cst = arith.constant 1.000000e+00 : f32
    %1 = vector.broadcast %cst : f32 to vector<2x8xf32>
    %2 = arith.subf %1, %0 : vector<2x8xf32>
    %cst_1 = arith.constant -1.000000e+09 : f32
    %3 = vector.broadcast %cst_1 : f32 to vector<2x8xf32>
    %4 = arith.mulf %2, %3 : vector<2x8xf32>
    %c0_2 = arith.constant 0 : index
    %c0_3 = arith.constant 0 : index
    %5 = vector.load %arg1[%c0_2, %c0_3] : memref<16x32xf32, #tpu.memory_space<vmem>>, vector<16x32xf32>
    %c0_4 = arith.constant 0 : index
    %c0_5 = arith.constant 0 : index
    %6 = vector.load %arg3[%c0_4, %c0_5] : memref<1x32xf32, #tpu.memory_space<vmem>>, vector<1x32xf32>
    %c0_6 = arith.constant 0 : index
    %c0_7 = arith.constant 0 : index
    %7 = vector.load %arg4[%c0_6, %c0_7] : memref<1x32xf32, #tpu.memory_space<vmem>>, vector<1x32xf32>
    %cst_8 = arith.constant dense<0.000000e+00> : vector<16xf32>
    %8 = vector.multi_reduction <add>, %5, %cst_8 [1] : vector<16x32xf32> to vector<16xf32>
    %9 = vector.shape_cast %8 : vector<16xf32> to vector<16x1xf32>
    %cst_9 = arith.constant 3.200000e+01 : f32
    %10 = vector.broadcast %cst_9 : f32 to vector<16x1xf32>
    %11 = arith.divf %9, %10 : vector<16x1xf32>
    %12 = vector.broadcast %11 : vector<16x1xf32> to vector<16x32xf32>
    %13 = arith.subf %5, %12 : vector<16x32xf32>
    %14 = arith.mulf %13, %13 : vector<16x32xf32>
    %cst_10 = arith.constant dense<0.000000e+00> : vector<16xf32>
    %15 = vector.multi_reduction <add>, %14, %cst_10 [1] : vector<16x32xf32> to vector<16xf32>
    %16 = vector.shape_cast %15 : vector<16xf32> to vector<16x1xf32>
    %cst_11 = arith.constant 3.200000e+01 : f32
    %17 = vector.broadcast %cst_11 : f32 to vector<16x1xf32>
    %18 = arith.divf %16, %17 : vector<16x1xf32>
    %19 = vector.broadcast %11 : vector<16x1xf32> to vector<16x32xf32>
    %20 = arith.subf %5, %19 : vector<16x32xf32>
    %cst_12 = arith.constant 9.99999996E-13 : f32
    %21 = vector.broadcast %cst_12 : f32 to vector<16x1xf32>
    %22 = arith.addf %18, %21 : vector<16x1xf32>
    %23 = math.rsqrt %22 : vector<16x1xf32>
    %24 = vector.broadcast %23 : vector<16x1xf32> to vector<16x32xf32>
    %25 = arith.mulf %20, %24 : vector<16x32xf32>
    %26 = vector.broadcast %6 : vector<1x32xf32> to vector<16x32xf32>
    %27 = arith.mulf %25, %26 : vector<16x32xf32>
    %28 = vector.broadcast %7 : vector<1x32xf32> to vector<16x32xf32>
    %29 = arith.addf %27, %28 : vector<16x32xf32>
    %c0_13 = arith.constant 0 : index
    %c0_14 = arith.constant 0 : index
    %c0_15 = arith.constant 0 : index
    %30 = vector.load %arg5[%c0_13, %c0_14, %c0_15] : memref<2x32x32xf32, #tpu.memory_space<vmem>>, vector<1x32x32xf32>
    %31 = vector.shape_cast %30 : vector<1x32x32xf32> to vector<32x32xf32>
    %cst_16 = arith.constant dense<0.000000e+00> : vector<16x32xf32>
    %32 = tpu.matmul %29, %31, %cst_16 {dimension_numbers = #tpu.dot_dimension_numbers<[1], [0], [0], [1], [0, 0, 1, 1], [], []>} : vector<16x32xf32>, vector<32x32xf32>, vector<16x32xf32> -> vector<16x32xf32>
    %c0_17 = arith.constant 0 : index
    %c0_18 = arith.constant 0 : index
    %c0_19 = arith.constant 0 : index
    %33 = vector.load %arg6[%c0_17, %c0_18, %c0_19] : memref<2x1x32xf32, #tpu.memory_space<vmem>>, vector<1x1x32xf32>
    %34 = vector.shape_cast %33 : vector<1x1x32xf32> to vector<1x32xf32>
    %35 = vector.broadcast %34 : vector<1x32xf32> to vector<16x32xf32>
    %36 = arith.addf %32, %35 : vector<16x32xf32>
    %cst_20 = arith.constant 0.353553385 : f32
    %37 = vector.broadcast %cst_20 : f32 to vector<16x32xf32>
    %38 = arith.mulf %36, %37 : vector<16x32xf32>
    %c0_21 = arith.constant 0 : index
    %c0_22 = arith.constant 0 : index
    %c0_23 = arith.constant 0 : index
    %39 = vector.load %arg7[%c0_21, %c0_22, %c0_23] : memref<2x32x32xf32, #tpu.memory_space<vmem>>, vector<1x32x32xf32>
    %40 = vector.shape_cast %39 : vector<1x32x32xf32> to vector<32x32xf32>
    %cst_24 = arith.constant dense<0.000000e+00> : vector<16x32xf32>
    %41 = tpu.matmul %29, %40, %cst_24 {dimension_numbers = #tpu.dot_dimension_numbers<[1], [0], [0], [1], [0, 0, 1, 1], [], []>} : vector<16x32xf32>, vector<32x32xf32>, vector<16x32xf32> -> vector<16x32xf32>
    %c0_25 = arith.constant 0 : index
    %c0_26 = arith.constant 0 : index
    %c0_27 = arith.constant 0 : index
    %42 = vector.load %arg8[%c0_25, %c0_26, %c0_27] : memref<2x1x32xf32, #tpu.memory_space<vmem>>, vector<1x1x32xf32>
    %43 = vector.shape_cast %42 : vector<1x1x32xf32> to vector<1x32xf32>
    %44 = vector.broadcast %43 : vector<1x32xf32> to vector<16x32xf32>
    %45 = arith.addf %41, %44 : vector<16x32xf32>
    %c0_28 = arith.constant 0 : index
    %c0_29 = arith.constant 0 : index
    %c0_30 = arith.constant 0 : index
    %46 = vector.load %arg9[%c0_28, %c0_29, %c0_30] : memref<2x32x32xf32, #tpu.memory_space<vmem>>, vector<1x32x32xf32>
    %47 = vector.shape_cast %46 : vector<1x32x32xf32> to vector<32x32xf32>
    %cst_31 = arith.constant dense<0.000000e+00> : vector<16x32xf32>
    %48 = tpu.matmul %29, %47, %cst_31 {dimension_numbers = #tpu.dot_dimension_numbers<[1], [0], [0], [1], [0, 0, 1, 1], [], []>} : vector<16x32xf32>, vector<32x32xf32>, vector<16x32xf32> -> vector<16x32xf32>
    %c0_32 = arith.constant 0 : index
    %c0_33 = arith.constant 0 : index
    %c0_34 = arith.constant 0 : index
    %49 = vector.load %arg10[%c0_32, %c0_33, %c0_34] : memref<2x1x32xf32, #tpu.memory_space<vmem>>, vector<1x1x32xf32>
    %50 = vector.shape_cast %49 : vector<1x1x32xf32> to vector<1x32xf32>
    %51 = vector.broadcast %50 : vector<1x32xf32> to vector<16x32xf32>
    %52 = arith.addf %48, %51 : vector<16x32xf32>
    %53 = vector.extract_strided_slice %38 {offsets = [0, 0], sizes = [8, 32], strides = [1, 1]} : vector<16x32xf32> to vector<8x32xf32>
    %54 = vector.extract_strided_slice %45 {offsets = [0, 0], sizes = [8, 32], strides = [1, 1]} : vector<16x32xf32> to vector<8x32xf32>
    %55 = vector.extract_strided_slice %52 {offsets = [0, 0], sizes = [8, 32], strides = [1, 1]} : vector<16x32xf32> to vector<8x32xf32>
    %56 = vector.extract_strided_slice %4 {offsets = [0, 0], sizes = [1, 8], strides = [1, 1]} : vector<2x8xf32> to vector<1x8xf32>
    %57 = vector.extract_strided_slice %53 {offsets = [0, 0], sizes = [8, 8], strides = [1, 1]} : vector<8x32xf32> to vector<8x8xf32>
    %58 = vector.extract_strided_slice %54 {offsets = [0, 0], sizes = [8, 8], strides = [1, 1]} : vector<8x32xf32> to vector<8x8xf32>
    %59 = vector.extract_strided_slice %55 {offsets = [0, 0], sizes = [8, 8], strides = [1, 1]} : vector<8x32xf32> to vector<8x8xf32>
    %60 = tpu.transpose %58, [1, 0] : vector<8x8xf32> -> vector<8x8xf32>
    %cst_35 = arith.constant dense<0.000000e+00> : vector<8x8xf32>
    %61 = tpu.matmul %57, %60, %cst_35 {dimension_numbers = #tpu.dot_dimension_numbers<[1], [0], [0], [1], [0, 0, 1, 1], [], []>} : vector<8x8xf32>, vector<8x8xf32>, vector<8x8xf32> -> vector<8x8xf32>
    %62 = vector.broadcast %56 : vector<1x8xf32> to vector<8x8xf32>
    %63 = arith.addf %61, %62 : vector<8x8xf32>
    %cst_36 = arith.constant dense<0xFF800000> : vector<8xf32>
    %64 = vector.multi_reduction <maximumf>, %63, %cst_36 [1] : vector<8x8xf32> to vector<8xf32>
    %65 = vector.shape_cast %64 : vector<8xf32> to vector<8x1xf32>
    %66 = vector.broadcast %65 : vector<8x1xf32> to vector<8x8xf32>
    %67 = arith.subf %63, %66 : vector<8x8xf32>
    %68 = math.exp %67 : vector<8x8xf32>
    %cst_37 = arith.constant dense<0.000000e+00> : vector<8xf32>
    %69 = vector.multi_reduction <add>, %68, %cst_37 [1] : vector<8x8xf32> to vector<8xf32>
    %70 = vector.shape_cast %69 : vector<8xf32> to vector<8x1xf32>
    %71 = tpu.reciprocal %70 {approx = true} : vector<8x1xf32> -> vector<8x1xf32>
    %72 = vector.broadcast %71 : vector<8x1xf32> to vector<8x8xf32>
    %73 = arith.mulf %68, %72 : vector<8x8xf32>
    %cst_38 = arith.constant dense<0.000000e+00> : vector<8x8xf32>
    %74 = tpu.matmul %73, %59, %cst_38 {dimension_numbers = #tpu.dot_dimension_numbers<[1], [0], [0], [1], [0, 0, 1, 1], [], []>} : vector<8x8xf32>, vector<8x8xf32>, vector<8x8xf32> -> vector<8x8xf32>
    %75 = vector.extract_strided_slice %53 {offsets = [0, 8], sizes = [8, 8], strides = [1, 1]} : vector<8x32xf32> to vector<8x8xf32>
    %76 = vector.extract_strided_slice %54 {offsets = [0, 8], sizes = [8, 8], strides = [1, 1]} : vector<8x32xf32> to vector<8x8xf32>
    %77 = vector.extract_strided_slice %55 {offsets = [0, 8], sizes = [8, 8], strides = [1, 1]} : vector<8x32xf32> to vector<8x8xf32>
    %78 = tpu.transpose %76, [1, 0] : vector<8x8xf32> -> vector<8x8xf32>
    %cst_39 = arith.constant dense<0.000000e+00> : vector<8x8xf32>
    %79 = tpu.matmul %75, %78, %cst_39 {dimension_numbers = #tpu.dot_dimension_numbers<[1], [0], [0], [1], [0, 0, 1, 1], [], []>} : vector<8x8xf32>, vector<8x8xf32>, vector<8x8xf32> -> vector<8x8xf32>
    %80 = vector.broadcast %56 : vector<1x8xf32> to vector<8x8xf32>
    %81 = arith.addf %79, %80 : vector<8x8xf32>
    %cst_40 = arith.constant dense<0xFF800000> : vector<8xf32>
    %82 = vector.multi_reduction <maximumf>, %81, %cst_40 [1] : vector<8x8xf32> to vector<8xf32>
    %83 = vector.shape_cast %82 : vector<8xf32> to vector<8x1xf32>
    %84 = vector.broadcast %83 : vector<8x1xf32> to vector<8x8xf32>
    %85 = arith.subf %81, %84 : vector<8x8xf32>
    %86 = math.exp %85 : vector<8x8xf32>
    %cst_41 = arith.constant dense<0.000000e+00> : vector<8xf32>
    %87 = vector.multi_reduction <add>, %86, %cst_41 [1] : vector<8x8xf32> to vector<8xf32>
    %88 = vector.shape_cast %87 : vector<8xf32> to vector<8x1xf32>
    %89 = tpu.reciprocal %88 {approx = true} : vector<8x1xf32> -> vector<8x1xf32>
    %90 = vector.broadcast %89 : vector<8x1xf32> to vector<8x8xf32>
    %91 = arith.mulf %86, %90 : vector<8x8xf32>
    %cst_42 = arith.constant dense<0.000000e+00> : vector<8x8xf32>
    %92 = tpu.matmul %91, %77, %cst_42 {dimension_numbers = #tpu.dot_dimension_numbers<[1], [0], [0], [1], [0, 0, 1, 1], [], []>} : vector<8x8xf32>, vector<8x8xf32>, vector<8x8xf32> -> vector<8x8xf32>
    %93 = vector.extract_strided_slice %53 {offsets = [0, 16], sizes = [8, 8], strides = [1, 1]} : vector<8x32xf32> to vector<8x8xf32>
    %94 = vector.extract_strided_slice %54 {offsets = [0, 16], sizes = [8, 8], strides = [1, 1]} : vector<8x32xf32> to vector<8x8xf32>
    %95 = vector.extract_strided_slice %55 {offsets = [0, 16], sizes = [8, 8], strides = [1, 1]} : vector<8x32xf32> to vector<8x8xf32>
    %96 = tpu.transpose %94, [1, 0] : vector<8x8xf32> -> vector<8x8xf32>
    %cst_43 = arith.constant dense<0.000000e+00> : vector<8x8xf32>
    %97 = tpu.matmul %93, %96, %cst_43 {dimension_numbers = #tpu.dot_dimension_numbers<[1], [0], [0], [1], [0, 0, 1, 1], [], []>} : vector<8x8xf32>, vector<8x8xf32>, vector<8x8xf32> -> vector<8x8xf32>
    %98 = vector.broadcast %56 : vector<1x8xf32> to vector<8x8xf32>
    %99 = arith.addf %97, %98 : vector<8x8xf32>
    %cst_44 = arith.constant dense<0xFF800000> : vector<8xf32>
    %100 = vector.multi_reduction <maximumf>, %99, %cst_44 [1] : vector<8x8xf32> to vector<8xf32>
    %101 = vector.shape_cast %100 : vector<8xf32> to vector<8x1xf32>
    %102 = vector.broadcast %101 : vector<8x1xf32> to vector<8x8xf32>
    %103 = arith.subf %99, %102 : vector<8x8xf32>
    %104 = math.exp %103 : vector<8x8xf32>
    %cst_45 = arith.constant dense<0.000000e+00> : vector<8xf32>
    %105 = vector.multi_reduction <add>, %104, %cst_45 [1] : vector<8x8xf32> to vector<8xf32>
    %106 = vector.shape_cast %105 : vector<8xf32> to vector<8x1xf32>
    %107 = tpu.reciprocal %106 {approx = true} : vector<8x1xf32> -> vector<8x1xf32>
    %108 = vector.broadcast %107 : vector<8x1xf32> to vector<8x8xf32>
    %109 = arith.mulf %104, %108 : vector<8x8xf32>
    %cst_46 = arith.constant dense<0.000000e+00> : vector<8x8xf32>
    %110 = tpu.matmul %109, %95, %cst_46 {dimension_numbers = #tpu.dot_dimension_numbers<[1], [0], [0], [1], [0, 0, 1, 1], [], []>} : vector<8x8xf32>, vector<8x8xf32>, vector<8x8xf32> -> vector<8x8xf32>
    %111 = vector.extract_strided_slice %53 {offsets = [0, 24], sizes = [8, 8], strides = [1, 1]} : vector<8x32xf32> to vector<8x8xf32>
    %112 = vector.extract_strided_slice %54 {offsets = [0, 24], sizes = [8, 8], strides = [1, 1]} : vector<8x32xf32> to vector<8x8xf32>
    %113 = vector.extract_strided_slice %55 {offsets = [0, 24], sizes = [8, 8], strides = [1, 1]} : vector<8x32xf32> to vector<8x8xf32>
    %114 = tpu.transpose %112, [1, 0] : vector<8x8xf32> -> vector<8x8xf32>
    %cst_47 = arith.constant dense<0.000000e+00> : vector<8x8xf32>
    %115 = tpu.matmul %111, %114, %cst_47 {dimension_numbers = #tpu.dot_dimension_numbers<[1], [0], [0], [1], [0, 0, 1, 1], [], []>} : vector<8x8xf32>, vector<8x8xf32>, vector<8x8xf32> -> vector<8x8xf32>
    %116 = vector.broadcast %56 : vector<1x8xf32> to vector<8x8xf32>
    %117 = arith.addf %115, %116 : vector<8x8xf32>
    %cst_48 = arith.constant dense<0xFF800000> : vector<8xf32>
    %118 = vector.multi_reduction <maximumf>, %117, %cst_48 [1] : vector<8x8xf32> to vector<8xf32>
    %119 = vector.shape_cast %118 : vector<8xf32> to vector<8x1xf32>
    %120 = vector.broadcast %119 : vector<8x1xf32> to vector<8x8xf32>
    %121 = arith.subf %117, %120 : vector<8x8xf32>
    %122 = math.exp %121 : vector<8x8xf32>
    %cst_49 = arith.constant dense<0.000000e+00> : vector<8xf32>
    %123 = vector.multi_reduction <add>, %122, %cst_49 [1] : vector<8x8xf32> to vector<8xf32>
    %124 = vector.shape_cast %123 : vector<8xf32> to vector<8x1xf32>
    %125 = tpu.reciprocal %124 {approx = true} : vector<8x1xf32> -> vector<8x1xf32>
    %126 = vector.broadcast %125 : vector<8x1xf32> to vector<8x8xf32>
    %127 = arith.mulf %122, %126 : vector<8x8xf32>
    %cst_50 = arith.constant dense<0.000000e+00> : vector<8x8xf32>
    %128 = tpu.matmul %127, %113, %cst_50 {dimension_numbers = #tpu.dot_dimension_numbers<[1], [0], [0], [1], [0, 0, 1, 1], [], []>} : vector<8x8xf32>, vector<8x8xf32>, vector<8x8xf32> -> vector<8x8xf32>
    %129 = tpu.concatenate %74, %92, %110, %128 in 1 : vector<8x8xf32>, vector<8x8xf32>, vector<8x8xf32>, vector<8x8xf32> -> vector<8x32xf32>
    %130 = vector.extract_strided_slice %38 {offsets = [8, 0], sizes = [8, 32], strides = [1, 1]} : vector<16x32xf32> to vector<8x32xf32>
    %131 = vector.extract_strided_slice %45 {offsets = [8, 0], sizes = [8, 32], strides = [1, 1]} : vector<16x32xf32> to vector<8x32xf32>
    %132 = vector.extract_strided_slice %52 {offsets = [8, 0], sizes = [8, 32], strides = [1, 1]} : vector<16x32xf32> to vector<8x32xf32>
    %133 = vector.extract_strided_slice %4 {offsets = [1, 0], sizes = [1, 8], strides = [1, 1]} : vector<2x8xf32> to vector<1x8xf32>
    %134 = vector.extract_strided_slice %130 {offsets = [0, 0], sizes = [8, 8], strides = [1, 1]} : vector<8x32xf32> to vector<8x8xf32>
    %135 = vector.extract_strided_slice %131 {offsets = [0, 0], sizes = [8, 8], strides = [1, 1]} : vector<8x32xf32> to vector<8x8xf32>
    %136 = vector.extract_strided_slice %132 {offsets = [0, 0], sizes = [8, 8], strides = [1, 1]} : vector<8x32xf32> to vector<8x8xf32>
    %137 = tpu.transpose %135, [1, 0] : vector<8x8xf32> -> vector<8x8xf32>
    %cst_51 = arith.constant dense<0.000000e+00> : vector<8x8xf32>
    %138 = tpu.matmul %134, %137, %cst_51 {dimension_numbers = #tpu.dot_dimension_numbers<[1], [0], [0], [1], [0, 0, 1, 1], [], []>} : vector<8x8xf32>, vector<8x8xf32>, vector<8x8xf32> -> vector<8x8xf32>
    %139 = vector.broadcast %133 : vector<1x8xf32> to vector<8x8xf32>
    %140 = arith.addf %138, %139 : vector<8x8xf32>
    %cst_52 = arith.constant dense<0xFF800000> : vector<8xf32>
    %141 = vector.multi_reduction <maximumf>, %140, %cst_52 [1] : vector<8x8xf32> to vector<8xf32>
    %142 = vector.shape_cast %141 : vector<8xf32> to vector<8x1xf32>
    %143 = vector.broadcast %142 : vector<8x1xf32> to vector<8x8xf32>
    %144 = arith.subf %140, %143 : vector<8x8xf32>
    %145 = math.exp %144 : vector<8x8xf32>
    %cst_53 = arith.constant dense<0.000000e+00> : vector<8xf32>
    %146 = vector.multi_reduction <add>, %145, %cst_53 [1] : vector<8x8xf32> to vector<8xf32>
    %147 = vector.shape_cast %146 : vector<8xf32> to vector<8x1xf32>
    %148 = tpu.reciprocal %147 {approx = true} : vector<8x1xf32> -> vector<8x1xf32>
    %149 = vector.broadcast %148 : vector<8x1xf32> to vector<8x8xf32>
    %150 = arith.mulf %145, %149 : vector<8x8xf32>
    %cst_54 = arith.constant dense<0.000000e+00> : vector<8x8xf32>
    %151 = tpu.matmul %150, %136, %cst_54 {dimension_numbers = #tpu.dot_dimension_numbers<[1], [0], [0], [1], [0, 0, 1, 1], [], []>} : vector<8x8xf32>, vector<8x8xf32>, vector<8x8xf32> -> vector<8x8xf32>
    %152 = vector.extract_strided_slice %130 {offsets = [0, 8], sizes = [8, 8], strides = [1, 1]} : vector<8x32xf32> to vector<8x8xf32>
    %153 = vector.extract_strided_slice %131 {offsets = [0, 8], sizes = [8, 8], strides = [1, 1]} : vector<8x32xf32> to vector<8x8xf32>
    %154 = vector.extract_strided_slice %132 {offsets = [0, 8], sizes = [8, 8], strides = [1, 1]} : vector<8x32xf32> to vector<8x8xf32>
    %155 = tpu.transpose %153, [1, 0] : vector<8x8xf32> -> vector<8x8xf32>
    %cst_55 = arith.constant dense<0.000000e+00> : vector<8x8xf32>
    %156 = tpu.matmul %152, %155, %cst_55 {dimension_numbers = #tpu.dot_dimension_numbers<[1], [0], [0], [1], [0, 0, 1, 1], [], []>} : vector<8x8xf32>, vector<8x8xf32>, vector<8x8xf32> -> vector<8x8xf32>
    %157 = vector.broadcast %133 : vector<1x8xf32> to vector<8x8xf32>
    %158 = arith.addf %156, %157 : vector<8x8xf32>
    %cst_56 = arith.constant dense<0xFF800000> : vector<8xf32>
    %159 = vector.multi_reduction <maximumf>, %158, %cst_56 [1] : vector<8x8xf32> to vector<8xf32>
    %160 = vector.shape_cast %159 : vector<8xf32> to vector<8x1xf32>
    %161 = vector.broadcast %160 : vector<8x1xf32> to vector<8x8xf32>
    %162 = arith.subf %158, %161 : vector<8x8xf32>
    %163 = math.exp %162 : vector<8x8xf32>
    %cst_57 = arith.constant dense<0.000000e+00> : vector<8xf32>
    %164 = vector.multi_reduction <add>, %163, %cst_57 [1] : vector<8x8xf32> to vector<8xf32>
    %165 = vector.shape_cast %164 : vector<8xf32> to vector<8x1xf32>
    %166 = tpu.reciprocal %165 {approx = true} : vector<8x1xf32> -> vector<8x1xf32>
    %167 = vector.broadcast %166 : vector<8x1xf32> to vector<8x8xf32>
    %168 = arith.mulf %163, %167 : vector<8x8xf32>
    %cst_58 = arith.constant dense<0.000000e+00> : vector<8x8xf32>
    %169 = tpu.matmul %168, %154, %cst_58 {dimension_numbers = #tpu.dot_dimension_numbers<[1], [0], [0], [1], [0, 0, 1, 1], [], []>} : vector<8x8xf32>, vector<8x8xf32>, vector<8x8xf32> -> vector<8x8xf32>
    %170 = vector.extract_strided_slice %130 {offsets = [0, 16], sizes = [8, 8], strides = [1, 1]} : vector<8x32xf32> to vector<8x8xf32>
    %171 = vector.extract_strided_slice %131 {offsets = [0, 16], sizes = [8, 8], strides = [1, 1]} : vector<8x32xf32> to vector<8x8xf32>
    %172 = vector.extract_strided_slice %132 {offsets = [0, 16], sizes = [8, 8], strides = [1, 1]} : vector<8x32xf32> to vector<8x8xf32>
    %173 = tpu.transpose %171, [1, 0] : vector<8x8xf32> -> vector<8x8xf32>
    %cst_59 = arith.constant dense<0.000000e+00> : vector<8x8xf32>
    %174 = tpu.matmul %170, %173, %cst_59 {dimension_numbers = #tpu.dot_dimension_numbers<[1], [0], [0], [1], [0, 0, 1, 1], [], []>} : vector<8x8xf32>, vector<8x8xf32>, vector<8x8xf32> -> vector<8x8xf32>
    %175 = vector.broadcast %133 : vector<1x8xf32> to vector<8x8xf32>
    %176 = arith.addf %174, %175 : vector<8x8xf32>
    %cst_60 = arith.constant dense<0xFF800000> : vector<8xf32>
    %177 = vector.multi_reduction <maximumf>, %176, %cst_60 [1] : vector<8x8xf32> to vector<8xf32>
    %178 = vector.shape_cast %177 : vector<8xf32> to vector<8x1xf32>
    %179 = vector.broadcast %178 : vector<8x1xf32> to vector<8x8xf32>
    %180 = arith.subf %176, %179 : vector<8x8xf32>
    %181 = math.exp %180 : vector<8x8xf32>
    %cst_61 = arith.constant dense<0.000000e+00> : vector<8xf32>
    %182 = vector.multi_reduction <add>, %181, %cst_61 [1] : vector<8x8xf32> to vector<8xf32>
    %183 = vector.shape_cast %182 : vector<8xf32> to vector<8x1xf32>
    %184 = tpu.reciprocal %183 {approx = true} : vector<8x1xf32> -> vector<8x1xf32>
    %185 = vector.broadcast %184 : vector<8x1xf32> to vector<8x8xf32>
    %186 = arith.mulf %181, %185 : vector<8x8xf32>
    %cst_62 = arith.constant dense<0.000000e+00> : vector<8x8xf32>
    %187 = tpu.matmul %186, %172, %cst_62 {dimension_numbers = #tpu.dot_dimension_numbers<[1], [0], [0], [1], [0, 0, 1, 1], [], []>} : vector<8x8xf32>, vector<8x8xf32>, vector<8x8xf32> -> vector<8x8xf32>
    %188 = vector.extract_strided_slice %130 {offsets = [0, 24], sizes = [8, 8], strides = [1, 1]} : vector<8x32xf32> to vector<8x8xf32>
    %189 = vector.extract_strided_slice %131 {offsets = [0, 24], sizes = [8, 8], strides = [1, 1]} : vector<8x32xf32> to vector<8x8xf32>
    %190 = vector.extract_strided_slice %132 {offsets = [0, 24], sizes = [8, 8], strides = [1, 1]} : vector<8x32xf32> to vector<8x8xf32>
    %191 = tpu.transpose %189, [1, 0] : vector<8x8xf32> -> vector<8x8xf32>
    %cst_63 = arith.constant dense<0.000000e+00> : vector<8x8xf32>
    %192 = tpu.matmul %188, %191, %cst_63 {dimension_numbers = #tpu.dot_dimension_numbers<[1], [0], [0], [1], [0, 0, 1, 1], [], []>} : vector<8x8xf32>, vector<8x8xf32>, vector<8x8xf32> -> vector<8x8xf32>
    %193 = vector.broadcast %133 : vector<1x8xf32> to vector<8x8xf32>
    %194 = arith.addf %192, %193 : vector<8x8xf32>
    %cst_64 = arith.constant dense<0xFF800000> : vector<8xf32>
    %195 = vector.multi_reduction <maximumf>, %194, %cst_64 [1] : vector<8x8xf32> to vector<8xf32>
    %196 = vector.shape_cast %195 : vector<8xf32> to vector<8x1xf32>
    %197 = vector.broadcast %196 : vector<8x1xf32> to vector<8x8xf32>
    %198 = arith.subf %194, %197 : vector<8x8xf32>
    %199 = math.exp %198 : vector<8x8xf32>
    %cst_65 = arith.constant dense<0.000000e+00> : vector<8xf32>
    %200 = vector.multi_reduction <add>, %199, %cst_65 [1] : vector<8x8xf32> to vector<8xf32>
    %201 = vector.shape_cast %200 : vector<8xf32> to vector<8x1xf32>
    %202 = tpu.reciprocal %201 {approx = true} : vector<8x1xf32> -> vector<8x1xf32>
    %203 = vector.broadcast %202 : vector<8x1xf32> to vector<8x8xf32>
    %204 = arith.mulf %199, %203 : vector<8x8xf32>
    %cst_66 = arith.constant dense<0.000000e+00> : vector<8x8xf32>
    %205 = tpu.matmul %204, %190, %cst_66 {dimension_numbers = #tpu.dot_dimension_numbers<[1], [0], [0], [1], [0, 0, 1, 1], [], []>} : vector<8x8xf32>, vector<8x8xf32>, vector<8x8xf32> -> vector<8x8xf32>
    %206 = tpu.concatenate %151, %169, %187, %205 in 1 : vector<8x8xf32>, vector<8x8xf32>, vector<8x8xf32>, vector<8x8xf32> -> vector<8x32xf32>
    %207 = tpu.concatenate %129, %206 in 0 : vector<8x32xf32>, vector<8x32xf32> -> vector<16x32xf32>
    %c0_67 = arith.constant 0 : index
    %c0_68 = arith.constant 0 : index
    %c0_69 = arith.constant 0 : index
    %208 = vector.load %arg11[%c0_67, %c0_68, %c0_69] : memref<2x32x32xf32, #tpu.memory_space<vmem>>, vector<1x32x32xf32>
    %209 = vector.shape_cast %208 : vector<1x32x32xf32> to vector<32x32xf32>
    %cst_70 = arith.constant dense<0.000000e+00> : vector<16x32xf32>
    %210 = tpu.matmul %207, %209, %cst_70 {dimension_numbers = #tpu.dot_dimension_numbers<[1], [0], [0], [1], [0, 0, 1, 1], [], []>} : vector<16x32xf32>, vector<32x32xf32>, vector<16x32xf32> -> vector<16x32xf32>
    %c0_71 = arith.constant 0 : index
    %c0_72 = arith.constant 0 : index
    %c0_73 = arith.constant 0 : index
    %211 = vector.load %arg12[%c0_71, %c0_72, %c0_73] : memref<2x1x32xf32, #tpu.memory_space<vmem>>, vector<1x1x32xf32>
    %212 = vector.shape_cast %211 : vector<1x1x32xf32> to vector<1x32xf32>
    %213 = vector.broadcast %212 : vector<1x32xf32> to vector<16x32xf32>
    %214 = arith.addf %210, %213 : vector<16x32xf32>
    %215 = arith.addf %29, %214 : vector<16x32xf32>
    %c0_74 = arith.constant 0 : index
    %c0_75 = arith.constant 0 : index
    %c0_76 = arith.constant 0 : index
    %216 = vector.load %arg13[%c0_74, %c0_75, %c0_76] : memref<2x1x32xf32, #tpu.memory_space<vmem>>, vector<1x1x32xf32>
    %217 = vector.shape_cast %216 : vector<1x1x32xf32> to vector<1x32xf32>
    %c0_77 = arith.constant 0 : index
    %c0_78 = arith.constant 0 : index
    %c0_79 = arith.constant 0 : index
    %218 = vector.load %arg14[%c0_77, %c0_78, %c0_79] : memref<2x1x32xf32, #tpu.memory_space<vmem>>, vector<1x1x32xf32>
    %219 = vector.shape_cast %218 : vector<1x1x32xf32> to vector<1x32xf32>
    %cst_80 = arith.constant dense<0.000000e+00> : vector<16xf32>
    %220 = vector.multi_reduction <add>, %215, %cst_80 [1] : vector<16x32xf32> to vector<16xf32>
    %221 = vector.shape_cast %220 : vector<16xf32> to vector<16x1xf32>
    %cst_81 = arith.constant 3.200000e+01 : f32
    %222 = vector.broadcast %cst_81 : f32 to vector<16x1xf32>
    %223 = arith.divf %221, %222 : vector<16x1xf32>
    %224 = vector.broadcast %223 : vector<16x1xf32> to vector<16x32xf32>
    %225 = arith.subf %215, %224 : vector<16x32xf32>
    %226 = arith.mulf %225, %225 : vector<16x32xf32>
    %cst_82 = arith.constant dense<0.000000e+00> : vector<16xf32>
    %227 = vector.multi_reduction <add>, %226, %cst_82 [1] : vector<16x32xf32> to vector<16xf32>
    %228 = vector.shape_cast %227 : vector<16xf32> to vector<16x1xf32>
    %cst_83 = arith.constant 3.200000e+01 : f32
    %229 = vector.broadcast %cst_83 : f32 to vector<16x1xf32>
    %230 = arith.divf %228, %229 : vector<16x1xf32>
    %231 = vector.broadcast %223 : vector<16x1xf32> to vector<16x32xf32>
    %232 = arith.subf %215, %231 : vector<16x32xf32>
    %cst_84 = arith.constant 9.99999996E-13 : f32
    %233 = vector.broadcast %cst_84 : f32 to vector<16x1xf32>
    %234 = arith.addf %230, %233 : vector<16x1xf32>
    %235 = math.rsqrt %234 : vector<16x1xf32>
    %236 = vector.broadcast %235 : vector<16x1xf32> to vector<16x32xf32>
    %237 = arith.mulf %232, %236 : vector<16x32xf32>
    %238 = vector.broadcast %217 : vector<1x32xf32> to vector<16x32xf32>
    %239 = arith.mulf %237, %238 : vector<16x32xf32>
    %240 = vector.broadcast %219 : vector<1x32xf32> to vector<16x32xf32>
    %241 = arith.addf %239, %240 : vector<16x32xf32>
    %c0_85 = arith.constant 0 : index
    %c0_86 = arith.constant 0 : index
    %c0_87 = arith.constant 0 : index
    %242 = vector.load %arg15[%c0_85, %c0_86, %c0_87] : memref<2x32x64xf32, #tpu.memory_space<vmem>>, vector<1x32x64xf32>
    %243 = vector.shape_cast %242 : vector<1x32x64xf32> to vector<32x64xf32>
    %cst_88 = arith.constant dense<0.000000e+00> : vector<16x64xf32>
    %244 = tpu.matmul %241, %243, %cst_88 {dimension_numbers = #tpu.dot_dimension_numbers<[1], [0], [0], [1], [0, 0, 1, 1], [], []>} : vector<16x32xf32>, vector<32x64xf32>, vector<16x64xf32> -> vector<16x64xf32>
    %c0_89 = arith.constant 0 : index
    %c0_90 = arith.constant 0 : index
    %c0_91 = arith.constant 0 : index
    %245 = vector.load %arg16[%c0_89, %c0_90, %c0_91] : memref<2x1x64xf32, #tpu.memory_space<vmem>>, vector<1x1x64xf32>
    %246 = vector.shape_cast %245 : vector<1x1x64xf32> to vector<1x64xf32>
    %247 = vector.broadcast %246 : vector<1x64xf32> to vector<16x64xf32>
    %248 = arith.addf %244, %247 : vector<16x64xf32>
    %249 = arith.mulf %248, %248 : vector<16x64xf32>
    %250 = arith.mulf %248, %249 : vector<16x64xf32>
    %cst_92 = arith.constant 4.471500e-02 : f32
    %251 = vector.broadcast %cst_92 : f32 to vector<16x64xf32>
    %252 = arith.mulf %251, %250 : vector<16x64xf32>
    %253 = arith.addf %248, %252 : vector<16x64xf32>
    %cst_93 = arith.constant 0.797884583 : f32
    %254 = vector.broadcast %cst_93 : f32 to vector<16x64xf32>
    %255 = arith.mulf %254, %253 : vector<16x64xf32>
    %256 = math.tanh %255 : vector<16x64xf32>
    %cst_94 = arith.constant 1.000000e+00 : f32
    %257 = vector.broadcast %cst_94 : f32 to vector<16x64xf32>
    %258 = arith.addf %257, %256 : vector<16x64xf32>
    %cst_95 = arith.constant 5.000000e-01 : f32
    %259 = vector.broadcast %cst_95 : f32 to vector<16x64xf32>
    %260 = arith.mulf %259, %258 : vector<16x64xf32>
    %261 = arith.mulf %248, %260 : vector<16x64xf32>
    %c0_96 = arith.constant 0 : index
    %c0_97 = arith.constant 0 : index
    %c0_98 = arith.constant 0 : index
    %262 = vector.load %arg17[%c0_96, %c0_97, %c0_98] : memref<2x64x32xf32, #tpu.memory_space<vmem>>, vector<1x64x32xf32>
    %263 = vector.shape_cast %262 : vector<1x64x32xf32> to vector<64x32xf32>
    %cst_99 = arith.constant dense<0.000000e+00> : vector<16x32xf32>
    %264 = tpu.matmul %261, %263, %cst_99 {dimension_numbers = #tpu.dot_dimension_numbers<[1], [0], [0], [1], [0, 0, 1, 1], [], []>} : vector<16x64xf32>, vector<64x32xf32>, vector<16x32xf32> -> vector<16x32xf32>
    %c0_100 = arith.constant 0 : index
    %c0_101 = arith.constant 0 : index
    %c0_102 = arith.constant 0 : index
    %265 = vector.load %arg18[%c0_100, %c0_101, %c0_102] : memref<2x1x32xf32, #tpu.memory_space<vmem>>, vector<1x1x32xf32>
    %266 = vector.shape_cast %265 : vector<1x1x32xf32> to vector<1x32xf32>
    %267 = vector.broadcast %266 : vector<1x32xf32> to vector<16x32xf32>
    %268 = arith.addf %264, %267 : vector<16x32xf32>
    %269 = arith.addf %241, %268 : vector<16x32xf32>
    %c0_103 = arith.constant 0 : index
    %c0_104 = arith.constant 0 : index
    %c0_105 = arith.constant 0 : index
    %270 = vector.load %arg19[%c0_103, %c0_104, %c0_105] : memref<2x1x32xf32, #tpu.memory_space<vmem>>, vector<1x1x32xf32>
    %271 = vector.shape_cast %270 : vector<1x1x32xf32> to vector<1x32xf32>
    %c0_106 = arith.constant 0 : index
    %c0_107 = arith.constant 0 : index
    %c0_108 = arith.constant 0 : index
    %272 = vector.load %arg20[%c0_106, %c0_107, %c0_108] : memref<2x1x32xf32, #tpu.memory_space<vmem>>, vector<1x1x32xf32>
    %273 = vector.shape_cast %272 : vector<1x1x32xf32> to vector<1x32xf32>
    %cst_109 = arith.constant dense<0.000000e+00> : vector<16xf32>
    %274 = vector.multi_reduction <add>, %269, %cst_109 [1] : vector<16x32xf32> to vector<16xf32>
    %275 = vector.shape_cast %274 : vector<16xf32> to vector<16x1xf32>
    %cst_110 = arith.constant 3.200000e+01 : f32
    %276 = vector.broadcast %cst_110 : f32 to vector<16x1xf32>
    %277 = arith.divf %275, %276 : vector<16x1xf32>
    %278 = vector.broadcast %277 : vector<16x1xf32> to vector<16x32xf32>
    %279 = arith.subf %269, %278 : vector<16x32xf32>
    %280 = arith.mulf %279, %279 : vector<16x32xf32>
    %cst_111 = arith.constant dense<0.000000e+00> : vector<16xf32>
    %281 = vector.multi_reduction <add>, %280, %cst_111 [1] : vector<16x32xf32> to vector<16xf32>
    %282 = vector.shape_cast %281 : vector<16xf32> to vector<16x1xf32>
    %cst_112 = arith.constant 3.200000e+01 : f32
    %283 = vector.broadcast %cst_112 : f32 to vector<16x1xf32>
    %284 = arith.divf %282, %283 : vector<16x1xf32>
    %285 = vector.broadcast %277 : vector<16x1xf32> to vector<16x32xf32>
    %286 = arith.subf %269, %285 : vector<16x32xf32>
    %cst_113 = arith.constant 9.99999996E-13 : f32
    %287 = vector.broadcast %cst_113 : f32 to vector<16x1xf32>
    %288 = arith.addf %284, %287 : vector<16x1xf32>
    %289 = math.rsqrt %288 : vector<16x1xf32>
    %290 = vector.broadcast %289 : vector<16x1xf32> to vector<16x32xf32>
    %291 = arith.mulf %286, %290 : vector<16x32xf32>
    %292 = vector.broadcast %271 : vector<1x32xf32> to vector<16x32xf32>
    %293 = arith.mulf %291, %292 : vector<16x32xf32>
    %294 = vector.broadcast %273 : vector<1x32xf32> to vector<16x32xf32>
    %295 = arith.addf %293, %294 : vector<16x32xf32>
    %c1 = arith.constant 1 : index
    %c0_114 = arith.constant 0 : index
    %c0_115 = arith.constant 0 : index
    %296 = vector.load %arg5[%c1, %c0_114, %c0_115] : memref<2x32x32xf32, #tpu.memory_space<vmem>>, vector<1x32x32xf32>
    %297 = vector.shape_cast %296 : vector<1x32x32xf32> to vector<32x32xf32>
    %cst_116 = arith.constant dense<0.000000e+00> : vector<16x32xf32>
    %298 = tpu.matmul %295, %297, %cst_116 {dimension_numbers = #tpu.dot_dimension_numbers<[1], [0], [0], [1], [0, 0, 1, 1], [], []>} : vector<16x32xf32>, vector<32x32xf32>, vector<16x32xf32> -> vector<16x32xf32>
    %c1_117 = arith.constant 1 : index
    %c0_118 = arith.constant 0 : index
    %c0_119 = arith.constant 0 : index
    %299 = vector.load %arg6[%c1_117, %c0_118, %c0_119] : memref<2x1x32xf32, #tpu.memory_space<vmem>>, vector<1x1x32xf32>
    %300 = vector.shape_cast %299 : vector<1x1x32xf32> to vector<1x32xf32>
    %301 = vector.broadcast %300 : vector<1x32xf32> to vector<16x32xf32>
    %302 = arith.addf %298, %301 : vector<16x32xf32>
    %cst_120 = arith.constant 0.353553385 : f32
    %303 = vector.broadcast %cst_120 : f32 to vector<16x32xf32>
    %304 = arith.mulf %302, %303 : vector<16x32xf32>
    %c1_121 = arith.constant 1 : index
    %c0_122 = arith.constant 0 : index
    %c0_123 = arith.constant 0 : index
    %305 = vector.load %arg7[%c1_121, %c0_122, %c0_123] : memref<2x32x32xf32, #tpu.memory_space<vmem>>, vector<1x32x32xf32>
    %306 = vector.shape_cast %305 : vector<1x32x32xf32> to vector<32x32xf32>
    %cst_124 = arith.constant dense<0.000000e+00> : vector<16x32xf32>
    %307 = tpu.matmul %295, %306, %cst_124 {dimension_numbers = #tpu.dot_dimension_numbers<[1], [0], [0], [1], [0, 0, 1, 1], [], []>} : vector<16x32xf32>, vector<32x32xf32>, vector<16x32xf32> -> vector<16x32xf32>
    %c1_125 = arith.constant 1 : index
    %c0_126 = arith.constant 0 : index
    %c0_127 = arith.constant 0 : index
    %308 = vector.load %arg8[%c1_125, %c0_126, %c0_127] : memref<2x1x32xf32, #tpu.memory_space<vmem>>, vector<1x1x32xf32>
    %309 = vector.shape_cast %308 : vector<1x1x32xf32> to vector<1x32xf32>
    %310 = vector.broadcast %309 : vector<1x32xf32> to vector<16x32xf32>
    %311 = arith.addf %307, %310 : vector<16x32xf32>
    %c1_128 = arith.constant 1 : index
    %c0_129 = arith.constant 0 : index
    %c0_130 = arith.constant 0 : index
    %312 = vector.load %arg9[%c1_128, %c0_129, %c0_130] : memref<2x32x32xf32, #tpu.memory_space<vmem>>, vector<1x32x32xf32>
    %313 = vector.shape_cast %312 : vector<1x32x32xf32> to vector<32x32xf32>
    %cst_131 = arith.constant dense<0.000000e+00> : vector<16x32xf32>
    %314 = tpu.matmul %295, %313, %cst_131 {dimension_numbers = #tpu.dot_dimension_numbers<[1], [0], [0], [1], [0, 0, 1, 1], [], []>} : vector<16x32xf32>, vector<32x32xf32>, vector<16x32xf32> -> vector<16x32xf32>
    %c1_132 = arith.constant 1 : index
    %c0_133 = arith.constant 0 : index
    %c0_134 = arith.constant 0 : index
    %315 = vector.load %arg10[%c1_132, %c0_133, %c0_134] : memref<2x1x32xf32, #tpu.memory_space<vmem>>, vector<1x1x32xf32>
    %316 = vector.shape_cast %315 : vector<1x1x32xf32> to vector<1x32xf32>
    %317 = vector.broadcast %316 : vector<1x32xf32> to vector<16x32xf32>
    %318 = arith.addf %314, %317 : vector<16x32xf32>
    %319 = vector.extract_strided_slice %304 {offsets = [0, 0], sizes = [8, 32], strides = [1, 1]} : vector<16x32xf32> to vector<8x32xf32>
    %320 = vector.extract_strided_slice %311 {offsets = [0, 0], sizes = [8, 32], strides = [1, 1]} : vector<16x32xf32> to vector<8x32xf32>
    %321 = vector.extract_strided_slice %318 {offsets = [0, 0], sizes = [8, 32], strides = [1, 1]} : vector<16x32xf32> to vector<8x32xf32>
    %322 = vector.extract_strided_slice %4 {offsets = [0, 0], sizes = [1, 8], strides = [1, 1]} : vector<2x8xf32> to vector<1x8xf32>
    %323 = vector.extract_strided_slice %319 {offsets = [0, 0], sizes = [8, 8], strides = [1, 1]} : vector<8x32xf32> to vector<8x8xf32>
    %324 = vector.extract_strided_slice %320 {offsets = [0, 0], sizes = [8, 8], strides = [1, 1]} : vector<8x32xf32> to vector<8x8xf32>
    %325 = vector.extract_strided_slice %321 {offsets = [0, 0], sizes = [8, 8], strides = [1, 1]} : vector<8x32xf32> to vector<8x8xf32>
    %326 = tpu.transpose %324, [1, 0] : vector<8x8xf32> -> vector<8x8xf32>
    %cst_135 = arith.constant dense<0.000000e+00> : vector<8x8xf32>
    %327 = tpu.matmul %323, %326, %cst_135 {dimension_numbers = #tpu.dot_dimension_numbers<[1], [0], [0], [1], [0, 0, 1, 1], [], []>} : vector<8x8xf32>, vector<8x8xf32>, vector<8x8xf32> -> vector<8x8xf32>
    %328 = vector.broadcast %322 : vector<1x8xf32> to vector<8x8xf32>
    %329 = arith.addf %327, %328 : vector<8x8xf32>
    %cst_136 = arith.constant dense<0xFF800000> : vector<8xf32>
    %330 = vector.multi_reduction <maximumf>, %329, %cst_136 [1] : vector<8x8xf32> to vector<8xf32>
    %331 = vector.shape_cast %330 : vector<8xf32> to vector<8x1xf32>
    %332 = vector.broadcast %331 : vector<8x1xf32> to vector<8x8xf32>
    %333 = arith.subf %329, %332 : vector<8x8xf32>
    %334 = math.exp %333 : vector<8x8xf32>
    %cst_137 = arith.constant dense<0.000000e+00> : vector<8xf32>
    %335 = vector.multi_reduction <add>, %334, %cst_137 [1] : vector<8x8xf32> to vector<8xf32>
    %336 = vector.shape_cast %335 : vector<8xf32> to vector<8x1xf32>
    %337 = tpu.reciprocal %336 {approx = true} : vector<8x1xf32> -> vector<8x1xf32>
    %338 = vector.broadcast %337 : vector<8x1xf32> to vector<8x8xf32>
    %339 = arith.mulf %334, %338 : vector<8x8xf32>
    %cst_138 = arith.constant dense<0.000000e+00> : vector<8x8xf32>
    %340 = tpu.matmul %339, %325, %cst_138 {dimension_numbers = #tpu.dot_dimension_numbers<[1], [0], [0], [1], [0, 0, 1, 1], [], []>} : vector<8x8xf32>, vector<8x8xf32>, vector<8x8xf32> -> vector<8x8xf32>
    %341 = vector.extract_strided_slice %319 {offsets = [0, 8], sizes = [8, 8], strides = [1, 1]} : vector<8x32xf32> to vector<8x8xf32>
    %342 = vector.extract_strided_slice %320 {offsets = [0, 8], sizes = [8, 8], strides = [1, 1]} : vector<8x32xf32> to vector<8x8xf32>
    %343 = vector.extract_strided_slice %321 {offsets = [0, 8], sizes = [8, 8], strides = [1, 1]} : vector<8x32xf32> to vector<8x8xf32>
    %344 = tpu.transpose %342, [1, 0] : vector<8x8xf32> -> vector<8x8xf32>
    %cst_139 = arith.constant dense<0.000000e+00> : vector<8x8xf32>
    %345 = tpu.matmul %341, %344, %cst_139 {dimension_numbers = #tpu.dot_dimension_numbers<[1], [0], [0], [1], [0, 0, 1, 1], [], []>} : vector<8x8xf32>, vector<8x8xf32>, vector<8x8xf32> -> vector<8x8xf32>
    %346 = vector.broadcast %322 : vector<1x8xf32> to vector<8x8xf32>
    %347 = arith.addf %345, %346 : vector<8x8xf32>
    %cst_140 = arith.constant dense<0xFF800000> : vector<8xf32>
    %348 = vector.multi_reduction <maximumf>, %347, %cst_140 [1] : vector<8x8xf32> to vector<8xf32>
    %349 = vector.shape_cast %348 : vector<8xf32> to vector<8x1xf32>
    %350 = vector.broadcast %349 : vector<8x1xf32> to vector<8x8xf32>
    %351 = arith.subf %347, %350 : vector<8x8xf32>
    %352 = math.exp %351 : vector<8x8xf32>
    %cst_141 = arith.constant dense<0.000000e+00> : vector<8xf32>
    %353 = vector.multi_reduction <add>, %352, %cst_141 [1] : vector<8x8xf32> to vector<8xf32>
    %354 = vector.shape_cast %353 : vector<8xf32> to vector<8x1xf32>
    %355 = tpu.reciprocal %354 {approx = true} : vector<8x1xf32> -> vector<8x1xf32>
    %356 = vector.broadcast %355 : vector<8x1xf32> to vector<8x8xf32>
    %357 = arith.mulf %352, %356 : vector<8x8xf32>
    %cst_142 = arith.constant dense<0.000000e+00> : vector<8x8xf32>
    %358 = tpu.matmul %357, %343, %cst_142 {dimension_numbers = #tpu.dot_dimension_numbers<[1], [0], [0], [1], [0, 0, 1, 1], [], []>} : vector<8x8xf32>, vector<8x8xf32>, vector<8x8xf32> -> vector<8x8xf32>
    %359 = vector.extract_strided_slice %319 {offsets = [0, 16], sizes = [8, 8], strides = [1, 1]} : vector<8x32xf32> to vector<8x8xf32>
    %360 = vector.extract_strided_slice %320 {offsets = [0, 16], sizes = [8, 8], strides = [1, 1]} : vector<8x32xf32> to vector<8x8xf32>
    %361 = vector.extract_strided_slice %321 {offsets = [0, 16], sizes = [8, 8], strides = [1, 1]} : vector<8x32xf32> to vector<8x8xf32>
    %362 = tpu.transpose %360, [1, 0] : vector<8x8xf32> -> vector<8x8xf32>
    %cst_143 = arith.constant dense<0.000000e+00> : vector<8x8xf32>
    %363 = tpu.matmul %359, %362, %cst_143 {dimension_numbers = #tpu.dot_dimension_numbers<[1], [0], [0], [1], [0, 0, 1, 1], [], []>} : vector<8x8xf32>, vector<8x8xf32>, vector<8x8xf32> -> vector<8x8xf32>
    %364 = vector.broadcast %322 : vector<1x8xf32> to vector<8x8xf32>
    %365 = arith.addf %363, %364 : vector<8x8xf32>
    %cst_144 = arith.constant dense<0xFF800000> : vector<8xf32>
    %366 = vector.multi_reduction <maximumf>, %365, %cst_144 [1] : vector<8x8xf32> to vector<8xf32>
    %367 = vector.shape_cast %366 : vector<8xf32> to vector<8x1xf32>
    %368 = vector.broadcast %367 : vector<8x1xf32> to vector<8x8xf32>
    %369 = arith.subf %365, %368 : vector<8x8xf32>
    %370 = math.exp %369 : vector<8x8xf32>
    %cst_145 = arith.constant dense<0.000000e+00> : vector<8xf32>
    %371 = vector.multi_reduction <add>, %370, %cst_145 [1] : vector<8x8xf32> to vector<8xf32>
    %372 = vector.shape_cast %371 : vector<8xf32> to vector<8x1xf32>
    %373 = tpu.reciprocal %372 {approx = true} : vector<8x1xf32> -> vector<8x1xf32>
    %374 = vector.broadcast %373 : vector<8x1xf32> to vector<8x8xf32>
    %375 = arith.mulf %370, %374 : vector<8x8xf32>
    %cst_146 = arith.constant dense<0.000000e+00> : vector<8x8xf32>
    %376 = tpu.matmul %375, %361, %cst_146 {dimension_numbers = #tpu.dot_dimension_numbers<[1], [0], [0], [1], [0, 0, 1, 1], [], []>} : vector<8x8xf32>, vector<8x8xf32>, vector<8x8xf32> -> vector<8x8xf32>
    %377 = vector.extract_strided_slice %319 {offsets = [0, 24], sizes = [8, 8], strides = [1, 1]} : vector<8x32xf32> to vector<8x8xf32>
    %378 = vector.extract_strided_slice %320 {offsets = [0, 24], sizes = [8, 8], strides = [1, 1]} : vector<8x32xf32> to vector<8x8xf32>
    %379 = vector.extract_strided_slice %321 {offsets = [0, 24], sizes = [8, 8], strides = [1, 1]} : vector<8x32xf32> to vector<8x8xf32>
    %380 = tpu.transpose %378, [1, 0] : vector<8x8xf32> -> vector<8x8xf32>
    %cst_147 = arith.constant dense<0.000000e+00> : vector<8x8xf32>
    %381 = tpu.matmul %377, %380, %cst_147 {dimension_numbers = #tpu.dot_dimension_numbers<[1], [0], [0], [1], [0, 0, 1, 1], [], []>} : vector<8x8xf32>, vector<8x8xf32>, vector<8x8xf32> -> vector<8x8xf32>
    %382 = vector.broadcast %322 : vector<1x8xf32> to vector<8x8xf32>
    %383 = arith.addf %381, %382 : vector<8x8xf32>
    %cst_148 = arith.constant dense<0xFF800000> : vector<8xf32>
    %384 = vector.multi_reduction <maximumf>, %383, %cst_148 [1] : vector<8x8xf32> to vector<8xf32>
    %385 = vector.shape_cast %384 : vector<8xf32> to vector<8x1xf32>
    %386 = vector.broadcast %385 : vector<8x1xf32> to vector<8x8xf32>
    %387 = arith.subf %383, %386 : vector<8x8xf32>
    %388 = math.exp %387 : vector<8x8xf32>
    %cst_149 = arith.constant dense<0.000000e+00> : vector<8xf32>
    %389 = vector.multi_reduction <add>, %388, %cst_149 [1] : vector<8x8xf32> to vector<8xf32>
    %390 = vector.shape_cast %389 : vector<8xf32> to vector<8x1xf32>
    %391 = tpu.reciprocal %390 {approx = true} : vector<8x1xf32> -> vector<8x1xf32>
    %392 = vector.broadcast %391 : vector<8x1xf32> to vector<8x8xf32>
    %393 = arith.mulf %388, %392 : vector<8x8xf32>
    %cst_150 = arith.constant dense<0.000000e+00> : vector<8x8xf32>
    %394 = tpu.matmul %393, %379, %cst_150 {dimension_numbers = #tpu.dot_dimension_numbers<[1], [0], [0], [1], [0, 0, 1, 1], [], []>} : vector<8x8xf32>, vector<8x8xf32>, vector<8x8xf32> -> vector<8x8xf32>
    %395 = tpu.concatenate %340, %358, %376, %394 in 1 : vector<8x8xf32>, vector<8x8xf32>, vector<8x8xf32>, vector<8x8xf32> -> vector<8x32xf32>
    %396 = vector.extract_strided_slice %304 {offsets = [8, 0], sizes = [8, 32], strides = [1, 1]} : vector<16x32xf32> to vector<8x32xf32>
    %397 = vector.extract_strided_slice %311 {offsets = [8, 0], sizes = [8, 32], strides = [1, 1]} : vector<16x32xf32> to vector<8x32xf32>
    %398 = vector.extract_strided_slice %318 {offsets = [8, 0], sizes = [8, 32], strides = [1, 1]} : vector<16x32xf32> to vector<8x32xf32>
    %399 = vector.extract_strided_slice %4 {offsets = [1, 0], sizes = [1, 8], strides = [1, 1]} : vector<2x8xf32> to vector<1x8xf32>
    %400 = vector.extract_strided_slice %396 {offsets = [0, 0], sizes = [8, 8], strides = [1, 1]} : vector<8x32xf32> to vector<8x8xf32>
    %401 = vector.extract_strided_slice %397 {offsets = [0, 0], sizes = [8, 8], strides = [1, 1]} : vector<8x32xf32> to vector<8x8xf32>
    %402 = vector.extract_strided_slice %398 {offsets = [0, 0], sizes = [8, 8], strides = [1, 1]} : vector<8x32xf32> to vector<8x8xf32>
    %403 = tpu.transpose %401, [1, 0] : vector<8x8xf32> -> vector<8x8xf32>
    %cst_151 = arith.constant dense<0.000000e+00> : vector<8x8xf32>
    %404 = tpu.matmul %400, %403, %cst_151 {dimension_numbers = #tpu.dot_dimension_numbers<[1], [0], [0], [1], [0, 0, 1, 1], [], []>} : vector<8x8xf32>, vector<8x8xf32>, vector<8x8xf32> -> vector<8x8xf32>
    %405 = vector.broadcast %399 : vector<1x8xf32> to vector<8x8xf32>
    %406 = arith.addf %404, %405 : vector<8x8xf32>
    %cst_152 = arith.constant dense<0xFF800000> : vector<8xf32>
    %407 = vector.multi_reduction <maximumf>, %406, %cst_152 [1] : vector<8x8xf32> to vector<8xf32>
    %408 = vector.shape_cast %407 : vector<8xf32> to vector<8x1xf32>
    %409 = vector.broadcast %408 : vector<8x1xf32> to vector<8x8xf32>
    %410 = arith.subf %406, %409 : vector<8x8xf32>
    %411 = math.exp %410 : vector<8x8xf32>
    %cst_153 = arith.constant dense<0.000000e+00> : vector<8xf32>
    %412 = vector.multi_reduction <add>, %411, %cst_153 [1] : vector<8x8xf32> to vector<8xf32>
    %413 = vector.shape_cast %412 : vector<8xf32> to vector<8x1xf32>
    %414 = tpu.reciprocal %413 {approx = true} : vector<8x1xf32> -> vector<8x1xf32>
    %415 = vector.broadcast %414 : vector<8x1xf32> to vector<8x8xf32>
    %416 = arith.mulf %411, %415 : vector<8x8xf32>
    %cst_154 = arith.constant dense<0.000000e+00> : vector<8x8xf32>
    %417 = tpu.matmul %416, %402, %cst_154 {dimension_numbers = #tpu.dot_dimension_numbers<[1], [0], [0], [1], [0, 0, 1, 1], [], []>} : vector<8x8xf32>, vector<8x8xf32>, vector<8x8xf32> -> vector<8x8xf32>
    %418 = vector.extract_strided_slice %396 {offsets = [0, 8], sizes = [8, 8], strides = [1, 1]} : vector<8x32xf32> to vector<8x8xf32>
    %419 = vector.extract_strided_slice %397 {offsets = [0, 8], sizes = [8, 8], strides = [1, 1]} : vector<8x32xf32> to vector<8x8xf32>
    %420 = vector.extract_strided_slice %398 {offsets = [0, 8], sizes = [8, 8], strides = [1, 1]} : vector<8x32xf32> to vector<8x8xf32>
    %421 = tpu.transpose %419, [1, 0] : vector<8x8xf32> -> vector<8x8xf32>
    %cst_155 = arith.constant dense<0.000000e+00> : vector<8x8xf32>
    %422 = tpu.matmul %418, %421, %cst_155 {dimension_numbers = #tpu.dot_dimension_numbers<[1], [0], [0], [1], [0, 0, 1, 1], [], []>} : vector<8x8xf32>, vector<8x8xf32>, vector<8x8xf32> -> vector<8x8xf32>
    %423 = vector.broadcast %399 : vector<1x8xf32> to vector<8x8xf32>
    %424 = arith.addf %422, %423 : vector<8x8xf32>
    %cst_156 = arith.constant dense<0xFF800000> : vector<8xf32>
    %425 = vector.multi_reduction <maximumf>, %424, %cst_156 [1] : vector<8x8xf32> to vector<8xf32>
    %426 = vector.shape_cast %425 : vector<8xf32> to vector<8x1xf32>
    %427 = vector.broadcast %426 : vector<8x1xf32> to vector<8x8xf32>
    %428 = arith.subf %424, %427 : vector<8x8xf32>
    %429 = math.exp %428 : vector<8x8xf32>
    %cst_157 = arith.constant dense<0.000000e+00> : vector<8xf32>
    %430 = vector.multi_reduction <add>, %429, %cst_157 [1] : vector<8x8xf32> to vector<8xf32>
    %431 = vector.shape_cast %430 : vector<8xf32> to vector<8x1xf32>
    %432 = tpu.reciprocal %431 {approx = true} : vector<8x1xf32> -> vector<8x1xf32>
    %433 = vector.broadcast %432 : vector<8x1xf32> to vector<8x8xf32>
    %434 = arith.mulf %429, %433 : vector<8x8xf32>
    %cst_158 = arith.constant dense<0.000000e+00> : vector<8x8xf32>
    %435 = tpu.matmul %434, %420, %cst_158 {dimension_numbers = #tpu.dot_dimension_numbers<[1], [0], [0], [1], [0, 0, 1, 1], [], []>} : vector<8x8xf32>, vector<8x8xf32>, vector<8x8xf32> -> vector<8x8xf32>
    %436 = vector.extract_strided_slice %396 {offsets = [0, 16], sizes = [8, 8], strides = [1, 1]} : vector<8x32xf32> to vector<8x8xf32>
    %437 = vector.extract_strided_slice %397 {offsets = [0, 16], sizes = [8, 8], strides = [1, 1]} : vector<8x32xf32> to vector<8x8xf32>
    %438 = vector.extract_strided_slice %398 {offsets = [0, 16], sizes = [8, 8], strides = [1, 1]} : vector<8x32xf32> to vector<8x8xf32>
    %439 = tpu.transpose %437, [1, 0] : vector<8x8xf32> -> vector<8x8xf32>
    %cst_159 = arith.constant dense<0.000000e+00> : vector<8x8xf32>
    %440 = tpu.matmul %436, %439, %cst_159 {dimension_numbers = #tpu.dot_dimension_numbers<[1], [0], [0], [1], [0, 0, 1, 1], [], []>} : vector<8x8xf32>, vector<8x8xf32>, vector<8x8xf32> -> vector<8x8xf32>
    %441 = vector.broadcast %399 : vector<1x8xf32> to vector<8x8xf32>
    %442 = arith.addf %440, %441 : vector<8x8xf32>
    %cst_160 = arith.constant dense<0xFF800000> : vector<8xf32>
    %443 = vector.multi_reduction <maximumf>, %442, %cst_160 [1] : vector<8x8xf32> to vector<8xf32>
    %444 = vector.shape_cast %443 : vector<8xf32> to vector<8x1xf32>
    %445 = vector.broadcast %444 : vector<8x1xf32> to vector<8x8xf32>
    %446 = arith.subf %442, %445 : vector<8x8xf32>
    %447 = math.exp %446 : vector<8x8xf32>
    %cst_161 = arith.constant dense<0.000000e+00> : vector<8xf32>
    %448 = vector.multi_reduction <add>, %447, %cst_161 [1] : vector<8x8xf32> to vector<8xf32>
    %449 = vector.shape_cast %448 : vector<8xf32> to vector<8x1xf32>
    %450 = tpu.reciprocal %449 {approx = true} : vector<8x1xf32> -> vector<8x1xf32>
    %451 = vector.broadcast %450 : vector<8x1xf32> to vector<8x8xf32>
    %452 = arith.mulf %447, %451 : vector<8x8xf32>
    %cst_162 = arith.constant dense<0.000000e+00> : vector<8x8xf32>
    %453 = tpu.matmul %452, %438, %cst_162 {dimension_numbers = #tpu.dot_dimension_numbers<[1], [0], [0], [1], [0, 0, 1, 1], [], []>} : vector<8x8xf32>, vector<8x8xf32>, vector<8x8xf32> -> vector<8x8xf32>
    %454 = vector.extract_strided_slice %396 {offsets = [0, 24], sizes = [8, 8], strides = [1, 1]} : vector<8x32xf32> to vector<8x8xf32>
    %455 = vector.extract_strided_slice %397 {offsets = [0, 24], sizes = [8, 8], strides = [1, 1]} : vector<8x32xf32> to vector<8x8xf32>
    %456 = vector.extract_strided_slice %398 {offsets = [0, 24], sizes = [8, 8], strides = [1, 1]} : vector<8x32xf32> to vector<8x8xf32>
    %457 = tpu.transpose %455, [1, 0] : vector<8x8xf32> -> vector<8x8xf32>
    %cst_163 = arith.constant dense<0.000000e+00> : vector<8x8xf32>
    %458 = tpu.matmul %454, %457, %cst_163 {dimension_numbers = #tpu.dot_dimension_numbers<[1], [0], [0], [1], [0, 0, 1, 1], [], []>} : vector<8x8xf32>, vector<8x8xf32>, vector<8x8xf32> -> vector<8x8xf32>
    %459 = vector.broadcast %399 : vector<1x8xf32> to vector<8x8xf32>
    %460 = arith.addf %458, %459 : vector<8x8xf32>
    %cst_164 = arith.constant dense<0xFF800000> : vector<8xf32>
    %461 = vector.multi_reduction <maximumf>, %460, %cst_164 [1] : vector<8x8xf32> to vector<8xf32>
    %462 = vector.shape_cast %461 : vector<8xf32> to vector<8x1xf32>
    %463 = vector.broadcast %462 : vector<8x1xf32> to vector<8x8xf32>
    %464 = arith.subf %460, %463 : vector<8x8xf32>
    %465 = math.exp %464 : vector<8x8xf32>
    %cst_165 = arith.constant dense<0.000000e+00> : vector<8xf32>
    %466 = vector.multi_reduction <add>, %465, %cst_165 [1] : vector<8x8xf32> to vector<8xf32>
    %467 = vector.shape_cast %466 : vector<8xf32> to vector<8x1xf32>
    %468 = tpu.reciprocal %467 {approx = true} : vector<8x1xf32> -> vector<8x1xf32>
    %469 = vector.broadcast %468 : vector<8x1xf32> to vector<8x8xf32>
    %470 = arith.mulf %465, %469 : vector<8x8xf32>
    %cst_166 = arith.constant dense<0.000000e+00> : vector<8x8xf32>
    %471 = tpu.matmul %470, %456, %cst_166 {dimension_numbers = #tpu.dot_dimension_numbers<[1], [0], [0], [1], [0, 0, 1, 1], [], []>} : vector<8x8xf32>, vector<8x8xf32>, vector<8x8xf32> -> vector<8x8xf32>
    %472 = tpu.concatenate %417, %435, %453, %471 in 1 : vector<8x8xf32>, vector<8x8xf32>, vector<8x8xf32>, vector<8x8xf32> -> vector<8x32xf32>
    %473 = tpu.concatenate %395, %472 in 0 : vector<8x32xf32>, vector<8x32xf32> -> vector<16x32xf32>
    %c1_167 = arith.constant 1 : index
    %c0_168 = arith.constant 0 : index
    %c0_169 = arith.constant 0 : index
    %474 = vector.load %arg11[%c1_167, %c0_168, %c0_169] : memref<2x32x32xf32, #tpu.memory_space<vmem>>, vector<1x32x32xf32>
    %475 = vector.shape_cast %474 : vector<1x32x32xf32> to vector<32x32xf32>
    %cst_170 = arith.constant dense<0.000000e+00> : vector<16x32xf32>
    %476 = tpu.matmul %473, %475, %cst_170 {dimension_numbers = #tpu.dot_dimension_numbers<[1], [0], [0], [1], [0, 0, 1, 1], [], []>} : vector<16x32xf32>, vector<32x32xf32>, vector<16x32xf32> -> vector<16x32xf32>
    %c1_171 = arith.constant 1 : index
    %c0_172 = arith.constant 0 : index
    %c0_173 = arith.constant 0 : index
    %477 = vector.load %arg12[%c1_171, %c0_172, %c0_173] : memref<2x1x32xf32, #tpu.memory_space<vmem>>, vector<1x1x32xf32>
    %478 = vector.shape_cast %477 : vector<1x1x32xf32> to vector<1x32xf32>
    %479 = vector.broadcast %478 : vector<1x32xf32> to vector<16x32xf32>
    %480 = arith.addf %476, %479 : vector<16x32xf32>
    %481 = arith.addf %295, %480 : vector<16x32xf32>
    %c1_174 = arith.constant 1 : index
    %c0_175 = arith.constant 0 : index
    %c0_176 = arith.constant 0 : index
    %482 = vector.load %arg13[%c1_174, %c0_175, %c0_176] : memref<2x1x32xf32, #tpu.memory_space<vmem>>, vector<1x1x32xf32>
    %483 = vector.shape_cast %482 : vector<1x1x32xf32> to vector<1x32xf32>
    %c1_177 = arith.constant 1 : index
    %c0_178 = arith.constant 0 : index
    %c0_179 = arith.constant 0 : index
    %484 = vector.load %arg14[%c1_177, %c0_178, %c0_179] : memref<2x1x32xf32, #tpu.memory_space<vmem>>, vector<1x1x32xf32>
    %485 = vector.shape_cast %484 : vector<1x1x32xf32> to vector<1x32xf32>
    %cst_180 = arith.constant dense<0.000000e+00> : vector<16xf32>
    %486 = vector.multi_reduction <add>, %481, %cst_180 [1] : vector<16x32xf32> to vector<16xf32>
    %487 = vector.shape_cast %486 : vector<16xf32> to vector<16x1xf32>
    %cst_181 = arith.constant 3.200000e+01 : f32
    %488 = vector.broadcast %cst_181 : f32 to vector<16x1xf32>
    %489 = arith.divf %487, %488 : vector<16x1xf32>
    %490 = vector.broadcast %489 : vector<16x1xf32> to vector<16x32xf32>
    %491 = arith.subf %481, %490 : vector<16x32xf32>
    %492 = arith.mulf %491, %491 : vector<16x32xf32>
    %cst_182 = arith.constant dense<0.000000e+00> : vector<16xf32>
    %493 = vector.multi_reduction <add>, %492, %cst_182 [1] : vector<16x32xf32> to vector<16xf32>
    %494 = vector.shape_cast %493 : vector<16xf32> to vector<16x1xf32>
    %cst_183 = arith.constant 3.200000e+01 : f32
    %495 = vector.broadcast %cst_183 : f32 to vector<16x1xf32>
    %496 = arith.divf %494, %495 : vector<16x1xf32>
    %497 = vector.broadcast %489 : vector<16x1xf32> to vector<16x32xf32>
    %498 = arith.subf %481, %497 : vector<16x32xf32>
    %cst_184 = arith.constant 9.99999996E-13 : f32
    %499 = vector.broadcast %cst_184 : f32 to vector<16x1xf32>
    %500 = arith.addf %496, %499 : vector<16x1xf32>
    %501 = math.rsqrt %500 : vector<16x1xf32>
    %502 = vector.broadcast %501 : vector<16x1xf32> to vector<16x32xf32>
    %503 = arith.mulf %498, %502 : vector<16x32xf32>
    %504 = vector.broadcast %483 : vector<1x32xf32> to vector<16x32xf32>
    %505 = arith.mulf %503, %504 : vector<16x32xf32>
    %506 = vector.broadcast %485 : vector<1x32xf32> to vector<16x32xf32>
    %507 = arith.addf %505, %506 : vector<16x32xf32>
    %c1_185 = arith.constant 1 : index
    %c0_186 = arith.constant 0 : index
    %c0_187 = arith.constant 0 : index
    %508 = vector.load %arg15[%c1_185, %c0_186, %c0_187] : memref<2x32x64xf32, #tpu.memory_space<vmem>>, vector<1x32x64xf32>
    %509 = vector.shape_cast %508 : vector<1x32x64xf32> to vector<32x64xf32>
    %cst_188 = arith.constant dense<0.000000e+00> : vector<16x64xf32>
    %510 = tpu.matmul %507, %509, %cst_188 {dimension_numbers = #tpu.dot_dimension_numbers<[1], [0], [0], [1], [0, 0, 1, 1], [], []>} : vector<16x32xf32>, vector<32x64xf32>, vector<16x64xf32> -> vector<16x64xf32>
    %c1_189 = arith.constant 1 : index
    %c0_190 = arith.constant 0 : index
    %c0_191 = arith.constant 0 : index
    %511 = vector.load %arg16[%c1_189, %c0_190, %c0_191] : memref<2x1x64xf32, #tpu.memory_space<vmem>>, vector<1x1x64xf32>
    %512 = vector.shape_cast %511 : vector<1x1x64xf32> to vector<1x64xf32>
    %513 = vector.broadcast %512 : vector<1x64xf32> to vector<16x64xf32>
    %514 = arith.addf %510, %513 : vector<16x64xf32>
    %515 = arith.mulf %514, %514 : vector<16x64xf32>
    %516 = arith.mulf %514, %515 : vector<16x64xf32>
    %cst_192 = arith.constant 4.471500e-02 : f32
    %517 = vector.broadcast %cst_192 : f32 to vector<16x64xf32>
    %518 = arith.mulf %517, %516 : vector<16x64xf32>
    %519 = arith.addf %514, %518 : vector<16x64xf32>
    %cst_193 = arith.constant 0.797884583 : f32
    %520 = vector.broadcast %cst_193 : f32 to vector<16x64xf32>
    %521 = arith.mulf %520, %519 : vector<16x64xf32>
    %522 = math.tanh %521 : vector<16x64xf32>
    %cst_194 = arith.constant 1.000000e+00 : f32
    %523 = vector.broadcast %cst_194 : f32 to vector<16x64xf32>
    %524 = arith.addf %523, %522 : vector<16x64xf32>
    %cst_195 = arith.constant 5.000000e-01 : f32
    %525 = vector.broadcast %cst_195 : f32 to vector<16x64xf32>
    %526 = arith.mulf %525, %524 : vector<16x64xf32>
    %527 = arith.mulf %514, %526 : vector<16x64xf32>
    %c1_196 = arith.constant 1 : index
    %c0_197 = arith.constant 0 : index
    %c0_198 = arith.constant 0 : index
    %528 = vector.load %arg17[%c1_196, %c0_197, %c0_198] : memref<2x64x32xf32, #tpu.memory_space<vmem>>, vector<1x64x32xf32>
    %529 = vector.shape_cast %528 : vector<1x64x32xf32> to vector<64x32xf32>
    %cst_199 = arith.constant dense<0.000000e+00> : vector<16x32xf32>
    %530 = tpu.matmul %527, %529, %cst_199 {dimension_numbers = #tpu.dot_dimension_numbers<[1], [0], [0], [1], [0, 0, 1, 1], [], []>} : vector<16x64xf32>, vector<64x32xf32>, vector<16x32xf32> -> vector<16x32xf32>
    %c1_200 = arith.constant 1 : index
    %c0_201 = arith.constant 0 : index
    %c0_202 = arith.constant 0 : index
    %531 = vector.load %arg18[%c1_200, %c0_201, %c0_202] : memref<2x1x32xf32, #tpu.memory_space<vmem>>, vector<1x1x32xf32>
    %532 = vector.shape_cast %531 : vector<1x1x32xf32> to vector<1x32xf32>
    %533 = vector.broadcast %532 : vector<1x32xf32> to vector<16x32xf32>
    %534 = arith.addf %530, %533 : vector<16x32xf32>
    %535 = arith.addf %507, %534 : vector<16x32xf32>
    %c1_203 = arith.constant 1 : index
    %c0_204 = arith.constant 0 : index
    %c0_205 = arith.constant 0 : index
    %536 = vector.load %arg19[%c1_203, %c0_204, %c0_205] : memref<2x1x32xf32, #tpu.memory_space<vmem>>, vector<1x1x32xf32>
    %537 = vector.shape_cast %536 : vector<1x1x32xf32> to vector<1x32xf32>
    %c1_206 = arith.constant 1 : index
    %c0_207 = arith.constant 0 : index
    %c0_208 = arith.constant 0 : index
    %538 = vector.load %arg20[%c1_206, %c0_207, %c0_208] : memref<2x1x32xf32, #tpu.memory_space<vmem>>, vector<1x1x32xf32>
    %539 = vector.shape_cast %538 : vector<1x1x32xf32> to vector<1x32xf32>
    %cst_209 = arith.constant dense<0.000000e+00> : vector<16xf32>
    %540 = vector.multi_reduction <add>, %535, %cst_209 [1] : vector<16x32xf32> to vector<16xf32>
    %541 = vector.shape_cast %540 : vector<16xf32> to vector<16x1xf32>
    %cst_210 = arith.constant 3.200000e+01 : f32
    %542 = vector.broadcast %cst_210 : f32 to vector<16x1xf32>
    %543 = arith.divf %541, %542 : vector<16x1xf32>
    %544 = vector.broadcast %543 : vector<16x1xf32> to vector<16x32xf32>
    %545 = arith.subf %535, %544 : vector<16x32xf32>
    %546 = arith.mulf %545, %545 : vector<16x32xf32>
    %cst_211 = arith.constant dense<0.000000e+00> : vector<16xf32>
    %547 = vector.multi_reduction <add>, %546, %cst_211 [1] : vector<16x32xf32> to vector<16xf32>
    %548 = vector.shape_cast %547 : vector<16xf32> to vector<16x1xf32>
    %cst_212 = arith.constant 3.200000e+01 : f32
    %549 = vector.broadcast %cst_212 : f32 to vector<16x1xf32>
    %550 = arith.divf %548, %549 : vector<16x1xf32>
    %551 = vector.broadcast %543 : vector<16x1xf32> to vector<16x32xf32>
    %552 = arith.subf %535, %551 : vector<16x32xf32>
    %cst_213 = arith.constant 9.99999996E-13 : f32
    %553 = vector.broadcast %cst_213 : f32 to vector<16x1xf32>
    %554 = arith.addf %550, %553 : vector<16x1xf32>
    %555 = math.rsqrt %554 : vector<16x1xf32>
    %556 = vector.broadcast %555 : vector<16x1xf32> to vector<16x32xf32>
    %557 = arith.mulf %552, %556 : vector<16x32xf32>
    %558 = vector.broadcast %537 : vector<1x32xf32> to vector<16x32xf32>
    %559 = arith.mulf %557, %558 : vector<16x32xf32>
    %560 = vector.broadcast %539 : vector<1x32xf32> to vector<16x32xf32>
    %561 = arith.addf %559, %560 : vector<16x32xf32>
    %c0_214 = arith.constant 0 : index
    %c0_215 = arith.constant 0 : index
    %562 = vector.load %arg21[%c0_214, %c0_215] : memref<16x32xf32, #tpu.memory_space<vmem>>, vector<16x32xf32>
    tpu.vector_store %arg21[%c0_214, %c0_215], %561 {strides = array<i32>} : memref<16x32xf32, #tpu.memory_space<vmem>>, vector<16x32xf32>,
    return
  }
  func.func @transform_0(%arg0: i32) -> (i32, i32) {
    %c0_i32 = arith.constant 0 : i32
    %c0_i32_0 = arith.constant 0 : i32
    %c0_i32_1 = arith.constant 0 : i32
    return %c0_i32, %c0_i32_0 : i32, i32
  }
  func.func @transform_1(%arg0: i32) -> (i32, i32) {
    %c0_i32 = arith.constant 0 : i32
    %c0_i32_0 = arith.constant 0 : i32
    %c0_i32_1 = arith.constant 0 : i32
    return %c0_i32, %c0_i32_0 : i32, i32
  }
  func.func @transform_2(%arg0: i32) -> (i32, i32) {
    %c0_i32 = arith.constant 0 : i32
    %c0_i32_0 = arith.constant 0 : i32
    %c0_i32_1 = arith.constant 0 : i32
    return %c0_i32, %c0_i32_0 : i32, i32
  }
  func.func @transform_3(%arg0: i32) -> (i32, i32) {
    %c0_i32 = arith.constant 0 : i32
    %c0_i32_0 = arith.constant 0 : i32
    %c0_i32_1 = arith.constant 0 : i32
    return %c0_i32, %c0_i32_0 : i32, i32
  }
  func.func @transform_4(%arg0: i32) -> (i32, i32, i32) {
    %c0_i32 = arith.constant 0 : i32
    %c0_i32_0 = arith.constant 0 : i32
    %c0_i32_1 = arith.constant 0 : i32
    %c0_i32_2 = arith.constant 0 : i32
    return %c0_i32, %c0_i32_0, %c0_i32_1 : i32, i32, i32
  }
  func.func @transform_5(%arg0: i32) -> (i32, i32, i32) {
    %c0_i32 = arith.constant 0 : i32
    %c0_i32_0 = arith.constant 0 : i32
    %c0_i32_1 = arith.constant 0 : i32
    %c0_i32_2 = arith.constant 0 : i32
    return %c0_i32, %c0_i32_0, %c0_i32_1 : i32, i32, i32
  }
  func.func @transform_6(%arg0: i32) -> (i32, i32, i32) {
    %c0_i32 = arith.constant 0 : i32
    %c0_i32_0 = arith.constant 0 : i32
    %c0_i32_1 = arith.constant 0 : i32
    %c0_i32_2 = arith.constant 0 : i32
    return %c0_i32, %c0_i32_0, %c0_i32_1 : i32, i32, i32
  }
  func.func @transform_7(%arg0: i32) -> (i32, i32, i32) {
    %c0_i32 = arith.constant 0 : i32
    %c0_i32_0 = arith.constant 0 : i32
    %c0_i32_1 = arith.constant 0 : i32
    %c0_i32_2 = arith.constant 0 : i32
    return %c0_i32, %c0_i32_0, %c0_i32_1 : i32, i32, i32
  }
  func.func @transform_8(%arg0: i32) -> (i32, i32, i32) {
    %c0_i32 = arith.constant 0 : i32
    %c0_i32_0 = arith.constant 0 : i32
    %c0_i32_1 = arith.constant 0 : i32
    %c0_i32_2 = arith.constant 0 : i32
    return %c0_i32, %c0_i32_0, %c0_i32_1 : i32, i32, i32
  }
  func.func @transform_9(%arg0: i32) -> (i32, i32, i32) {
    %c0_i32 = arith.constant 0 : i32
    %c0_i32_0 = arith.constant 0 : i32
    %c0_i32_1 = arith.constant 0 : i32
    %c0_i32_2 = arith.constant 0 : i32
    return %c0_i32, %c0_i32_0, %c0_i32_1 : i32, i32, i32
  }
  func.func @transform_10(%arg0: i32) -> (i32, i32, i32) {
    %c0_i32 = arith.constant 0 : i32
    %c0_i32_0 = arith.constant 0 : i32
    %c0_i32_1 = arith.constant 0 : i32
    %c0_i32_2 = arith.constant 0 : i32
    return %c0_i32, %c0_i32_0, %c0_i32_1 : i32, i32, i32
  }
  func.func @transform_11(%arg0: i32) -> (i32, i32, i32) {
    %c0_i32 = arith.constant 0 : i32
    %c0_i32_0 = arith.constant 0 : i32
    %c0_i32_1 = arith.constant 0 : i32
    %c0_i32_2 = arith.constant 0 : i32
    return %c0_i32, %c0_i32_0, %c0_i32_1 : i32, i32, i32
  }
  func.func @transform_12(%arg0: i32) -> (i32, i32, i32) {
    %c0_i32 = arith.constant 0 : i32
    %c0_i32_0 = arith.constant 0 : i32
    %c0_i32_1 = arith.constant 0 : i32
    %c0_i32_2 = arith.constant 0 : i32
    return %c0_i32, %c0_i32_0, %c0_i32_1 : i32, i32, i32
  }
  func.func @transform_13(%arg0: i32) -> (i32, i32, i32) {
    %c0_i32 = arith.constant 0 : i32
    %c0_i32_0 = arith.constant 0 : i32
    %c0_i32_1 = arith.constant 0 : i32
    %c0_i32_2 = arith.constant 0 : i32
    return %c0_i32, %c0_i32_0, %c0_i32_1 : i32, i32, i32
  }
  func.func @transform_14(%arg0: i32) -> (i32, i32, i32) {
    %c0_i32 = arith.constant 0 : i32
    %c0_i32_0 = arith.constant 0 : i32
    %c0_i32_1 = arith.constant 0 : i32
    %c0_i32_2 = arith.constant 0 : i32
    return %c0_i32, %c0_i32_0, %c0_i32_1 : i32, i32, i32
  }
  func.func @transform_15(%arg0: i32) -> (i32, i32, i32) {
    %c0_i32 = arith.constant 0 : i32
    %c0_i32_0 = arith.constant 0 : i32
    %c0_i32_1 = arith.constant 0 : i32
    %c0_i32_2 = arith.constant 0 : i32
    return %c0_i32, %c0_i32_0, %c0_i32_1 : i32, i32, i32
  }
  func.func @transform_16(%arg0: i32) -> (i32, i32, i32) {
    %c0_i32 = arith.constant 0 : i32
    %c0_i32_0 = arith.constant 0 : i32
    %c0_i32_1 = arith.constant 0 : i32
    %c0_i32_2 = arith.constant 0 : i32
    return %c0_i32, %c0_i32_0, %c0_i32_1 : i32, i32, i32
  }
  func.func @transform_17(%arg0: i32) -> (i32, i32, i32) {
    %c0_i32 = arith.constant 0 : i32
    %c0_i32_0 = arith.constant 0 : i32
    %c0_i32_1 = arith.constant 0 : i32
    %c0_i32_2 = arith.constant 0 : i32
    return %c0_i32, %c0_i32_0, %c0_i32_1 : i32, i32, i32
  }
  func.func @transform_18(%arg0: i32) -> (i32, i32, i32) {
    %c0_i32 = arith.constant 0 : i32
    %c0_i32_0 = arith.constant 0 : i32
    %c0_i32_1 = arith.constant 0 : i32
    %c0_i32_2 = arith.constant 0 : i32
    return %c0_i32, %c0_i32_0, %c0_i32_1 : i32, i32, i32
  }
  func.func @transform_19(%arg0: i32) -> (i32, i32, i32) {
    %c0_i32 = arith.constant 0 : i32
    %c0_i32_0 = arith.constant 0 : i32
    %c0_i32_1 = arith.constant 0 : i32
    %c0_i32_2 = arith.constant 0 : i32
    return %c0_i32, %c0_i32_0, %c0_i32_1 : i32, i32, i32
  }
  func.func @transform_20(%arg0: i32) -> (i32, i32) {
    %c0_i32 = arith.constant 0 : i32
    %c0_i32_0 = arith.constant 0 : i32
    %c0_i32_1 = arith.constant 0 : i32
    return %c0_i32, %c0_i32_0 : i32, i32
  }
}

</mosaic_0001>

<llo_original>
// kernel: tpu_custom_call.1
$region0: #{tpu_custom_call.1}
  #allocation0 [shape = 'u32[]', space=smem, size = 0x4, offset = 0x4, fixed_abs, tag = 'smem constant byte address 0x4 - core index']
  #allocation1 [shape = 'u32[144,128]{1,0:T(1,128)}', space=vmem, size = 0x12000, scoped, tag = 'internal scratch']
  %s0 = inlined_call_operand.hbm [shape: f32[16,32], index: 0, kind: input, shape index: {}]
  %s1 = inlined_call_operand.vmem [shape: f32[2,8], index: 1, kind: input, shape index: {}]
  %s2 = inlined_call_operand.hbm [shape: f32[1,32], index: 2, kind: input, shape index: {}]
  %s3 = inlined_call_operand.hbm [shape: f32[1,32], index: 3, kind: input, shape index: {}]
  %s4 = inlined_call_operand.vmem [shape: f32[2,32,32], index: 4, kind: input, shape index: {}]
  %s5 = inlined_call_operand.vmem [shape: f32[2,1,32], index: 5, kind: input, shape index: {}]
  %s6 = inlined_call_operand.vmem [shape: f32[2,32,32], index: 6, kind: input, shape index: {}]
  %s7 = inlined_call_operand.vmem [shape: f32[2,1,32], index: 7, kind: input, shape index: {}]
  %s8 = inlined_call_operand.vmem [shape: f32[2,32,32], index: 8, kind: input, shape index: {}]
  %s9 = inlined_call_operand.vmem [shape: f32[2,1,32], index: 9, kind: input, shape index: {}]
  %s10 = inlined_call_operand.hbm [shape: f32[2,32,32], index: 10, kind: input, shape index: {}]
  %s11 = inlined_call_operand.vmem [shape: f32[2,1,32], index: 11, kind: input, shape index: {}]
  %s12 = inlined_call_operand.vmem [shape: f32[2,1,32], index: 12, kind: input, shape index: {}]
  %s13 = inlined_call_operand.vmem [shape: f32[2,1,32], index: 13, kind: input, shape index: {}]
  %s14 = inlined_call_operand.hbm [shape: f32[2,32,64], index: 14, kind: input, shape index: {}]
  %s15 = inlined_call_operand.vmem [shape: f32[2,1,64], index: 15, kind: input, shape index: {}]
  %s16 = inlined_call_operand.vmem [shape: f32[2,64,32], index: 16, kind: input, shape index: {}]
  %s17 = inlined_call_operand.vmem [shape: f32[2,1,32], index: 17, kind: input, shape index: {}]
  %s18 = inlined_call_operand.vmem [shape: f32[2,1,32], index: 18, kind: input, shape index: {}]
  %s19 = inlined_call_operand.vmem [shape: f32[2,1,32], index: 19, kind: input, shape index: {}]
  %s20 = inlined_call_operand.hbm [shape: f32[16,32], index: 20, kind: output, shape index: {}]
  %s21 = sld [smem:[#allocation0]]
  $region110: #{tpu_custom_call.1} parent=0
    _
  %s23 = ssub.s32 1, %s21
  %s24 = scalar_select 0, %s23, %s21
  $region1: #{tpu_custom_call.1} parent=0
    #allocation2 [shape = 'u8[8192]{0}', space=vmem, size = 0x2000, scoped, tag = 'input window, operand 0, single buffered']
    #allocation3 [shape = 's32[1]{0}', space=sflag, size = 0x4, scoped, tag = 'scoped memory for tpu_custom_call.1']
    #allocation4 [shape = 's32[1]{0}', space=sflag, size = 0x4, scoped, tag = 'scoped memory for tpu_custom_call.1']
    #allocation5 [shape = 'u8[512]{0}', space=vmem, size = 0x400, scoped, tag = 'input window, operand 2, single buffered']
    #allocation6 [shape = 's32[1]{0}', space=sflag, size = 0x4, scoped, tag = 'scoped memory for tpu_custom_call.1']
    #allocation7 [shape = 'u8[512]{0}', space=vmem, size = 0x400, scoped, tag = 'input window, operand 3, single buffered']
    #allocation8 [shape = 'u8[32768]{0}', space=vmem, size = 0x8000, scoped, tag = 'input window, operand 10, single buffered']
    #allocation9 [shape = 's32[1]{0}', space=sflag, size = 0x4, scoped, tag = 'scoped memory for tpu_custom_call.1']
    #allocation10 [shape = 'u8[32768]{0}', space=vmem, size = 0x8000, scoped, tag = 'input window, operand 14, single buffered']
    #allocation11 [shape = 'u8[8192]{0}', space=vmem, size = 0x2000, scoped, tag = 'output window, operand 0, single buffered']
    %25 = vsyncpa [#allocation3], 0
    %26 = vsyncpa [#allocation6], 0
    %27 = vsyncpa [#allocation9], 0
    %28 = vsyncpa [#allocation4], 0
    // Predicated region
    $region2: #{tpu_custom_call.1} parent=1 // pred_check
      _
    $region3: #{tpu_custom_call.1} parent=1 // pred_check_branch
      %30 = sbr.rel (0) target = $region5
    $region4: #{tpu_custom_call.1} parent=1 // pred_region
      %s32 = ssub.s32 256, 256
      %33 = vsyncadd [#allocation3], %s32
      %s34 = sshll.u32 [#allocation2], 4
      %s35 = int_to_ptr.vmem [resolvable:$true] %s34
      %40 = dma.hbm_to_vmem [thread:$0]  %s0, 256, %s35, [#allocation3], 128, 128, 8
    $region5: #{tpu_custom_call.1} parent=1 // pred_fallthru
      _
    // Predicated region
    $region6: #{tpu_custom_call.1} parent=1 // pred_check
      _
    $region7: #{tpu_custom_call.1} parent=1 // pred_check_branch
      %42 = sbr.rel (0) target = $region9
    $region8: #{tpu_custom_call.1} parent=1 // pred_region
      _
    $region9: #{tpu_custom_call.1} parent=1 // pred_fallthru
      _
    // Predicated region
    $region10: #{tpu_custom_call.1} parent=1 // pred_check
      _
    $region11: #{tpu_custom_call.1} parent=1 // pred_check_branch
      %44 = sbr.rel (0) target = $region13
    $region12: #{tpu_custom_call.1} parent=1 // pred_region
      %s46 = ssub.s32 16, 16
      %47 = vsyncadd [#allocation6], %s46
      %s49 = sshll.u32 [#allocation5], 4
      %s50 = int_to_ptr.vmem [resolvable:$true] %s49
      %52 = dma.hbm_to_vmem [thread:$0]  %s2, 16, %s50, [#allocation6]
    $region13: #{tpu_custom_call.1} parent=1 // pred_fallthru
      _
    // Predicated region
    $region14: #{tpu_custom_call.1} parent=1 // pred_check
      _
    $region15: #{tpu_custom_call.1} parent=1 // pred_check_branch
      %54 = sbr.rel (0) target = $region17
    $region16: #{tpu_custom_call.1} parent=1 // pred_region
      %s56 = ssub.s32 16, 16
      %57 = vsyncadd [#allocation6], %s56
      %s59 = sshll.u32 [#allocation7], 4
      %s60 = int_to_ptr.vmem [resolvable:$true] %s59
      %62 = dma.hbm_to_vmem [thread:$0]  %s3, 16, %s60, [#allocation6]
    $region17: #{tpu_custom_call.1} parent=1 // pred_fallthru
      _
    // Predicated region
    $region18: #{tpu_custom_call.1} parent=1 // pred_check
      _
    $region19: #{tpu_custom_call.1} parent=1 // pred_check_branch
      %64 = sbr.rel (0) target = $region21
    $region20: #{tpu_custom_call.1} parent=1 // pred_region
      _
    $region21: #{tpu_custom_call.1} parent=1 // pred_fallthru
      _
    // Predicated region
    $region22: #{tpu_custom_call.1} parent=1 // pred_check
      _
    $region23: #{tpu_custom_call.1} parent=1 // pred_check_branch
      %66 = sbr.rel (0) target = $region25
    $region24: #{tpu_custom_call.1} parent=1 // pred_region
      _
    $region25: #{tpu_custom_call.1} parent=1 // pred_fallthru
      _
    // Predicated region
    $region26: #{tpu_custom_call.1} parent=1 // pred_check
      _
    $region27: #{tpu_custom_call.1} parent=1 // pred_check_branch
      %68 = sbr.rel (0) target = $region29
    $region28: #{tpu_custom_call.1} parent=1 // pred_region
      _
    $region29: #{tpu_custom_call.1} parent=1 // pred_fallthru
      _
    // Predicated region
    $region30: #{tpu_custom_call.1} parent=1 // pred_check
      _
    $region31: #{tpu_custom_call.1} parent=1 // pred_check_branch
      %70 = sbr.rel (0) target = $region33
    $region32: #{tpu_custom_call.1} parent=1 // pred_region
      _
    $region33: #{tpu_custom_call.1} parent=1 // pred_fallthru
      _
    // Predicated region
    $region34: #{tpu_custom_call.1} parent=1 // pred_check
      _
    $region35: #{tpu_custom_call.1} parent=1 // pred_check_branch
      %72 = sbr.rel (0) target = $region37
    $region36: #{tpu_custom_call.1} parent=1 // pred_region
      _
    $region37: #{tpu_custom_call.1} parent=1 // pred_fallthru
      _
    // Predicated region
    $region38: #{tpu_custom_call.1} parent=1 // pred_check
      _
    $region39: #{tpu_custom_call.1} parent=1 // pred_check_branch
      %74 = sbr.rel (0) target = $region41
    $region40: #{tpu_custom_call.1} parent=1 // pred_region
      _
    $region41: #{tpu_custom_call.1} parent=1 // pred_fallthru
      _
    // Predicated region
    $region42: #{tpu_custom_call.1} parent=1 // pred_check
      _
    $region43: #{tpu_custom_call.1} parent=1 // pred_check_branch
      %76 = sbr.rel (0) target = $region45
    $region44: #{tpu_custom_call.1} parent=1 // pred_region
      %s78 = ssub.s32 1024, 1024
      %79 = vsyncadd [#allocation9], %s78
      %s80 = sshll.u32 [#allocation8], 4
      %s81 = int_to_ptr.vmem [resolvable:$true] %s80
      %86 = dma.hbm_to_vmem [thread:$0]  %s10, 1024, %s81, [#allocation9], 128, 128, 8
    $region45: #{tpu_custom_call.1} parent=1 // pred_fallthru
      _
    // Predicated region
    $region46: #{tpu_custom_call.1} parent=1 // pred_check
      _
    $region47: #{tpu_custom_call.1} parent=1 // pred_check_branch
      %88 = sbr.rel (0) target = $region49
    $region48: #{tpu_custom_call.1} parent=1 // pred_region
      _
    $region49: #{tpu_custom_call.1} parent=1 // pred_fallthru
      _
    // Predicated region
    $region50: #{tpu_custom_call.1} parent=1 // pred_check
      _
    $region51: #{tpu_custom_call.1} parent=1 // pred_check_branch
      %90 = sbr.rel (0) target = $region53
    $region52: #{tpu_custom_call.1} parent=1 // pred_region
      _
    $region53: #{tpu_custom_call.1} parent=1 // pred_fallthru
      _
    // Predicated region
    $region54: #{tpu_custom_call.1} parent=1 // pred_check
      _
    $region55: #{tpu_custom_call.1} parent=1 // pred_check_branch
      %92 = sbr.rel (0) target = $region57
    $region56: #{tpu_custom_call.1} parent=1 // pred_region
      _
    $region57: #{tpu_custom_call.1} parent=1 // pred_fallthru
      _
    // Predicated region
    $region58: #{tpu_custom_call.1} parent=1 // pred_check
      _
    $region59: #{tpu_custom_call.1} parent=1 // pred_check_branch
      %94 = sbr.rel (0) target = $region61
    $region60: #{tpu_custom_call.1} parent=1 // pred_region
      %s96 = ssub.s32 1024, 1024
      %97 = vsyncadd [#allocation9], %s96
      %s98 = sshll.u32 [#allocation10], 4
      %s99 = int_to_ptr.vmem [resolvable:$true] %s98
      %104 = dma.hbm_to_vmem [thread:$0]  %s14, 1024, %s99, [#allocation9], 128, 128, 8
    $region61: #{tpu_custom_call.1} parent=1 // pred_fallthru
      _
    // Predicated region
    $region62: #{tpu_custom_call.1} parent=1 // pred_check
      _
    $region63: #{tpu_custom_call.1} parent=1 // pred_check_branch
      %106 = sbr.rel (0) target = $region65
    $region64: #{tpu_custom_call.1} parent=1 // pred_region
      _
    $region65: #{tpu_custom_call.1} parent=1 // pred_fallthru
      _
    // Predicated region
    $region66: #{tpu_custom_call.1} parent=1 // pred_check
      _
    $region67: #{tpu_custom_call.1} parent=1 // pred_check_branch
      %108 = sbr.rel (0) target = $region69
    $region68: #{tpu_custom_call.1} parent=1 // pred_region
      _
    $region69: #{tpu_custom_call.1} parent=1 // pred_fallthru
      _
    // Predicated region
    $region70: #{tpu_custom_call.1} parent=1 // pred_check
      _
    $region71: #{tpu_custom_call.1} parent=1 // pred_check_branch
      %110 = sbr.rel (0) target = $region73
    $region72: #{tpu_custom_call.1} parent=1 // pred_region
      _
    $region73: #{tpu_custom_call.1} parent=1 // pred_fallthru
      _
    // Predicated region
    $region74: #{tpu_custom_call.1} parent=1 // pred_check
      _
    $region75: #{tpu_custom_call.1} parent=1 // pred_check_branch
      %112 = sbr.rel (0) target = $region77
    $region76: #{tpu_custom_call.1} parent=1 // pred_region
      _
    $region77: #{tpu_custom_call.1} parent=1 // pred_fallthru
      _
    // Predicated region
    $region78: #{tpu_custom_call.1} parent=1 // pred_check
      _
    $region79: #{tpu_custom_call.1} parent=1 // pred_check_branch
      %114 = sbr.rel (0) target = $region81
    $region80: #{tpu_custom_call.1} parent=1 // pred_region
      _
    $region81: #{tpu_custom_call.1} parent=1 // pred_fallthru
      _
    // Predicated region
    $region82: #{tpu_custom_call.1} parent=1 // pred_check
      _
    $region83: #{tpu_custom_call.1} parent=1 // pred_check_branch
      %116 = sbr.rel (0) target = $region85
    $region84: #{tpu_custom_call.1} parent=1 // pred_region
      %117 = dma.done [#allocation3], 256
    $region85: #{tpu_custom_call.1} parent=1 // pred_fallthru
      _
    // Predicated region
    $region86: #{tpu_custom_call.1} parent=1 // pred_check
      _
    $region87: #{tpu_custom_call.1} parent=1 // pred_check_branch
      %119 = sbr.rel (0) target = $region89
    $region88: #{tpu_custom_call.1} parent=1 // pred_region
      %120 = dma.done [#allocation6], 16
    $region89: #{tpu_custom_call.1} parent=1 // pred_fallthru
      _
    // Predicated region
    $region90: #{tpu_custom_call.1} parent=1 // pred_check
      _
    $region91: #{tpu_custom_call.1} parent=1 // pred_check_branch
      %122 = sbr.rel (0) target = $region93
    $region92: #{tpu_custom_call.1} parent=1 // pred_region
      %123 = dma.done [#allocation6], 16
    $region93: #{tpu_custom_call.1} parent=1 // pred_fallthru
      _
    // Predicated region
    $region94: #{tpu_custom_call.1} parent=1 // pred_check
      _
    $region95: #{tpu_custom_call.1} parent=1 // pred_check_branch
      %125 = sbr.rel (0) target = $region97
    $region96: #{tpu_custom_call.1} parent=1 // pred_region
      %126 = dma.done [#allocation9], 1024
    $region97: #{tpu_custom_call.1} parent=1 // pred_fallthru
      _
    // Predicated region
    $region98: #{tpu_custom_call.1} parent=1 // pred_check
      _
    $region99: #{tpu_custom_call.1} parent=1 // pred_check_branch
      %128 = sbr.rel (0) target = $region101
    $region100: #{tpu_custom_call.1} parent=1 // pred_region
      %129 = dma.done [#allocation9], 1024
    $region101: #{tpu_custom_call.1} parent=1 // pred_fallthru
      _
    %v130 = vld [vmem:[%s1] sm:$0x3]
    %v131 = vsub.f32 1.0, %v130
    %v132 = vmul.f32 %v131, -1e+09
    %v133 = vld [vmem:[#allocation2] sm:$0xff]
    %v134 = vld [vmem:[#allocation2 + $0x8] sm:$0xff]
    %v135 = vld [vmem:[#allocation5] sm:$0x1]
    %v136 = vld [vmem:[#allocation7] sm:$0x1]
    %vm137 = vcmask 261120
    %v138 = vsel %vm137, %v133, 0.0
    %139 = vadd.xlane.f32.xlu0 %v138
    %v140 = vpop.xlane.xlu0 %139
    %v141 = vsel %vm137, %v134, 0.0
    %142 = vadd.xlane.f32.xlu0 %v141
    %v143 = vpop.xlane.xlu0 %142
    %v144 = vrcp.pop 32.0
    %v145 = vmul.f32 %v140, %v144
    %v146 = vmul.f32 %v143, %v144
    %v147 = vsub.f32 %v133, %v145
    %v148 = vsub.f32 %v134, %v146
    %v149 = vmul.f32 %v147, %v147
    %v150 = vmul.f32 %v148, %v148
    %v151 = vsel %vm137, %v149, 0.0
    %152 = vadd.xlane.f32.xlu0 %v151
    %v153 = vpop.xlane.xlu0 %152
    %v154 = vsel %vm137, %v150, 0.0
    %155 = vadd.xlane.f32.xlu0 %v154
    %v156 = vpop.xlane.xlu0 %155
    %v157 = vmul.f32 %v153, %v144
    %v158 = vmul.f32 %v156, %v144
    %v159 = vadd.f32 %v157, 1e-12
    %v160 = vadd.f32 %v158, 1e-12
    %v161 = vrsqrt.pop %v159
    %v162 = vrsqrt.pop %v160
    %v163 = vmul.f32 %v147, %v161
    %v164 = vmul.f32 %v148, %v162
    %v166 = vlaneseq
    %v167 = vshrl.u32 %v166, 7
    %v168 = vsub.s32 0, %v167
    %v169 = vrot.slane %v135, %v168
    %v171 = vmul.f32 %v163, %v169
    %v172 = vmul.f32 %v164, %v169
    %v174 = vlaneseq
    %v175 = vshrl.u32 %v174, 7
    %v176 = vsub.s32 0, %v175
    %v177 = vrot.slane %v136, %v176
    %v179 = vadd.f32 %v171, %v177
    %v180 = vadd.f32 %v172, %v177
    %v181 = vld [vmem:[%s4] sm:$0xff]
    %v182 = vld [vmem:[%s4 + $0x8] sm:$0xff]
    %v183 = vld [vmem:[%s4 + $0x10] sm:$0xff]
    %v184 = vld [vmem:[%s4 + $0x18] sm:$0xff]
    %v185 = vld [vmem:[%s5] sm:$0x1]
    %v187 = vlaneseq
    %v188 = vshrl.u32 %v187, 7
    %v189 = vsub.s32 0, %v188
    %v190 = vrot.slane %v185, %v189
    %v193 = vsel %vm137, %v179, 0
    %v196 = vsel %vm137, %v180, 0
    %198 = vmatprep.subr.mxu0 0.0
    %199 = vmatpush1.msra.mxu0 %v181
    %200 = vmatprep.subr.mxu0 0.0
    %201 = vmatpush1.msra.mxu0 %v182
    %202 = vmatprep.subr.mxu0 0.0
    %203 = vmatpush1.msra.mxu0 %v183
    %204 = vmatprep.subr.mxu0 0.0
    %205 = vmatpush1.msra.mxu0 %v184
    %206 = vmatprep.subr.mxu0 0.0
    %207 = vmatpush1.msra.mxu0 0.0
    %208 = vmatprep.subr.mxu0 0.0
    %209 = vmatpush1.msra.mxu0 0.0
    %210 = vmatprep.subr.mxu0 0.0
    %211 = vmatpush1.msra.mxu0 0.0
    %212 = vmatprep.subr.mxu0 0.0
    %213 = vmatpush1.msra.mxu0 0.0
    %214 = vmatprep.subr.mxu0 0.0
    %215 = vmatpush1.msra.mxu0 0.0
    %216 = vmatprep.subr.mxu0 0.0
    %217 = vmatpush1.msra.mxu0 0.0
    %218 = vmatprep.subr.mxu0 0.0
    %219 = vmatpush1.msra.mxu0 0.0
    %220 = vmatprep.subr.mxu0 0.0
    %221 = vmatpush1.msra.mxu0 0.0
    %222 = vmatprep.subr.mxu0 0.0
    %223 = vmatpush1.msra.mxu0 0.0
    %224 = vmatprep.subr.mxu0 0.0
    %225 = vmatpush1.msra.mxu0 0.0
    %226 = vmatprep.subr.mxu0 0.0
    %227 = vmatpush1.msra.mxu0 0.0
    %228 = vmatprep.subr.mxu0 0.0
    %229 = vmatpush1.msra.mxu0 0.0
    %230 = vmatprep.subr.mxu0 0.0
    %231 = vmatpush1.msra.mxu0 0.0
    %232 = vmatprep.subr.mxu0 0.0
    %233 = vmatpush1.msra.mxu0 0.0
    %234 = vmatprep.subr.mxu0 0.0
    %235 = vmatpush1.msra.mxu0 0.0
    %236 = vmatprep.subr.mxu0 0.0
    %237 = vmatpush1.msra.mxu0 0.0
    %238 = vmatprep.subr.mxu0 0.0
    %239 = vmatpush1.msra.mxu0 0.0
    %240 = vmatprep.subr.mxu0 0.0
    %241 = vmatpush1.msra.mxu0 0.0
    %242 = vmatprep.subr.mxu0 0.0
    %243 = vmatpush1.msra.mxu0 0.0
    %244 = vmatprep.subr.mxu0 0.0
    %245 = vmatpush1.msra.mxu0 0.0
    %246 = vmatprep.subr.mxu0 0.0
    %247 = vmatpush1.msra.mxu0 0.0
    %248 = vmatprep.subr.mxu0 0.0
    %249 = vmatpush1.msra.mxu0 0.0
    %250 = vmatprep.subr.mxu0 0.0
    %251 = vmatpush1.msra.mxu0 0.0
    %252 = vmatprep.subr.mxu0 0.0
    %253 = vmatpush1.msra.mxu0 0.0
    %254 = vmatprep.subr.mxu0 0.0
    %255 = vmatpush1.msra.mxu0 0.0
    %256 = vmatprep.subr.mxu0 0.0
    %257 = vmatpush1.msra.mxu0 0.0
    %258 = vmatprep.subr.mxu0 0.0
    %259 = vmatpush1.msra.mxu0 0.0
    %260 = vmatprep.subr.mxu0 0.0
    %261 = vmatpush1.msra.mxu0 0.0
    %262 = vmatprep.mubr.f32.mxu0 0.0
    %263 = vmatmul.mubr.f32.gmra.mrb[0].mxu0 %v193
    %v264 = vpop.f32.mrb[0].mxu0
    %v265 = vadd.f32 %v190, %v264
    %v266 = vpop.f32.mrb[0].mxu0
    %267 = vmatprep.mubr.f32.mxu0 0.0
    %268 = vmatmul.mubr.f32.gmra.mrb[0].mxu0 %v196
    %v269 = vpop.f32.mrb[0].mxu0
    %v270 = vadd.f32 %v190, %v269
    %v271 = vpop.f32.mrb[0].mxu0
    %272 = vdwg.mxu0
    %v273 = vmul.f32 %v265, 0.35355338
    %v274 = vmul.f32 %v270, 0.35355338
    %v275 = vld [vmem:[%s6] sm:$0xff]
    %v276 = vld [vmem:[%s6 + $0x8] sm:$0xff]
    %v277 = vld [vmem:[%s6 + $0x10] sm:$0xff]
    %v278 = vld [vmem:[%s6 + $0x18] sm:$0xff]
    %v279 = vld [vmem:[%s7] sm:$0x1]
    %v281 = vlaneseq
    %v282 = vshrl.u32 %v281, 7
    %v283 = vsub.s32 0, %v282
    %v284 = vrot.slane %v279, %v283
    %286 = vmatprep.subr.mxu0 0.0
    %287 = vmatpush1.msra.mxu0 %v275
    %288 = vmatprep.subr.mxu0 0.0
    %289 = vmatpush1.msra.mxu0 %v276
    %290 = vmatprep.subr.mxu0 0.0
    %291 = vmatpush1.msra.mxu0 %v277
    %292 = vmatprep.subr.mxu0 0.0
    %293 = vmatpush1.msra.mxu0 %v278
    %294 = vmatprep.subr.mxu0 0.0
    %295 = vmatpush1.msra.mxu0 0.0
    %296 = vmatprep.subr.mxu0 0.0
    %297 = vmatpush1.msra.mxu0 0.0
    %298 = vmatprep.subr.mxu0 0.0
    %299 = vmatpush1.msra.mxu0 0.0
    %300 = vmatprep.subr.mxu0 0.0
    %301 = vmatpush1.msra.mxu0 0.0
    %302 = vmatprep.subr.mxu0 0.0
    %303 = vmatpush1.msra.mxu0 0.0
    %304 = vmatprep.subr.mxu0 0.0
    %305 = vmatpush1.msra.mxu0 0.0
    %306 = vmatprep.subr.mxu0 0.0
    %307 = vmatpush1.msra.mxu0 0.0
    %308 = vmatprep.subr.mxu0 0.0
    %309 = vmatpush1.msra.mxu0 0.0
    %310 = vmatprep.subr.mxu0 0.0
    %311 = vmatpush1.msra.mxu0 0.0
    %312 = vmatprep.subr.mxu0 0.0
    %313 = vmatpush1.msra.mxu0 0.0
    %314 = vmatprep.subr.mxu0 0.0
    %315 = vmatpush1.msra.mxu0 0.0
    %316 = vmatprep.subr.mxu0 0.0
    %317 = vmatpush1.msra.mxu0 0.0
    %318 = vmatprep.subr.mxu0 0.0
    %319 = vmatpush1.msra.mxu0 0.0
    %320 = vmatprep.subr.mxu0 0.0
    %321 = vmatpush1.msra.mxu0 0.0
    %322 = vmatprep.subr.mxu0 0.0
    %323 = vmatpush1.msra.mxu0 0.0
    %324 = vmatprep.subr.mxu0 0.0
    %325 = vmatpush1.msra.mxu0 0.0
    %326 = vmatprep.subr.mxu0 0.0
    %327 = vmatpush1.msra.mxu0 0.0
    %328 = vmatprep.subr.mxu0 0.0
    %329 = vmatpush1.msra.mxu0 0.0
    %330 = vmatprep.subr.mxu0 0.0
    %331 = vmatpush1.msra.mxu0 0.0
    %332 = vmatprep.subr.mxu0 0.0
    %333 = vmatpush1.msra.mxu0 0.0
    %334 = vmatprep.subr.mxu0 0.0
    %335 = vmatpush1.msra.mxu0 0.0
    %336 = vmatprep.subr.mxu0 0.0
    %337 = vmatpush1.msra.mxu0 0.0
    %338 = vmatprep.subr.mxu0 0.0
    %339 = vmatpush1.msra.mxu0 0.0
    %340 = vmatprep.subr.mxu0 0.0
    %341 = vmatpush1.msra.mxu0 0.0
    %342 = vmatprep.subr.mxu0 0.0
    %343 = vmatpush1.msra.mxu0 0.0
    %344 = vmatprep.subr.mxu0 0.0
    %345 = vmatpush1.msra.mxu0 0.0
    %346 = vmatprep.subr.mxu0 0.0
    %347 = vmatpush1.msra.mxu0 0.0
    %348 = vmatprep.subr.mxu0 0.0
    %349 = vmatpush1.msra.mxu0 0.0
    %350 = vmatprep.mubr.f32.mxu0 0.0
    %351 = vmatmul.mubr.f32.gmra.mrb[0].mxu0 %v193
    %v352 = vpop.f32.mrb[0].mxu0
    %v353 = vadd.f32 %v284, %v352
    %v354 = vpop.f32.mrb[0].mxu0
    %355 = vmatprep.mubr.f32.mxu0 0.0
    %356 = vmatmul.mubr.f32.gmra.mrb[0].mxu0 %v196
    %v357 = vpop.f32.mrb[0].mxu0
    %v358 = vadd.f32 %v284, %v357
    %v359 = vpop.f32.mrb[0].mxu0
    %360 = vdwg.mxu0
    %v361 = vld [vmem:[%s8] sm:$0xff]
    %v362 = vld [vmem:[%s8 + $0x8] sm:$0xff]
    %v363 = vld [vmem:[%s8 + $0x10] sm:$0xff]
    %v364 = vld [vmem:[%s8 + $0x18] sm:$0xff]
    %v365 = vld [vmem:[%s9] sm:$0x1]
    %v367 = vlaneseq
    %v368 = vshrl.u32 %v367, 7
    %v369 = vsub.s32 0, %v368
    %v370 = vrot.slane %v365, %v369
    %372 = vmatprep.subr.mxu0 0.0
    %373 = vmatpush1.msra.mxu0 %v361
    %374 = vmatprep.subr.mxu0 0.0
    %375 = vmatpush1.msra.mxu0 %v362
    %376 = vmatprep.subr.mxu0 0.0
    %377 = vmatpush1.msra.mxu0 %v363
    %378 = vmatprep.subr.mxu0 0.0
    %379 = vmatpush1.msra.mxu0 %v364
    %380 = vmatprep.subr.mxu0 0.0
    %381 = vmatpush1.msra.mxu0 0.0
    %382 = vmatprep.subr.mxu0 0.0
    %383 = vmatpush1.msra.mxu0 0.0
    %384 = vmatprep.subr.mxu0 0.0
    %385 = vmatpush1.msra.mxu0 0.0
    %386 = vmatprep.subr.mxu0 0.0
    %387 = vmatpush1.msra.mxu0 0.0
    %388 = vmatprep.subr.mxu0 0.0
    %389 = vmatpush1.msra.mxu0 0.0
    %390 = vmatprep.subr.mxu0 0.0
    %391 = vmatpush1.msra.mxu0 0.0
    %392 = vmatprep.subr.mxu0 0.0
    %393 = vmatpush1.msra.mxu0 0.0
    %394 = vmatprep.subr.mxu0 0.0
    %395 = vmatpush1.msra.mxu0 0.0
    %396 = vmatprep.subr.mxu0 0.0
    %397 = vmatpush1.msra.mxu0 0.0
    %398 = vmatprep.subr.mxu0 0.0
    %399 = vmatpush1.msra.mxu0 0.0
    %400 = vmatprep.subr.mxu0 0.0
    %401 = vmatpush1.msra.mxu0 0.0
    %402 = vmatprep.subr.mxu0 0.0
    %403 = vmatpush1.msra.mxu0 0.0
    %404 = vmatprep.subr.mxu0 0.0
    %405 = vmatpush1.msra.mxu0 0.0
    %406 = vmatprep.subr.mxu0 0.0
    %407 = vmatpush1.msra.mxu0 0.0
    %408 = vmatprep.subr.mxu0 0.0
    %409 = vmatpush1.msra.mxu0 0.0
    %410 = vmatprep.subr.mxu0 0.0
    %411 = vmatpush1.msra.mxu0 0.0
    %412 = vmatprep.subr.mxu0 0.0
    %413 = vmatpush1.msra.mxu0 0.0
    %414 = vmatprep.subr.mxu0 0.0
    %415 = vmatpush1.msra.mxu0 0.0
    %416 = vmatprep.subr.mxu0 0.0
    %417 = vmatpush1.msra.mxu0 0.0
    %418 = vmatprep.subr.mxu0 0.0
    %419 = vmatpush1.msra.mxu0 0.0
    %420 = vmatprep.subr.mxu0 0.0
    %421 = vmatpush1.msra.mxu0 0.0
    %422 = vmatprep.subr.mxu0 0.0
    %423 = vmatpush1.msra.mxu0 0.0
    %424 = vmatprep.subr.mxu0 0.0
    %425 = vmatpush1.msra.mxu0 0.0
    %426 = vmatprep.subr.mxu0 0.0
    %427 = vmatpush1.msra.mxu0 0.0
    %428 = vmatprep.subr.mxu0 0.0
    %429 = vmatpush1.msra.mxu0 0.0
    %430 = vmatprep.subr.mxu0 0.0
    %431 = vmatpush1.msra.mxu0 0.0
    %432 = vmatprep.subr.mxu0 0.0
    %433 = vmatpush1.msra.mxu0 0.0
    %434 = vmatprep.subr.mxu0 0.0
    %435 = vmatpush1.msra.mxu0 0.0
    %436 = vmatprep.mubr.f32.mxu0 0.0
    %437 = vmatmul.mubr.f32.gmra.mrb[0].mxu0 %v193
    %v438 = vpop.f32.mrb[0].mxu0
    %v439 = vadd.f32 %v370, %v438
    %v440 = vpop.f32.mrb[0].mxu0
    %441 = vmatprep.mubr.f32.mxu0 0.0
    %442 = vmatmul.mubr.f32.gmra.mrb[0].mxu0 %v196
    %v443 = vpop.f32.mrb[0].mxu0
    %v444 = vadd.f32 %v370, %v443
    %v445 = vpop.f32.mrb[0].mxu0
    %446 = vdwg.mxu0
    %v447 = vlaneseq
    %v448 = vshrl.u32 %v447, 7
    %v449 = vsub.s32 0, %v448
    %v450 = vrot.slane %v132, %v449
    %vm451 = vcmask 64512
    %v453 = vsel %vm451, %v273, 0
    %v456 = vsel %vm451, %v353, 0
    %458 = vmatprep.subr.mxu0 0.0
    %459 = vmatpush1.xpose.msra.mxu0 %v456
    %460 = vmatprep.subr.mxu0 0.0
    %461 = vmatpush1.xpose.msra.mxu0 0.0
    %462 = vmatprep.subr.mxu0 0.0
    %463 = vmatpush1.xpose.msra.mxu0 0.0
    %464 = vmatprep.subr.mxu0 0.0
    %465 = vmatpush1.xpose.msra.mxu0 0.0
    %466 = vmatprep.subr.mxu0 0.0
    %467 = vmatpush1.xpose.msra.mxu0 0.0
    %468 = vmatprep.subr.mxu0 0.0
    %469 = vmatpush1.xpose.msra.mxu0 0.0
    %470 = vmatprep.subr.mxu0 0.0
    %471 = vmatpush1.xpose.msra.mxu0 0.0
    %472 = vmatprep.subr.mxu0 0.0
    %473 = vmatpush1.xpose.msra.mxu0 0.0
    %474 = vmatprep.subr.mxu0 0.0
    %475 = vmatpush1.xpose.msra.mxu0 0.0
    %476 = vmatprep.subr.mxu0 0.0
    %477 = vmatpush1.xpose.msra.mxu0 0.0
    %478 = vmatprep.subr.mxu0 0.0
    %479 = vmatpush1.xpose.msra.mxu0 0.0
    %480 = vmatprep.subr.mxu0 0.0
    %481 = vmatpush1.xpose.msra.mxu0 0.0
    %482 = vmatprep.subr.mxu0 0.0
    %483 = vmatpush1.xpose.msra.mxu0 0.0
    %484 = vmatprep.subr.mxu0 0.0
    %485 = vmatpush1.xpose.msra.mxu0 0.0
    %486 = vmatprep.subr.mxu0 0.0
    %487 = vmatpush1.xpose.msra.mxu0 0.0
    %488 = vmatprep.subr.mxu0 0.0
    %489 = vmatpush1.xpose.msra.mxu0 0.0
    %490 = vmatprep.subr.mxu0 0.0
    %491 = vmatpush1.xpose.msra.mxu0 0.0
    %492 = vmatprep.subr.mxu0 0.0
    %493 = vmatpush1.xpose.msra.mxu0 0.0
    %494 = vmatprep.subr.mxu0 0.0
    %495 = vmatpush1.xpose.msra.mxu0 0.0
    %496 = vmatprep.subr.mxu0 0.0
    %497 = vmatpush1.xpose.msra.mxu0 0.0
    %498 = vmatprep.subr.mxu0 0.0
    %499 = vmatpush1.xpose.msra.mxu0 0.0
    %500 = vmatprep.subr.mxu0 0.0
    %501 = vmatpush1.xpose.msra.mxu0 0.0
    %502 = vmatprep.subr.mxu0 0.0
    %503 = vmatpush1.xpose.msra.mxu0 0.0
    %504 = vmatprep.subr.mxu0 0.0
    %505 = vmatpush1.xpose.msra.mxu0 0.0
    %506 = vmatprep.subr.mxu0 0.0
    %507 = vmatpush1.xpose.msra.mxu0 0.0
    %508 = vmatprep.subr.mxu0 0.0
    %509 = vmatpush1.xpose.msra.mxu0 0.0
    %510 = vmatprep.subr.mxu0 0.0
    %511 = vmatpush1.xpose.msra.mxu0 0.0
    %512 = vmatprep.subr.mxu0 0.0
    %513 = vmatpush1.xpose.msra.mxu0 0.0
    %514 = vmatprep.subr.mxu0 0.0
    %515 = vmatpush1.xpose.msra.mxu0 0.0
    %516 = vmatprep.subr.mxu0 0.0
    %517 = vmatpush1.xpose.msra.mxu0 0.0
    %518 = vmatprep.subr.mxu0 0.0
    %519 = vmatpush1.xpose.msra.mxu0 0.0
    %520 = vmatprep.subr.mxu0 0.0
    %521 = vmatpush1.xpose.msra.mxu0 0.0
    %522 = vmatprep.mubr.f32.mxu0 0.0
    %523 = vmatmul.mubr.f32.gmra.mrb[0].mxu0 %v453
    %v524 = vpop.f32.mrb[0].mxu0
    %v525 = vadd.f32 %v450, %v524
    %v526 = vpop.f32.mrb[0].mxu0
    %527 = vdwg.mxu0
    %v528 = vsel %vm451, %v525, -inf
    %529 = vmax.xlane.f32.xlu0 %v528
    %v530 = vpop.xlane.xlu0 %529
    %v531 = vsub.f32 %v525, %v530
    %v532 = vmul.f32 %v531, 1.442695
    %v533 = vpow.pop %v532
    %v534 = vsel %vm451, %v533, 0.0
    %535 = vadd.xlane.f32.xlu0 %v534
    %v536 = vpop.xlane.xlu0 %535
    %v537 = vrcp.pop %v536
    %v538 = vmul.f32 %v533, %v537
    %v540 = vsel %vm451, %v538, 0
    %542 = vmatprep.subr.mxu0 0.0
    %543 = vmatpush1.msra.mxu0 %v439
    %544 = vmatprep.subr.mxu0 0.0
    %545 = vmatpush1.msra.mxu0 0.0
    %546 = vmatprep.subr.mxu0 0.0
    %547 = vmatpush1.msra.mxu0 0.0
    %548 = vmatprep.subr.mxu0 0.0
    %549 = vmatpush1.msra.mxu0 0.0
    %550 = vmatprep.subr.mxu0 0.0
    %551 = vmatpush1.msra.mxu0 0.0
    %552 = vmatprep.subr.mxu0 0.0
    %553 = vmatpush1.msra.mxu0 0.0
    %554 = vmatprep.subr.mxu0 0.0
    %555 = vmatpush1.msra.mxu0 0.0
    %556 = vmatprep.subr.mxu0 0.0
    %557 = vmatpush1.msra.mxu0 0.0
    %558 = vmatprep.subr.mxu0 0.0
    %559 = vmatpush1.msra.mxu0 0.0
    %560 = vmatprep.subr.mxu0 0.0
    %561 = vmatpush1.msra.mxu0 0.0
    %562 = vmatprep.subr.mxu0 0.0
    %563 = vmatpush1.msra.mxu0 0.0
    %564 = vmatprep.subr.mxu0 0.0
    %565 = vmatpush1.msra.mxu0 0.0
    %566 = vmatprep.subr.mxu0 0.0
    %567 = vmatpush1.msra.mxu0 0.0
    %568 = vmatprep.subr.mxu0 0.0
    %569 = vmatpush1.msra.mxu0 0.0
    %570 = vmatprep.subr.mxu0 0.0
    %571 = vmatpush1.msra.mxu0 0.0
    %572 = vmatprep.subr.mxu0 0.0
    %573 = vmatpush1.msra.mxu0 0.0
    %574 = vmatprep.subr.mxu0 0.0
    %575 = vmatpush1.msra.mxu0 0.0
    %576 = vmatprep.subr.mxu0 0.0
    %577 = vmatpush1.msra.mxu0 0.0
    %578 = vmatprep.subr.mxu0 0.0
    %579 = vmatpush1.msra.mxu0 0.0
    %580 = vmatprep.subr.mxu0 0.0
    %581 = vmatpush1.msra.mxu0 0.0
    %582 = vmatprep.subr.mxu0 0.0
    %583 = vmatpush1.msra.mxu0 0.0
    %584 = vmatprep.subr.mxu0 0.0
    %585 = vmatpush1.msra.mxu0 0.0
    %586 = vmatprep.subr.mxu0 0.0
    %587 = vmatpush1.msra.mxu0 0.0
    %588 = vmatprep.subr.mxu0 0.0
    %589 = vmatpush1.msra.mxu0 0.0
    %590 = vmatprep.subr.mxu0 0.0
    %591 = vmatpush1.msra.mxu0 0.0
    %592 = vmatprep.subr.mxu0 0.0
    %593 = vmatpush1.msra.mxu0 0.0
    %594 = vmatprep.subr.mxu0 0.0
    %595 = vmatpush1.msra.mxu0 0.0
    %596 = vmatprep.subr.mxu0 0.0
    %597 = vmatpush1.msra.mxu0 0.0
    %598 = vmatprep.subr.mxu0 0.0
    %599 = vmatpush1.msra.mxu0 0.0
    %600 = vmatprep.subr.mxu0 0.0
    %601 = vmatpush1.msra.mxu0 0.0
    %602 = vmatprep.subr.mxu0 0.0
    %603 = vmatpush1.msra.mxu0 0.0
    %604 = vmatprep.subr.mxu0 0.0
    %605 = vmatpush1.msra.mxu0 0.0
    %606 = vmatprep.mubr.f32.mxu0 0.0
    %607 = vmatmul.mubr.f32.gmra.mrb[0].mxu0 %v540
    %v608 = vpop.f32.mrb[0].mxu0
    %v609 = vadd.f32 0.0, %v608
    %v610 = vpop.f32.mrb[0].mxu0
    %611 = vdwg.mxu0
    %612 = vrot.lane.b32.xlu0 %v273, 120
    %v613 = vpop.permute.xlu0 %612
    %614 = vrot.lane.b32.xlu0 %v353, 120
    %v615 = vpop.permute.xlu0 %614
    %v616 = vsel %vm451, %v613, 0
    %v618 = vsel %vm451, %v615, 0
    %620 = vmatprep.subr.mxu0 0.0
    %621 = vmatpush1.xpose.msra.mxu0 %v618
    %622 = vmatprep.subr.mxu0 0.0
    %623 = vmatpush1.xpose.msra.mxu0 0.0
    %624 = vmatprep.subr.mxu0 0.0
    %625 = vmatpush1.xpose.msra.mxu0 0.0
    %626 = vmatprep.subr.mxu0 0.0
    %627 = vmatpush1.xpose.msra.mxu0 0.0
    %628 = vmatprep.subr.mxu0 0.0
    %629 = vmatpush1.xpose.msra.mxu0 0.0
    %630 = vmatprep.subr.mxu0 0.0
    %631 = vmatpush1.xpose.msra.mxu0 0.0
    %632 = vmatprep.subr.mxu0 0.0
    %633 = vmatpush1.xpose.msra.mxu0 0.0
    %634 = vmatprep.subr.mxu0 0.0
    %635 = vmatpush1.xpose.msra.mxu0 0.0
    %636 = vmatprep.subr.mxu0 0.0
    %637 = vmatpush1.xpose.msra.mxu0 0.0
    %638 = vmatprep.subr.mxu0 0.0
    %639 = vmatpush1.xpose.msra.mxu0 0.0
    %640 = vmatprep.subr.mxu0 0.0
    %641 = vmatpush1.xpose.msra.mxu0 0.0
    %642 = vmatprep.subr.mxu0 0.0
    %643 = vmatpush1.xpose.msra.mxu0 0.0
    %644 = vmatprep.subr.mxu0 0.0
    %645 = vmatpush1.xpose.msra.mxu0 0.0
    %646 = vmatprep.subr.mxu0 0.0
    %647 = vmatpush1.xpose.msra.mxu0 0.0
    %648 = vmatprep.subr.mxu0 0.0
    %649 = vmatpush1.xpose.msra.mxu0 0.0
    %650 = vmatprep.subr.mxu0 0.0
    %651 = vmatpush1.xpose.msra.mxu0 0.0
    %652 = vmatprep.subr.mxu0 0.0
    %653 = vmatpush1.xpose.msra.mxu0 0.0
    %654 = vmatprep.subr.mxu0 0.0
    %655 = vmatpush1.xpose.msra.mxu0 0.0
    %656 = vmatprep.subr.mxu0 0.0
    %657 = vmatpush1.xpose.msra.mxu0 0.0
    %658 = vmatprep.subr.mxu0 0.0
    %659 = vmatpush1.xpose.msra.mxu0 0.0
    %660 = vmatprep.subr.mxu0 0.0
    %661 = vmatpush1.xpose.msra.mxu0 0.0
    %662 = vmatprep.subr.mxu0 0.0
    %663 = vmatpush1.xpose.msra.mxu0 0.0
    %664 = vmatprep.subr.mxu0 0.0
    %665 = vmatpush1.xpose.msra.mxu0 0.0
    %666 = vmatprep.subr.mxu0 0.0
    %667 = vmatpush1.xpose.msra.mxu0 0.0
    %668 = vmatprep.subr.mxu0 0.0
    %669 = vmatpush1.xpose.msra.mxu0 0.0
    %670 = vmatprep.subr.mxu0 0.0
    %671 = vmatpush1.xpose.msra.mxu0 0.0
    %672 = vmatprep.subr.mxu0 0.0
    %673 = vmatpush1.xpose.msra.mxu0 0.0
    %674 = vmatprep.subr.mxu0 0.0
    %675 = vmatpush1.xpose.msra.mxu0 0.0
    %676 = vmatprep.subr.mxu0 0.0
    %677 = vmatpush1.xpose.msra.mxu0 0.0
    %678 = vmatprep.subr.mxu0 0.0
    %679 = vmatpush1.xpose.msra.mxu0 0.0
    %680 = vmatprep.subr.mxu0 0.0
    %681 = vmatpush1.xpose.msra.mxu0 0.0
    %682 = vmatprep.subr.mxu0 0.0
    %683 = vmatpush1.xpose.msra.mxu0 0.0
    %684 = vmatprep.mubr.f32.mxu0 0.0
    %685 = vmatmul.mubr.f32.gmra.mrb[0].mxu0 %v616
    %v686 = vpop.f32.mrb[0].mxu0
    %v687 = vadd.f32 %v450, %v686
    %v688 = vpop.f32.mrb[0].mxu0
    %689 = vdwg.mxu0
    %v690 = vsel %vm451, %v687, -inf
    %691 = vmax.xlane.f32.xlu0 %v690
    %v692 = vpop.xlane.xlu0 %691
    %v693 = vsub.f32 %v687, %v692
    %v694 = vmul.f32 %v693, 1.442695
    %v695 = vpow.pop %v694
    %v696 = vsel %vm451, %v695, 0.0
    %697 = vadd.xlane.f32.xlu0 %v696
    %v698 = vpop.xlane.xlu0 %697
    %v699 = vrcp.pop %v698
    %v700 = vmul.f32 %v695, %v699
    %702 = vrot.lane.b32.xlu0 %v439, 120
    %v703 = vpop.permute.xlu0 %702
    %v706 = vsel %vm451, %v700, 0
    %708 = vmatprep.subr.mxu0 0.0
    %709 = vmatpush1.msra.mxu0 %v703
    %710 = vmatprep.subr.mxu0 0.0
    %711 = vmatpush1.msra.mxu0 0.0
    %712 = vmatprep.subr.mxu0 0.0
    %713 = vmatpush1.msra.mxu0 0.0
    %714 = vmatprep.subr.mxu0 0.0
    %715 = vmatpush1.msra.mxu0 0.0
    %716 = vmatprep.subr.mxu0 0.0
    %717 = vmatpush1.msra.mxu0 0.0
    %718 = vmatprep.subr.mxu0 0.0
    %719 = vmatpush1.msra.mxu0 0.0
    %720 = vmatprep.subr.mxu0 0.0
    %721 = vmatpush1.msra.mxu0 0.0
    %722 = vmatprep.subr.mxu0 0.0
    %723 = vmatpush1.msra.mxu0 0.0
    %724 = vmatprep.subr.mxu0 0.0
    %725 = vmatpush1.msra.mxu0 0.0
    %726 = vmatprep.subr.mxu0 0.0
    %727 = vmatpush1.msra.mxu0 0.0
    %728 = vmatprep.subr.mxu0 0.0
    %729 = vmatpush1.msra.mxu0 0.0
    %730 = vmatprep.subr.mxu0 0.0
    %731 = vmatpush1.msra.mxu0 0.0
    %732 = vmatprep.subr.mxu0 0.0
    %733 = vmatpush1.msra.mxu0 0.0
    %734 = vmatprep.subr.mxu0 0.0
    %735 = vmatpush1.msra.mxu0 0.0
    %736 = vmatprep.subr.mxu0 0.0
    %737 = vmatpush1.msra.mxu0 0.0
    %738 = vmatprep.subr.mxu0 0.0
    %739 = vmatpush1.msra.mxu0 0.0
    %740 = vmatprep.subr.mxu0 0.0
    %741 = vmatpush1.msra.mxu0 0.0
    %742 = vmatprep.subr.mxu0 0.0
    %743 = vmatpush1.msra.mxu0 0.0
    %744 = vmatprep.subr.mxu0 0.0
    %745 = vmatpush1.msra.mxu0 0.0
    %746 = vmatprep.subr.mxu0 0.0
    %747 = vmatpush1.msra.mxu0 0.0
    %748 = vmatprep.subr.mxu0 0.0
    %749 = vmatpush1.msra.mxu0 0.0
    %750 = vmatprep.subr.mxu0 0.0
    %751 = vmatpush1.msra.mxu0 0.0
    %752 = vmatprep.subr.mxu0 0.0
    %753 = vmatpush1.msra.mxu0 0.0
    %754 = vmatprep.subr.mxu0 0.0
    %755 = vmatpush1.msra.mxu0 0.0
    %756 = vmatprep.subr.mxu0 0.0
    %757 = vmatpush1.msra.mxu0 0.0
    %758 = vmatprep.subr.mxu0 0.0
    %759 = vmatpush1.msra.mxu0 0.0
    %760 = vmatprep.subr.mxu0 0.0
    %761 = vmatpush1.msra.mxu0 0.0
    %762 = vmatprep.subr.mxu0 0.0
    %763 = vmatpush1.msra.mxu0 0.0
    %764 = vmatprep.subr.mxu0 0.0
    %765 = vmatpush1.msra.mxu0 0.0
    %766 = vmatprep.subr.mxu0 0.0
    %767 = vmatpush1.msra.mxu0 0.0
    %768 = vmatprep.subr.mxu0 0.0
    %769 = vmatpush1.msra.mxu0 0.0
    %770 = vmatprep.subr.mxu0 0.0
    %771 = vmatpush1.msra.mxu0 0.0
    %772 = vmatprep.mubr.f32.mxu0 0.0
    %773 = vmatmul.mubr.f32.gmra.mrb[0].mxu0 %v706
    %v774 = vpop.f32.mrb[0].mxu0
    %v775 = vadd.f32 0.0, %v774
    %v776 = vpop.f32.mrb[0].mxu0
    %777 = vdwg.mxu0
    %778 = vrot.lane.b32.xlu0 %v273, 112
    %v779 = vpop.permute.xlu0 %778
    %780 = vrot.lane.b32.xlu0 %v353, 112
    %v781 = vpop.permute.xlu0 %780
    %v782 = vsel %vm451, %v779, 0
    %v784 = vsel %vm451, %v781, 0
    %786 = vmatprep.subr.mxu0 0.0
    %787 = vmatpush1.xpose.msra.mxu0 %v784
    %788 = vmatprep.subr.mxu0 0.0
    %789 = vmatpush1.xpose.msra.mxu0 0.0
    %790 = vmatprep.subr.mxu0 0.0
    %791 = vmatpush1.xpose.msra.mxu0 0.0
    %792 = vmatprep.subr.mxu0 0.0
    %793 = vmatpush1.xpose.msra.mxu0 0.0
    %794 = vmatprep.subr.mxu0 0.0
    %795 = vmatpush1.xpose.msra.mxu0 0.0
    %796 = vmatprep.subr.mxu0 0.0
    %797 = vmatpush1.xpose.msra.mxu0 0.0
    %798 = vmatprep.subr.mxu0 0.0
    %799 = vmatpush1.xpose.msra.mxu0 0.0
    %800 = vmatprep.subr.mxu0 0.0
    %801 = vmatpush1.xpose.msra.mxu0 0.0
    %802 = vmatprep.subr.mxu0 0.0
    %803 = vmatpush1.xpose.msra.mxu0 0.0
    %804 = vmatprep.subr.mxu0 0.0
    %805 = vmatpush1.xpose.msra.mxu0 0.0
    %806 = vmatprep.subr.mxu0 0.0
    %807 = vmatpush1.xpose.msra.mxu0 0.0
    %808 = vmatprep.subr.mxu0 0.0
    %809 = vmatpush1.xpose.msra.mxu0 0.0
    %810 = vmatprep.subr.mxu0 0.0
    %811 = vmatpush1.xpose.msra.mxu0 0.0
    %812 = vmatprep.subr.mxu0 0.0
    %813 = vmatpush1.xpose.msra.mxu0 0.0
    %814 = vmatprep.subr.mxu0 0.0
    %815 = vmatpush1.xpose.msra.mxu0 0.0
    %816 = vmatprep.subr.mxu0 0.0
    %817 = vmatpush1.xpose.msra.mxu0 0.0
    %818 = vmatprep.subr.mxu0 0.0
    %819 = vmatpush1.xpose.msra.mxu0 0.0
    %820 = vmatprep.subr.mxu0 0.0
    %821 = vmatpush1.xpose.msra.mxu0 0.0
    %822 = vmatprep.subr.mxu0 0.0
    %823 = vmatpush1.xpose.msra.mxu0 0.0
    %824 = vmatprep.subr.mxu0 0.0
    %825 = vmatpush1.xpose.msra.mxu0 0.0
    %826 = vmatprep.subr.mxu0 0.0
    %827 = vmatpush1.xpose.msra.mxu0 0.0
    %828 = vmatprep.subr.mxu0 0.0
    %829 = vmatpush1.xpose.msra.mxu0 0.0
    %830 = vmatprep.subr.mxu0 0.0
    %831 = vmatpush1.xpose.msra.mxu0 0.0
    %832 = vmatprep.subr.mxu0 0.0
    %833 = vmatpush1.xpose.msra.mxu0 0.0
    %834 = vmatprep.subr.mxu0 0.0
    %835 = vmatpush1.xpose.msra.mxu0 0.0
    %836 = vmatprep.subr.mxu0 0.0
    %837 = vmatpush1.xpose.msra.mxu0 0.0
    %838 = vmatprep.subr.mxu0 0.0
    %839 = vmatpush1.xpose.msra.mxu0 0.0
    %840 = vmatprep.subr.mxu0 0.0
    %841 = vmatpush1.xpose.msra.mxu0 0.0
    %842 = vmatprep.subr.mxu0 0.0
    %843 = vmatpush1.xpose.msra.mxu0 0.0
    %844 = vmatprep.subr.mxu0 0.0
    %845 = vmatpush1.xpose.msra.mxu0 0.0
    %846 = vmatprep.subr.mxu0 0.0
    %847 = vmatpush1.xpose.msra.mxu0 0.0
    %848 = vmatprep.subr.mxu0 0.0
    %849 = vmatpush1.xpose.msra.mxu0 0.0
    %850 = vmatprep.mubr.f32.mxu0 0.0
    %851 = vmatmul.mubr.f32.gmra.mrb[0].mxu0 %v782
    %v852 = vpop.f32.mrb[0].mxu0
    %v853 = vadd.f32 %v450, %v852
    %v854 = vpop.f32.mrb[0].mxu0
    %855 = vdwg.mxu0
    %v856 = vsel %vm451, %v853, -inf
    %857 = vmax.xlane.f32.xlu0 %v856
    %v858 = vpop.xlane.xlu0 %857
    %v859 = vsub.f32 %v853, %v858
    %v860 = vmul.f32 %v859, 1.442695
    %v861 = vpow.pop %v860
    %v862 = vsel %vm451, %v861, 0.0
    %863 = vadd.xlane.f32.xlu0 %v862
    %v864 = vpop.xlane.xlu0 %863
    %v865 = vrcp.pop %v864
    %v866 = vmul.f32 %v861, %v865
    %867 = vrot.lane.b32.xlu0 %v439, 112
    %v868 = vpop.permute.xlu0 %867
    %v871 = vsel %vm451, %v866, 0
    %873 = vmatprep.subr.mxu0 0.0
    %874 = vmatpush1.msra.mxu0 %v868
    %875 = vmatprep.subr.mxu0 0.0
    %876 = vmatpush1.msra.mxu0 0.0
    %877 = vmatprep.subr.mxu0 0.0
    %878 = vmatpush1.msra.mxu0 0.0
    %879 = vmatprep.subr.mxu0 0.0
    %880 = vmatpush1.msra.mxu0 0.0
    %881 = vmatprep.subr.mxu0 0.0
    %882 = vmatpush1.msra.mxu0 0.0
    %883 = vmatprep.subr.mxu0 0.0
    %884 = vmatpush1.msra.mxu0 0.0
    %885 = vmatprep.subr.mxu0 0.0
    %886 = vmatpush1.msra.mxu0 0.0
    %887 = vmatprep.subr.mxu0 0.0
    %888 = vmatpush1.msra.mxu0 0.0
    %889 = vmatprep.subr.mxu0 0.0
    %890 = vmatpush1.msra.mxu0 0.0
    %891 = vmatprep.subr.mxu0 0.0
    %892 = vmatpush1.msra.mxu0 0.0
    %893 = vmatprep.subr.mxu0 0.0
    %894 = vmatpush1.msra.mxu0 0.0
    %895 = vmatprep.subr.mxu0 0.0
    %896 = vmatpush1.msra.mxu0 0.0
    %897 = vmatprep.subr.mxu0 0.0
    %898 = vmatpush1.msra.mxu0 0.0
    %899 = vmatprep.subr.mxu0 0.0
    %900 = vmatpush1.msra.mxu0 0.0
    %901 = vmatprep.subr.mxu0 0.0
    %902 = vmatpush1.msra.mxu0 0.0
    %903 = vmatprep.subr.mxu0 0.0
    %904 = vmatpush1.msra.mxu0 0.0
    %905 = vmatprep.subr.mxu0 0.0
    %906 = vmatpush1.msra.mxu0 0.0
    %907 = vmatprep.subr.mxu0 0.0
    %908 = vmatpush1.msra.mxu0 0.0
    %909 = vmatprep.subr.mxu0 0.0
    %910 = vmatpush1.msra.mxu0 0.0
    %911 = vmatprep.subr.mxu0 0.0
    %912 = vmatpush1.msra.mxu0 0.0
    %913 = vmatprep.subr.mxu0 0.0
    %914 = vmatpush1.msra.mxu0 0.0
    %915 = vmatprep.subr.mxu0 0.0
    %916 = vmatpush1.msra.mxu0 0.0
    %917 = vmatprep.subr.mxu0 0.0
    %918 = vmatpush1.msra.mxu0 0.0
    %919 = vmatprep.subr.mxu0 0.0
    %920 = vmatpush1.msra.mxu0 0.0
    %921 = vmatprep.subr.mxu0 0.0
    %922 = vmatpush1.msra.mxu0 0.0
    %923 = vmatprep.subr.mxu0 0.0
    %924 = vmatpush1.msra.mxu0 0.0
    %925 = vmatprep.subr.mxu0 0.0
    %926 = vmatpush1.msra.mxu0 0.0
    %927 = vmatprep.subr.mxu0 0.0
    %928 = vmatpush1.msra.mxu0 0.0
    %929 = vmatprep.subr.mxu0 0.0
    %930 = vmatpush1.msra.mxu0 0.0
    %931 = vmatprep.subr.mxu0 0.0
    %932 = vmatpush1.msra.mxu0 0.0
    %933 = vmatprep.subr.mxu0 0.0
    %934 = vmatpush1.msra.mxu0 0.0
    %935 = vmatprep.subr.mxu0 0.0
    %936 = vmatpush1.msra.mxu0 0.0
    %937 = vmatprep.mubr.f32.mxu0 0.0
    %938 = vmatmul.mubr.f32.gmra.mrb[0].mxu0 %v871
    %v939 = vpop.f32.mrb[0].mxu0
    %v940 = vadd.f32 0.0, %v939
    %v941 = vpop.f32.mrb[0].mxu0
    %942 = vdwg.mxu0
    %943 = vrot.lane.b32.xlu0 %v273, 104
    %v944 = vpop.permute.xlu0 %943
    %945 = vrot.lane.b32.xlu0 %v353, 104
    %v946 = vpop.permute.xlu0 %945
    %v947 = vsel %vm451, %v944, 0
    %v949 = vsel %vm451, %v946, 0
    %951 = vmatprep.subr.mxu0 0.0
    %952 = vmatpush1.xpose.msra.mxu0 %v949
    %953 = vmatprep.subr.mxu0 0.0
    %954 = vmatpush1.xpose.msra.mxu0 0.0
    %955 = vmatprep.subr.mxu0 0.0
    %956 = vmatpush1.xpose.msra.mxu0 0.0
    %957 = vmatprep.subr.mxu0 0.0
    %958 = vmatpush1.xpose.msra.mxu0 0.0
    %959 = vmatprep.subr.mxu0 0.0
    %960 = vmatpush1.xpose.msra.mxu0 0.0
    %961 = vmatprep.subr.mxu0 0.0
    %962 = vmatpush1.xpose.msra.mxu0 0.0
    %963 = vmatprep.subr.mxu0 0.0
    %964 = vmatpush1.xpose.msra.mxu0 0.0
    %965 = vmatprep.subr.mxu0 0.0
    %966 = vmatpush1.xpose.msra.mxu0 0.0
    %967 = vmatprep.subr.mxu0 0.0
    %968 = vmatpush1.xpose.msra.mxu0 0.0
    %969 = vmatprep.subr.mxu0 0.0
    %970 = vmatpush1.xpose.msra.mxu0 0.0
    %971 = vmatprep.subr.mxu0 0.0
    %972 = vmatpush1.xpose.msra.mxu0 0.0
    %973 = vmatprep.subr.mxu0 0.0
    %974 = vmatpush1.xpose.msra.mxu0 0.0
    %975 = vmatprep.subr.mxu0 0.0
    %976 = vmatpush1.xpose.msra.mxu0 0.0
    %977 = vmatprep.subr.mxu0 0.0
    %978 = vmatpush1.xpose.msra.mxu0 0.0
    %979 = vmatprep.subr.mxu0 0.0
    %980 = vmatpush1.xpose.msra.mxu0 0.0
    %981 = vmatprep.subr.mxu0 0.0
    %982 = vmatpush1.xpose.msra.mxu0 0.0
    %983 = vmatprep.subr.mxu0 0.0
    %984 = vmatpush1.xpose.msra.mxu0 0.0
    %985 = vmatprep.subr.mxu0 0.0
    %986 = vmatpush1.xpose.msra.mxu0 0.0
    %987 = vmatprep.subr.mxu0 0.0
    %988 = vmatpush1.xpose.msra.mxu0 0.0
    %989 = vmatprep.subr.mxu0 0.0
    %990 = vmatpush1.xpose.msra.mxu0 0.0
    %991 = vmatprep.subr.mxu0 0.0
    %992 = vmatpush1.xpose.msra.mxu0 0.0
    %993 = vmatprep.subr.mxu0 0.0
    %994 = vmatpush1.xpose.msra.mxu0 0.0
    %995 = vmatprep.subr.mxu0 0.0
    %996 = vmatpush1.xpose.msra.mxu0 0.0
    %997 = vmatprep.subr.mxu0 0.0
    %998 = vmatpush1.xpose.msra.mxu0 0.0
    %999 = vmatprep.subr.mxu0 0.0
    %1000 = vmatpush1.xpose.msra.mxu0 0.0
    %1001 = vmatprep.subr.mxu0 0.0
    %1002 = vmatpush1.xpose.msra.mxu0 0.0
    %1003 = vmatprep.subr.mxu0 0.0
    %1004 = vmatpush1.xpose.msra.mxu0 0.0
    %1005 = vmatprep.subr.mxu0 0.0
    %1006 = vmatpush1.xpose.msra.mxu0 0.0
    %1007 = vmatprep.subr.mxu0 0.0
    %1008 = vmatpush1.xpose.msra.mxu0 0.0
    %1009 = vmatprep.subr.mxu0 0.0
    %1010 = vmatpush1.xpose.msra.mxu0 0.0
    %1011 = vmatprep.subr.mxu0 0.0
    %1012 = vmatpush1.xpose.msra.mxu0 0.0
    %1013 = vmatprep.subr.mxu0 0.0
    %1014 = vmatpush1.xpose.msra.mxu0 0.0
    %1015 = vmatprep.mubr.f32.mxu0 0.0
    %1016 = vmatmul.mubr.f32.gmra.mrb[0].mxu0 %v947
    %v1017 = vpop.f32.mrb[0].mxu0
    %v1018 = vadd.f32 %v450, %v1017
    %v1019 = vpop.f32.mrb[0].mxu0
    %1020 = vdwg.mxu0
    %v1021 = vsel %vm451, %v1018, -inf
    %1022 = vmax.xlane.f32.xlu0 %v1021
    %v1023 = vpop.xlane.xlu0 %1022
    %v1024 = vsub.f32 %v1018, %v1023
    %v1025 = vmul.f32 %v1024, 1.442695
    %v1026 = vpow.pop %v1025
    %v1027 = vsel %vm451, %v1026, 0.0
    %1028 = vadd.xlane.f32.xlu0 %v1027
    %v1029 = vpop.xlane.xlu0 %1028
    %v1030 = vrcp.pop %v1029
    %v1031 = vmul.f32 %v1026, %v1030
    %1032 = vrot.lane.b32.xlu0 %v439, 104
    %v1033 = vpop.permute.xlu0 %1032
    %v1036 = vsel %vm451, %v1031, 0
    %1038 = vmatprep.subr.mxu0 0.0
    %1039 = vmatpush1.msra.mxu0 %v1033
    %1040 = vmatprep.subr.mxu0 0.0
    %1041 = vmatpush1.msra.mxu0 0.0
    %1042 = vmatprep.subr.mxu0 0.0
    %1043 = vmatpush1.msra.mxu0 0.0
    %1044 = vmatprep.subr.mxu0 0.0
    %1045 = vmatpush1.msra.mxu0 0.0
    %1046 = vmatprep.subr.mxu0 0.0
    %1047 = vmatpush1.msra.mxu0 0.0
    %1048 = vmatprep.subr.mxu0 0.0
    %1049 = vmatpush1.msra.mxu0 0.0
    %1050 = vmatprep.subr.mxu0 0.0
    %1051 = vmatpush1.msra.mxu0 0.0
    %1052 = vmatprep.subr.mxu0 0.0
    %1053 = vmatpush1.msra.mxu0 0.0
    %1054 = vmatprep.subr.mxu0 0.0
    %1055 = vmatpush1.msra.mxu0 0.0
    %1056 = vmatprep.subr.mxu0 0.0
    %1057 = vmatpush1.msra.mxu0 0.0
    %1058 = vmatprep.subr.mxu0 0.0
    %1059 = vmatpush1.msra.mxu0 0.0
    %1060 = vmatprep.subr.mxu0 0.0
    %1061 = vmatpush1.msra.mxu0 0.0
    %1062 = vmatprep.subr.mxu0 0.0
    %1063 = vmatpush1.msra.mxu0 0.0
    %1064 = vmatprep.subr.mxu0 0.0
    %1065 = vmatpush1.msra.mxu0 0.0
    %1066 = vmatprep.subr.mxu0 0.0
    %1067 = vmatpush1.msra.mxu0 0.0
    %1068 = vmatprep.subr.mxu0 0.0
    %1069 = vmatpush1.msra.mxu0 0.0
    %1070 = vmatprep.subr.mxu0 0.0
    %1071 = vmatpush1.msra.mxu0 0.0
    %1072 = vmatprep.subr.mxu0 0.0
    %1073 = vmatpush1.msra.mxu0 0.0
    %1074 = vmatprep.subr.mxu0 0.0
    %1075 = vmatpush1.msra.mxu0 0.0
    %1076 = vmatprep.subr.mxu0 0.0
    %1077 = vmatpush1.msra.mxu0 0.0
    %1078 = vmatprep.subr.mxu0 0.0
    %1079 = vmatpush1.msra.mxu0 0.0
    %1080 = vmatprep.subr.mxu0 0.0
    %1081 = vmatpush1.msra.mxu0 0.0
    %1082 = vmatprep.subr.mxu0 0.0
    %1083 = vmatpush1.msra.mxu0 0.0
    %1084 = vmatprep.subr.mxu0 0.0
    %1085 = vmatpush1.msra.mxu0 0.0
    %1086 = vmatprep.subr.mxu0 0.0
    %1087 = vmatpush1.msra.mxu0 0.0
    %1088 = vmatprep.subr.mxu0 0.0
    %1089 = vmatpush1.msra.mxu0 0.0
    %1090 = vmatprep.subr.mxu0 0.0
    %1091 = vmatpush1.msra.mxu0 0.0
    %1092 = vmatprep.subr.mxu0 0.0
    %1093 = vmatpush1.msra.mxu0 0.0
    %1094 = vmatprep.subr.mxu0 0.0
    %1095 = vmatpush1.msra.mxu0 0.0
    %1096 = vmatprep.subr.mxu0 0.0
    %1097 = vmatpush1.msra.mxu0 0.0
    %1098 = vmatprep.subr.mxu0 0.0
    %1099 = vmatpush1.msra.mxu0 0.0
    %1100 = vmatprep.subr.mxu0 0.0
    %1101 = vmatpush1.msra.mxu0 0.0
    %1102 = vmatprep.mubr.f32.mxu0 0.0
    %1103 = vmatmul.mubr.f32.gmra.mrb[0].mxu0 %v1036
    %v1104 = vpop.f32.mrb[0].mxu0
    %v1105 = vadd.f32 0.0, %v1104
    %v1106 = vpop.f32.mrb[0].mxu0
    %1107 = vdwg.mxu0
    %1109 = vrot.lane.b32.xlu0 %v775, 8
    %v1110 = vpop.permute.xlu0 %1109
    %1113 = vrot.lane.b32.xlu0 %v940, 16
    %v1114 = vpop.permute.xlu0 %1113
    %1117 = vrot.lane.b32.xlu0 %v1105, 24
    %v1118 = vpop.permute.xlu0 %1117
    %v1120 = vsel %vm451, %v609, %v1110
    %vm1121 = vcmask 130048
    %v1122 = vsel %vm1121, %v1120, %v1114
    %vm1123 = vcmask 195584
    %v1124 = vsel %vm1123, %v1122, %v1118
    %v1125 = vlaneseq
    %v1126 = vshrl.u32 %v1125, 7
    %v1127 = vsub.s32 1, %v1126
    %v1128 = vrot.slane %v132, %v1127
    %v1130 = vsel %vm451, %v274, 0
    %v1133 = vsel %vm451, %v358, 0
    %1135 = vmatprep.subr.mxu0 0.0
    %1136 = vmatpush1.xpose.msra.mxu0 %v1133
    %1137 = vmatprep.subr.mxu0 0.0
    %1138 = vmatpush1.xpose.msra.mxu0 0.0
    %1139 = vmatprep.subr.mxu0 0.0
    %1140 = vmatpush1.xpose.msra.mxu0 0.0
    %1141 = vmatprep.subr.mxu0 0.0
    %1142 = vmatpush1.xpose.msra.mxu0 0.0
    %1143 = vmatprep.subr.mxu0 0.0
    %1144 = vmatpush1.xpose.msra.mxu0 0.0
    %1145 = vmatprep.subr.mxu0 0.0
    %1146 = vmatpush1.xpose.msra.mxu0 0.0
    %1147 = vmatprep.subr.mxu0 0.0
    %1148 = vmatpush1.xpose.msra.mxu0 0.0
    %1149 = vmatprep.subr.mxu0 0.0
    %1150 = vmatpush1.xpose.msra.mxu0 0.0
    %1151 = vmatprep.subr.mxu0 0.0
    %1152 = vmatpush1.xpose.msra.mxu0 0.0
    %1153 = vmatprep.subr.mxu0 0.0
    %1154 = vmatpush1.xpose.msra.mxu0 0.0
    %1155 = vmatprep.subr.mxu0 0.0
    %1156 = vmatpush1.xpose.msra.mxu0 0.0
    %1157 = vmatprep.subr.mxu0 0.0
    %1158 = vmatpush1.xpose.msra.mxu0 0.0
    %1159 = vmatprep.subr.mxu0 0.0
    %1160 = vmatpush1.xpose.msra.mxu0 0.0
    %1161 = vmatprep.subr.mxu0 0.0
    %1162 = vmatpush1.xpose.msra.mxu0 0.0
    %1163 = vmatprep.subr.mxu0 0.0
    %1164 = vmatpush1.xpose.msra.mxu0 0.0
    %1165 = vmatprep.subr.mxu0 0.0
    %1166 = vmatpush1.xpose.msra.mxu0 0.0
    %1167 = vmatprep.subr.mxu0 0.0
    %1168 = vmatpush1.xpose.msra.mxu0 0.0
    %1169 = vmatprep.subr.mxu0 0.0
    %1170 = vmatpush1.xpose.msra.mxu0 0.0
    %1171 = vmatprep.subr.mxu0 0.0
    %1172 = vmatpush1.xpose.msra.mxu0 0.0
    %1173 = vmatprep.subr.mxu0 0.0
    %1174 = vmatpush1.xpose.msra.mxu0 0.0
    %1175 = vmatprep.subr.mxu0 0.0
    %1176 = vmatpush1.xpose.msra.mxu0 0.0
    %1177 = vmatprep.subr.mxu0 0.0
    %1178 = vmatpush1.xpose.msra.mxu0 0.0
    %1179 = vmatprep.subr.mxu0 0.0
    %1180 = vmatpush1.xpose.msra.mxu0 0.0
    %1181 = vmatprep.subr.mxu0 0.0
    %1182 = vmatpush1.xpose.msra.mxu0 0.0
    %1183 = vmatprep.subr.mxu0 0.0
    %1184 = vmatpush1.xpose.msra.mxu0 0.0
    %1185 = vmatprep.subr.mxu0 0.0
    %1186 = vmatpush1.xpose.msra.mxu0 0.0
    %1187 = vmatprep.subr.mxu0 0.0
    %1188 = vmatpush1.xpose.msra.mxu0 0.0
    %1189 = vmatprep.subr.mxu0 0.0
    %1190 = vmatpush1.xpose.msra.mxu0 0.0
    %1191 = vmatprep.subr.mxu0 0.0
    %1192 = vmatpush1.xpose.msra.mxu0 0.0
    %1193 = vmatprep.subr.mxu0 0.0
    %1194 = vmatpush1.xpose.msra.mxu0 0.0
    %1195 = vmatprep.subr.mxu0 0.0
    %1196 = vmatpush1.xpose.msra.mxu0 0.0
    %1197 = vmatprep.subr.mxu0 0.0
    %1198 = vmatpush1.xpose.msra.mxu0 0.0
    %1199 = vmatprep.mubr.f32.mxu0 0.0
    %1200 = vmatmul.mubr.f32.gmra.mrb[0].mxu0 %v1130
    %v1201 = vpop.f32.mrb[0].mxu0
    %v1202 = vadd.f32 %v1128, %v1201
    %v1203 = vpop.f32.mrb[0].mxu0
    %1204 = vdwg.mxu0
    %v1205 = vsel %vm451, %v1202, -inf
    %1206 = vmax.xlane.f32.xlu0 %v1205
    %v1207 = vpop.xlane.xlu0 %1206
    %v1208 = vsub.f32 %v1202, %v1207
    %v1209 = vmul.f32 %v1208, 1.442695
    %v1210 = vpow.pop %v1209
    %v1211 = vsel %vm451, %v1210, 0.0
    %1212 = vadd.xlane.f32.xlu0 %v1211
    %v1213 = vpop.xlane.xlu0 %1212
    %v1214 = vrcp.pop %v1213
    %v1215 = vmul.f32 %v1210, %v1214
    %v1217 = vsel %vm451, %v1215, 0
    %1219 = vmatprep.subr.mxu0 0.0
    %1220 = vmatpush1.msra.mxu0 %v444
    %1221 = vmatprep.subr.mxu0 0.0
    %1222 = vmatpush1.msra.mxu0 0.0
    %1223 = vmatprep.subr.mxu0 0.0
    %1224 = vmatpush1.msra.mxu0 0.0
    %1225 = vmatprep.subr.mxu0 0.0
    %1226 = vmatpush1.msra.mxu0 0.0
    %1227 = vmatprep.subr.mxu0 0.0
    %1228 = vmatpush1.msra.mxu0 0.0
    %1229 = vmatprep.subr.mxu0 0.0
    %1230 = vmatpush1.msra.mxu0 0.0
    %1231 = vmatprep.subr.mxu0 0.0
    %1232 = vmatpush1.msra.mxu0 0.0
    %1233 = vmatprep.subr.mxu0 0.0
    %1234 = vmatpush1.msra.mxu0 0.0
    %1235 = vmatprep.subr.mxu0 0.0
    %1236 = vmatpush1.msra.mxu0 0.0
    %1237 = vmatprep.subr.mxu0 0.0
    %1238 = vmatpush1.msra.mxu0 0.0
    %1239 = vmatprep.subr.mxu0 0.0
    %1240 = vmatpush1.msra.mxu0 0.0
    %1241 = vmatprep.subr.mxu0 0.0
    %1242 = vmatpush1.msra.mxu0 0.0
    %1243 = vmatprep.subr.mxu0 0.0
    %1244 = vmatpush1.msra.mxu0 0.0
    %1245 = vmatprep.subr.mxu0 0.0
    %1246 = vmatpush1.msra.mxu0 0.0
    %1247 = vmatprep.subr.mxu0 0.0
    %1248 = vmatpush1.msra.mxu0 0.0
    %1249 = vmatprep.subr.mxu0 0.0
    %1250 = vmatpush1.msra.mxu0 0.0
    %1251 = vmatprep.subr.mxu0 0.0
    %1252 = vmatpush1.msra.mxu0 0.0
    %1253 = vmatprep.subr.mxu0 0.0
    %1254 = vmatpush1.msra.mxu0 0.0
    %1255 = vmatprep.subr.mxu0 0.0
    %1256 = vmatpush1.msra.mxu0 0.0
    %1257 = vmatprep.subr.mxu0 0.0
    %1258 = vmatpush1.msra.mxu0 0.0
    %1259 = vmatprep.subr.mxu0 0.0
    %1260 = vmatpush1.msra.mxu0 0.0
    %1261 = vmatprep.subr.mxu0 0.0
    %1262 = vmatpush1.msra.mxu0 0.0
    %1263 = vmatprep.subr.mxu0 0.0
    %1264 = vmatpush1.msra.mxu0 0.0
    %1265 = vmatprep.subr.mxu0 0.0
    %1266 = vmatpush1.msra.mxu0 0.0
    %1267 = vmatprep.subr.mxu0 0.0
    %1268 = vmatpush1.msra.mxu0 0.0
    %1269 = vmatprep.subr.mxu0 0.0
    %1270 = vmatpush1.msra.mxu0 0.0
    %1271 = vmatprep.subr.mxu0 0.0
    %1272 = vmatpush1.msra.mxu0 0.0
    %1273 = vmatprep.subr.mxu0 0.0
    %1274 = vmatpush1.msra.mxu0 0.0
    %1275 = vmatprep.subr.mxu0 0.0
    %1276 = vmatpush1.msra.mxu0 0.0
    %1277 = vmatprep.subr.mxu0 0.0
    %1278 = vmatpush1.msra.mxu0 0.0
    %1279 = vmatprep.subr.mxu0 0.0
    %1280 = vmatpush1.msra.mxu0 0.0
    %1281 = vmatprep.subr.mxu0 0.0
    %1282 = vmatpush1.msra.mxu0 0.0
    %1283 = vmatprep.mubr.f32.mxu0 0.0
    %1284 = vmatmul.mubr.f32.gmra.mrb[0].mxu0 %v1217
    %v1285 = vpop.f32.mrb[0].mxu0
    %v1286 = vadd.f32 0.0, %v1285
    %v1287 = vpop.f32.mrb[0].mxu0
    %1288 = vdwg.mxu0
    %1289 = vrot.lane.b32.xlu0 %v274, 120
    %v1290 = vpop.permute.xlu0 %1289
    %1291 = vrot.lane.b32.xlu0 %v358, 120
    %v1292 = vpop.permute.xlu0 %1291
    %v1293 = vsel %vm451, %v1290, 0
    %v1295 = vsel %vm451, %v1292, 0
    %1297 = vmatprep.subr.mxu0 0.0
    %1298 = vmatpush1.xpose.msra.mxu0 %v1295
    %1299 = vmatprep.subr.mxu0 0.0
    %1300 = vmatpush1.xpose.msra.mxu0 0.0
    %1301 = vmatprep.subr.mxu0 0.0
    %1302 = vmatpush1.xpose.msra.mxu0 0.0
    %1303 = vmatprep.subr.mxu0 0.0
    %1304 = vmatpush1.xpose.msra.mxu0 0.0
    %1305 = vmatprep.subr.mxu0 0.0
    %1306 = vmatpush1.xpose.msra.mxu0 0.0
    %1307 = vmatprep.subr.mxu0 0.0
    %1308 = vmatpush1.xpose.msra.mxu0 0.0
    %1309 = vmatprep.subr.mxu0 0.0
    %1310 = vmatpush1.xpose.msra.mxu0 0.0
    %1311 = vmatprep.subr.mxu0 0.0
    %1312 = vmatpush1.xpose.msra.mxu0 0.0
    %1313 = vmatprep.subr.mxu0 0.0
    %1314 = vmatpush1.xpose.msra.mxu0 0.0
    %1315 = vmatprep.subr.mxu0 0.0
    %1316 = vmatpush1.xpose.msra.mxu0 0.0
    %1317 = vmatprep.subr.mxu0 0.0
    %1318 = vmatpush1.xpose.msra.mxu0 0.0
    %1319 = vmatprep.subr.mxu0 0.0
    %1320 = vmatpush1.xpose.msra.mxu0 0.0
    %1321 = vmatprep.subr.mxu0 0.0
    %1322 = vmatpush1.xpose.msra.mxu0 0.0
    %1323 = vmatprep.subr.mxu0 0.0
    %1324 = vmatpush1.xpose.msra.mxu0 0.0
    %1325 = vmatprep.subr.mxu0 0.0
    %1326 = vmatpush1.xpose.msra.mxu0 0.0
    %1327 = vmatprep.subr.mxu0 0.0
    %1328 = vmatpush1.xpose.msra.mxu0 0.0
    %1329 = vmatprep.subr.mxu0 0.0
    %1330 = vmatpush1.xpose.msra.mxu0 0.0
    %1331 = vmatprep.subr.mxu0 0.0
    %1332 = vmatpush1.xpose.msra.mxu0 0.0
    %1333 = vmatprep.subr.mxu0 0.0
    %1334 = vmatpush1.xpose.msra.mxu0 0.0
    %1335 = vmatprep.subr.mxu0 0.0
    %1336 = vmatpush1.xpose.msra.mxu0 0.0
    %1337 = vmatprep.subr.mxu0 0.0
    %1338 = vmatpush1.xpose.msra.mxu0 0.0
    %1339 = vmatprep.subr.mxu0 0.0
    %1340 = vmatpush1.xpose.msra.mxu0 0.0
    %1341 = vmatprep.subr.mxu0 0.0
    %1342 = vmatpush1.xpose.msra.mxu0 0.0
    %1343 = vmatprep.subr.mxu0 0.0
    %1344 = vmatpush1.xpose.msra.mxu0 0.0
    %1345 = vmatprep.subr.mxu0 0.0
    %1346 = vmatpush1.xpose.msra.mxu0 0.0
    %1347 = vmatprep.subr.mxu0 0.0
    %1348 = vmatpush1.xpose.msra.mxu0 0.0
    %1349 = vmatprep.subr.mxu0 0.0
    %1350 = vmatpush1.xpose.msra.mxu0 0.0
    %1351 = vmatprep.subr.mxu0 0.0
    %1352 = vmatpush1.xpose.msra.mxu0 0.0
    %1353 = vmatprep.subr.mxu0 0.0
    %1354 = vmatpush1.xpose.msra.mxu0 0.0
    %1355 = vmatprep.subr.mxu0 0.0
    %1356 = vmatpush1.xpose.msra.mxu0 0.0
    %1357 = vmatprep.subr.mxu0 0.0
    %1358 = vmatpush1.xpose.msra.mxu0 0.0
    %1359 = vmatprep.subr.mxu0 0.0
    %1360 = vmatpush1.xpose.msra.mxu0 0.0
    %1361 = vmatprep.mubr.f32.mxu0 0.0
    %1362 = vmatmul.mubr.f32.gmra.mrb[0].mxu0 %v1293
    %v1363 = vpop.f32.mrb[0].mxu0
    %v1364 = vadd.f32 %v1128, %v1363
    %v1365 = vpop.f32.mrb[0].mxu0
    %1366 = vdwg.mxu0
    %v1367 = vsel %vm451, %v1364, -inf
    %1368 = vmax.xlane.f32.xlu0 %v1367
    %v1369 = vpop.xlane.xlu0 %1368
    %v1370 = vsub.f32 %v1364, %v1369
    %v1371 = vmul.f32 %v1370, 1.442695
    %v1372 = vpow.pop %v1371
    %v1373 = vsel %vm451, %v1372, 0.0
    %1374 = vadd.xlane.f32.xlu0 %v1373
    %v1375 = vpop.xlane.xlu0 %1374
    %v1376 = vrcp.pop %v1375
    %v1377 = vmul.f32 %v1372, %v1376
    %1379 = vrot.lane.b32.xlu0 %v444, 120
    %v1380 = vpop.permute.xlu0 %1379
    %v1383 = vsel %vm451, %v1377, 0
    %1385 = vmatprep.subr.mxu0 0.0
    %1386 = vmatpush1.msra.mxu0 %v1380
    %1387 = vmatprep.subr.mxu0 0.0
    %1388 = vmatpush1.msra.mxu0 0.0
    %1389 = vmatprep.subr.mxu0 0.0
    %1390 = vmatpush1.msra.mxu0 0.0
    %1391 = vmatprep.subr.mxu0 0.0
    %1392 = vmatpush1.msra.mxu0 0.0
    %1393 = vmatprep.subr.mxu0 0.0
    %1394 = vmatpush1.msra.mxu0 0.0
    %1395 = vmatprep.subr.mxu0 0.0
    %1396 = vmatpush1.msra.mxu0 0.0
    %1397 = vmatprep.subr.mxu0 0.0
    %1398 = vmatpush1.msra.mxu0 0.0
    %1399 = vmatprep.subr.mxu0 0.0
    %1400 = vmatpush1.msra.mxu0 0.0
    %1401 = vmatprep.subr.mxu0 0.0
    %1402 = vmatpush1.msra.mxu0 0.0
    %1403 = vmatprep.subr.mxu0 0.0
    %1404 = vmatpush1.msra.mxu0 0.0
    %1405 = vmatprep.subr.mxu0 0.0
    %1406 = vmatpush1.msra.mxu0 0.0
    %1407 = vmatprep.subr.mxu0 0.0
    %1408 = vmatpush1.msra.mxu0 0.0
    %1409 = vmatprep.subr.mxu0 0.0
    %1410 = vmatpush1.msra.mxu0 0.0
    %1411 = vmatprep.subr.mxu0 0.0
    %1412 = vmatpush1.msra.mxu0 0.0
    %1413 = vmatprep.subr.mxu0 0.0
    %1414 = vmatpush1.msra.mxu0 0.0
    %1415 = vmatprep.subr.mxu0 0.0
    %1416 = vmatpush1.msra.mxu0 0.0
    %1417 = vmatprep.subr.mxu0 0.0
    %1418 = vmatpush1.msra.mxu0 0.0
    %1419 = vmatprep.subr.mxu0 0.0
    %1420 = vmatpush1.msra.mxu0 0.0
    %1421 = vmatprep.subr.mxu0 0.0
    %1422 = vmatpush1.msra.mxu0 0.0
    %1423 = vmatprep.subr.mxu0 0.0
    %1424 = vmatpush1.msra.mxu0 0.0
    %1425 = vmatprep.subr.mxu0 0.0
    %1426 = vmatpush1.msra.mxu0 0.0
    %1427 = vmatprep.subr.mxu0 0.0
    %1428 = vmatpush1.msra.mxu0 0.0
    %1429 = vmatprep.subr.mxu0 0.0
    %1430 = vmatpush1.msra.mxu0 0.0
    %1431 = vmatprep.subr.mxu0 0.0
    %1432 = vmatpush1.msra.mxu0 0.0
    %1433 = vmatprep.subr.mxu0 0.0
    %1434 = vmatpush1.msra.mxu0 0.0
    %1435 = vmatprep.subr.mxu0 0.0
    %1436 = vmatpush1.msra.mxu0 0.0
    %1437 = vmatprep.subr.mxu0 0.0
    %1438 = vmatpush1.msra.mxu0 0.0
    %1439 = vmatprep.subr.mxu0 0.0
    %1440 = vmatpush1.msra.mxu0 0.0
    %1441 = vmatprep.subr.mxu0 0.0
    %1442 = vmatpush1.msra.mxu0 0.0
    %1443 = vmatprep.subr.mxu0 0.0
    %1444 = vmatpush1.msra.mxu0 0.0
    %1445 = vmatprep.subr.mxu0 0.0
    %1446 = vmatpush1.msra.mxu0 0.0
    %1447 = vmatprep.subr.mxu0 0.0
    %1448 = vmatpush1.msra.mxu0 0.0
    %1449 = vmatprep.mubr.f32.mxu0 0.0
    %1450 = vmatmul.mubr.f32.gmra.mrb[0].mxu0 %v1383
    %v1451 = vpop.f32.mrb[0].mxu0
    %v1452 = vadd.f32 0.0, %v1451
    %v1453 = vpop.f32.mrb[0].mxu0
    %1454 = vdwg.mxu0
    %1455 = vrot.lane.b32.xlu0 %v274, 112
    %v1456 = vpop.permute.xlu0 %1455
    %1457 = vrot.lane.b32.xlu0 %v358, 112
    %v1458 = vpop.permute.xlu0 %1457
    %v1459 = vsel %vm451, %v1456, 0
    %v1461 = vsel %vm451, %v1458, 0
    %1463 = vmatprep.subr.mxu0 0.0
    %1464 = vmatpush1.xpose.msra.mxu0 %v1461
    %1465 = vmatprep.subr.mxu0 0.0
    %1466 = vmatpush1.xpose.msra.mxu0 0.0
    %1467 = vmatprep.subr.mxu0 0.0
    %1468 = vmatpush1.xpose.msra.mxu0 0.0
    %1469 = vmatprep.subr.mxu0 0.0
    %1470 = vmatpush1.xpose.msra.mxu0 0.0
    %1471 = vmatprep.subr.mxu0 0.0
    %1472 = vmatpush1.xpose.msra.mxu0 0.0
    %1473 = vmatprep.subr.mxu0 0.0
    %1474 = vmatpush1.xpose.msra.mxu0 0.0
    %1475 = vmatprep.subr.mxu0 0.0
    %1476 = vmatpush1.xpose.msra.mxu0 0.0
    %1477 = vmatprep.subr.mxu0 0.0
    %1478 = vmatpush1.xpose.msra.mxu0 0.0
    %1479 = vmatprep.subr.mxu0 0.0
    %1480 = vmatpush1.xpose.msra.mxu0 0.0
    %1481 = vmatprep.subr.mxu0 0.0
    %1482 = vmatpush1.xpose.msra.mxu0 0.0
    %1483 = vmatprep.subr.mxu0 0.0
    %1484 = vmatpush1.xpose.msra.mxu0 0.0
    %1485 = vmatprep.subr.mxu0 0.0
    %1486 = vmatpush1.xpose.msra.mxu0 0.0
    %1487 = vmatprep.subr.mxu0 0.0
    %1488 = vmatpush1.xpose.msra.mxu0 0.0
    %1489 = vmatprep.subr.mxu0 0.0
    %1490 = vmatpush1.xpose.msra.mxu0 0.0
    %1491 = vmatprep.subr.mxu0 0.0
    %1492 = vmatpush1.xpose.msra.mxu0 0.0
    %1493 = vmatprep.subr.mxu0 0.0
    %1494 = vmatpush1.xpose.msra.mxu0 0.0
    %1495 = vmatprep.subr.mxu0 0.0
    %1496 = vmatpush1.xpose.msra.mxu0 0.0
    %1497 = vmatprep.subr.mxu0 0.0
    %1498 = vmatpush1.xpose.msra.mxu0 0.0
    %1499 = vmatprep.subr.mxu0 0.0
    %1500 = vmatpush1.xpose.msra.mxu0 0.0
    %1501 = vmatprep.subr.mxu0 0.0
    %1502 = vmatpush1.xpose.msra.mxu0 0.0
    %1503 = vmatprep.subr.mxu0 0.0
    %1504 = vmatpush1.xpose.msra.mxu0 0.0
    %1505 = vmatprep.subr.mxu0 0.0
    %1506 = vmatpush1.xpose.msra.mxu0 0.0
    %1507 = vmatprep.subr.mxu0 0.0
    %1508 = vmatpush1.xpose.msra.mxu0 0.0
    %1509 = vmatprep.subr.mxu0 0.0
    %1510 = vmatpush1.xpose.msra.mxu0 0.0
    %1511 = vmatprep.subr.mxu0 0.0
    %1512 = vmatpush1.xpose.msra.mxu0 0.0
    %1513 = vmatprep.subr.mxu0 0.0
    %1514 = vmatpush1.xpose.msra.mxu0 0.0
    %1515 = vmatprep.subr.mxu0 0.0
    %1516 = vmatpush1.xpose.msra.mxu0 0.0
    %1517 = vmatprep.subr.mxu0 0.0
    %1518 = vmatpush1.xpose.msra.mxu0 0.0
    %1519 = vmatprep.subr.mxu0 0.0
    %1520 = vmatpush1.xpose.msra.mxu0 0.0
    %1521 = vmatprep.subr.mxu0 0.0
    %1522 = vmatpush1.xpose.msra.mxu0 0.0
    %1523 = vmatprep.subr.mxu0 0.0
    %1524 = vmatpush1.xpose.msra.mxu0 0.0
    %1525 = vmatprep.subr.mxu0 0.0
    %1526 = vmatpush1.xpose.msra.mxu0 0.0
    %1527 = vmatprep.mubr.f32.mxu0 0.0
    %1528 = vmatmul.mubr.f32.gmra.mrb[0].mxu0 %v1459
    %v1529 = vpop.f32.mrb[0].mxu0
    %v1530 = vadd.f32 %v1128, %v1529
    %v1531 = vpop.f32.mrb[0].mxu0
    %1532 = vdwg.mxu0
    %v1533 = vsel %vm451, %v1530, -inf
    %1534 = vmax.xlane.f32.xlu0 %v1533
    %v1535 = vpop.xlane.xlu0 %1534
    %v1536 = vsub.f32 %v1530, %v1535
    %v1537 = vmul.f32 %v1536, 1.442695
    %v1538 = vpow.pop %v1537
    %v1539 = vsel %vm451, %v1538, 0.0
    %1540 = vadd.xlane.f32.xlu0 %v1539
    %v1541 = vpop.xlane.xlu0 %1540
    %v1542 = vrcp.pop %v1541
    %v1543 = vmul.f32 %v1538, %v1542
    %1544 = vrot.lane.b32.xlu0 %v444, 112
    %v1545 = vpop.permute.xlu0 %1544
    %v1548 = vsel %vm451, %v1543, 0
    %1550 = vmatprep.subr.mxu0 0.0
    %1551 = vmatpush1.msra.mxu0 %v1545
    %1552 = vmatprep.subr.mxu0 0.0
    %1553 = vmatpush1.msra.mxu0 0.0
    %1554 = vmatprep.subr.mxu0 0.0
    %1555 = vmatpush1.msra.mxu0 0.0
    %1556 = vmatprep.subr.mxu0 0.0
    %1557 = vmatpush1.msra.mxu0 0.0
    %1558 = vmatprep.subr.mxu0 0.0
    %1559 = vmatpush1.msra.mxu0 0.0
    %1560 = vmatprep.subr.mxu0 0.0
    %1561 = vmatpush1.msra.mxu0 0.0
    %1562 = vmatprep.subr.mxu0 0.0
    %1563 = vmatpush1.msra.mxu0 0.0
    %1564 = vmatprep.subr.mxu0 0.0
    %1565 = vmatpush1.msra.mxu0 0.0
    %1566 = vmatprep.subr.mxu0 0.0
    %1567 = vmatpush1.msra.mxu0 0.0
    %1568 = vmatprep.subr.mxu0 0.0
    %1569 = vmatpush1.msra.mxu0 0.0
    %1570 = vmatprep.subr.mxu0 0.0
    %1571 = vmatpush1.msra.mxu0 0.0
    %1572 = vmatprep.subr.mxu0 0.0
    %1573 = vmatpush1.msra.mxu0 0.0
    %1574 = vmatprep.subr.mxu0 0.0
    %1575 = vmatpush1.msra.mxu0 0.0
    %1576 = vmatprep.subr.mxu0 0.0
    %1577 = vmatpush1.msra.mxu0 0.0
    %1578 = vmatprep.subr.mxu0 0.0
    %1579 = vmatpush1.msra.mxu0 0.0
    %1580 = vmatprep.subr.mxu0 0.0
    %1581 = vmatpush1.msra.mxu0 0.0
    %1582 = vmatprep.subr.mxu0 0.0
    %1583 = vmatpush1.msra.mxu0 0.0
    %1584 = vmatprep.subr.mxu0 0.0
    %1585 = vmatpush1.msra.mxu0 0.0
    %1586 = vmatprep.subr.mxu0 0.0
    %1587 = vmatpush1.msra.mxu0 0.0
    %1588 = vmatprep.subr.mxu0 0.0
    %1589 = vmatpush1.msra.mxu0 0.0
    %1590 = vmatprep.subr.mxu0 0.0
    %1591 = vmatpush1.msra.mxu0 0.0
    %1592 = vmatprep.subr.mxu0 0.0
    %1593 = vmatpush1.msra.mxu0 0.0
    %1594 = vmatprep.subr.mxu0 0.0
    %1595 = vmatpush1.msra.mxu0 0.0
    %1596 = vmatprep.subr.mxu0 0.0
    %1597 = vmatpush1.msra.mxu0 0.0
    %1598 = vmatprep.subr.mxu0 0.0
    %1599 = vmatpush1.msra.mxu0 0.0
    %1600 = vmatprep.subr.mxu0 0.0
    %1601 = vmatpush1.msra.mxu0 0.0
    %1602 = vmatprep.subr.mxu0 0.0
    %1603 = vmatpush1.msra.mxu0 0.0
    %1604 = vmatprep.subr.mxu0 0.0
    %1605 = vmatpush1.msra.mxu0 0.0
    %1606 = vmatprep.subr.mxu0 0.0
    %1607 = vmatpush1.msra.mxu0 0.0
    %1608 = vmatprep.subr.mxu0 0.0
    %1609 = vmatpush1.msra.mxu0 0.0
    %1610 = vmatprep.subr.mxu0 0.0
    %1611 = vmatpush1.msra.mxu0 0.0
    %1612 = vmatprep.subr.mxu0 0.0
    %1613 = vmatpush1.msra.mxu0 0.0
    %1614 = vmatprep.mubr.f32.mxu0 0.0
    %1615 = vmatmul.mubr.f32.gmra.mrb[0].mxu0 %v1548
    %v1616 = vpop.f32.mrb[0].mxu0
    %v1617 = vadd.f32 0.0, %v1616
    %v1618 = vpop.f32.mrb[0].mxu0
    %1619 = vdwg.mxu0
    %1620 = vrot.lane.b32.xlu0 %v274, 104
    %v1621 = vpop.permute.xlu0 %1620
    %1622 = vrot.lane.b32.xlu0 %v358, 104
    %v1623 = vpop.permute.xlu0 %1622
    %v1624 = vsel %vm451, %v1621, 0
    %v1626 = vsel %vm451, %v1623, 0
    %1628 = vmatprep.subr.mxu0 0.0
    %1629 = vmatpush1.xpose.msra.mxu0 %v1626
    %1630 = vmatprep.subr.mxu0 0.0
    %1631 = vmatpush1.xpose.msra.mxu0 0.0
    %1632 = vmatprep.subr.mxu0 0.0
    %1633 = vmatpush1.xpose.msra.mxu0 0.0
    %1634 = vmatprep.subr.mxu0 0.0
    %1635 = vmatpush1.xpose.msra.mxu0 0.0
    %1636 = vmatprep.subr.mxu0 0.0
    %1637 = vmatpush1.xpose.msra.mxu0 0.0
    %1638 = vmatprep.subr.mxu0 0.0
    %1639 = vmatpush1.xpose.msra.mxu0 0.0
    %1640 = vmatprep.subr.mxu0 0.0
    %1641 = vmatpush1.xpose.msra.mxu0 0.0
    %1642 = vmatprep.subr.mxu0 0.0
    %1643 = vmatpush1.xpose.msra.mxu0 0.0
    %1644 = vmatprep.subr.mxu0 0.0
    %1645 = vmatpush1.xpose.msra.mxu0 0.0
    %1646 = vmatprep.subr.mxu0 0.0
    %1647 = vmatpush1.xpose.msra.mxu0 0.0
    %1648 = vmatprep.subr.mxu0 0.0
    %1649 = vmatpush1.xpose.msra.mxu0 0.0
    %1650 = vmatprep.subr.mxu0 0.0
    %1651 = vmatpush1.xpose.msra.mxu0 0.0
    %1652 = vmatprep.subr.mxu0 0.0
    %1653 = vmatpush1.xpose.msra.mxu0 0.0
    %1654 = vmatprep.subr.mxu0 0.0
    %1655 = vmatpush1.xpose.msra.mxu0 0.0
    %1656 = vmatprep.subr.mxu0 0.0
    %1657 = vmatpush1.xpose.msra.mxu0 0.0
    %1658 = vmatprep.subr.mxu0 0.0
    %1659 = vmatpush1.xpose.msra.mxu0 0.0
    %1660 = vmatprep.subr.mxu0 0.0
    %1661 = vmatpush1.xpose.msra.mxu0 0.0
    %1662 = vmatprep.subr.mxu0 0.0
    %1663 = vmatpush1.xpose.msra.mxu0 0.0
    %1664 = vmatprep.subr.mxu0 0.0
    %1665 = vmatpush1.xpose.msra.mxu0 0.0
    %1666 = vmatprep.subr.mxu0 0.0
    %1667 = vmatpush1.xpose.msra.mxu0 0.0
    %1668 = vmatprep.subr.mxu0 0.0
    %1669 = vmatpush1.xpose.msra.mxu0 0.0
    %1670 = vmatprep.subr.mxu0 0.0
    %1671 = vmatpush1.xpose.msra.mxu0 0.0
    %1672 = vmatprep.subr.mxu0 0.0
    %1673 = vmatpush1.xpose.msra.mxu0 0.0
    %1674 = vmatprep.subr.mxu0 0.0
    %1675 = vmatpush1.xpose.msra.mxu0 0.0
    %1676 = vmatprep.subr.mxu0 0.0
    %1677 = vmatpush1.xpose.msra.mxu0 0.0
    %1678 = vmatprep.subr.mxu0 0.0
    %1679 = vmatpush1.xpose.msra.mxu0 0.0
    %1680 = vmatprep.subr.mxu0 0.0
    %1681 = vmatpush1.xpose.msra.mxu0 0.0
    %1682 = vmatprep.subr.mxu0 0.0
    %1683 = vmatpush1.xpose.msra.mxu0 0.0
    %1684 = vmatprep.subr.mxu0 0.0
    %1685 = vmatpush1.xpose.msra.mxu0 0.0
    %1686 = vmatprep.subr.mxu0 0.0
    %1687 = vmatpush1.xpose.msra.mxu0 0.0
    %1688 = vmatprep.subr.mxu0 0.0
    %1689 = vmatpush1.xpose.msra.mxu0 0.0
    %1690 = vmatprep.subr.mxu0 0.0
    %1691 = vmatpush1.xpose.msra.mxu0 0.0
    %1692 = vmatprep.mubr.f32.mxu0 0.0
    %1693 = vmatmul.mubr.f32.gmra.mrb[0].mxu0 %v1624
    %v1694 = vpop.f32.mrb[0].mxu0
    %v1695 = vadd.f32 %v1128, %v1694
    %v1696 = vpop.f32.mrb[0].mxu0
    %1697 = vdwg.mxu0
    %v1698 = vsel %vm451, %v1695, -inf
    %1699 = vmax.xlane.f32.xlu0 %v1698
    %v1700 = vpop.xlane.xlu0 %1699
    %v1701 = vsub.f32 %v1695, %v1700
    %v1702 = vmul.f32 %v1701, 1.442695
    %v1703 = vpow.pop %v1702
    %v1704 = vsel %vm451, %v1703, 0.0
    %1705 = vadd.xlane.f32.xlu0 %v1704
    %v1706 = vpop.xlane.xlu0 %1705
    %v1707 = vrcp.pop %v1706
    %v1708 = vmul.f32 %v1703, %v1707
    %1709 = vrot.lane.b32.xlu0 %v444, 104
    %v1710 = vpop.permute.xlu0 %1709
    %v1713 = vsel %vm451, %v1708, 0
    %1715 = vmatprep.subr.mxu0 0.0
    %1716 = vmatpush1.msra.mxu0 %v1710
    %1717 = vmatprep.subr.mxu0 0.0
    %1718 = vmatpush1.msra.mxu0 0.0
    %1719 = vmatprep.subr.mxu0 0.0
    %1720 = vmatpush1.msra.mxu0 0.0
    %1721 = vmatprep.subr.mxu0 0.0
    %1722 = vmatpush1.msra.mxu0 0.0
    %1723 = vmatprep.subr.mxu0 0.0
    %1724 = vmatpush1.msra.mxu0 0.0
    %1725 = vmatprep.subr.mxu0 0.0
    %1726 = vmatpush1.msra.mxu0 0.0
    %1727 = vmatprep.subr.mxu0 0.0
    %1728 = vmatpush1.msra.mxu0 0.0
    %1729 = vmatprep.subr.mxu0 0.0
    %1730 = vmatpush1.msra.mxu0 0.0
    %1731 = vmatprep.subr.mxu0 0.0
    %1732 = vmatpush1.msra.mxu0 0.0
    %1733 = vmatprep.subr.mxu0 0.0
    %1734 = vmatpush1.msra.mxu0 0.0
    %1735 = vmatprep.subr.mxu0 0.0
    %1736 = vmatpush1.msra.mxu0 0.0
    %1737 = vmatprep.subr.mxu0 0.0
    %1738 = vmatpush1.msra.mxu0 0.0
    %1739 = vmatprep.subr.mxu0 0.0
    %1740 = vmatpush1.msra.mxu0 0.0
    %1741 = vmatprep.subr.mxu0 0.0
    %1742 = vmatpush1.msra.mxu0 0.0
    %1743 = vmatprep.subr.mxu0 0.0
    %1744 = vmatpush1.msra.mxu0 0.0
    %1745 = vmatprep.subr.mxu0 0.0
    %1746 = vmatpush1.msra.mxu0 0.0
    %1747 = vmatprep.subr.mxu0 0.0
    %1748 = vmatpush1.msra.mxu0 0.0
    %1749 = vmatprep.subr.mxu0 0.0
    %1750 = vmatpush1.msra.mxu0 0.0
    %1751 = vmatprep.subr.mxu0 0.0
    %1752 = vmatpush1.msra.mxu0 0.0
    %1753 = vmatprep.subr.mxu0 0.0
    %1754 = vmatpush1.msra.mxu0 0.0
    %1755 = vmatprep.subr.mxu0 0.0
    %1756 = vmatpush1.msra.mxu0 0.0
    %1757 = vmatprep.subr.mxu0 0.0
    %1758 = vmatpush1.msra.mxu0 0.0
    %1759 = vmatprep.subr.mxu0 0.0
    %1760 = vmatpush1.msra.mxu0 0.0
    %1761 = vmatprep.subr.mxu0 0.0
    %1762 = vmatpush1.msra.mxu0 0.0
    %1763 = vmatprep.subr.mxu0 0.0
    %1764 = vmatpush1.msra.mxu0 0.0
    %1765 = vmatprep.subr.mxu0 0.0
    %1766 = vmatpush1.msra.mxu0 0.0
    %1767 = vmatprep.subr.mxu0 0.0
    %1768 = vmatpush1.msra.mxu0 0.0
    %1769 = vmatprep.subr.mxu0 0.0
    %1770 = vmatpush1.msra.mxu0 0.0
    %1771 = vmatprep.subr.mxu0 0.0
    %1772 = vmatpush1.msra.mxu0 0.0
    %1773 = vmatprep.subr.mxu0 0.0
    %1774 = vmatpush1.msra.mxu0 0.0
    %1775 = vmatprep.subr.mxu0 0.0
    %1776 = vmatpush1.msra.mxu0 0.0
    %1777 = vmatprep.subr.mxu0 0.0
    %1778 = vmatpush1.msra.mxu0 0.0
    %1779 = vmatprep.mubr.f32.mxu0 0.0
    %1780 = vmatmul.mubr.f32.gmra.mrb[0].mxu0 %v1713
    %v1781 = vpop.f32.mrb[0].mxu0
    %v1782 = vadd.f32 0.0, %v1781
    %v1783 = vpop.f32.mrb[0].mxu0
    %1784 = vdwg.mxu0
    %1786 = vrot.lane.b32.xlu0 %v1452, 8
    %v1787 = vpop.permute.xlu0 %1786
    %1790 = vrot.lane.b32.xlu0 %v1617, 16
    %v1791 = vpop.permute.xlu0 %1790
    %1794 = vrot.lane.b32.xlu0 %v1782, 24
    %v1795 = vpop.permute.xlu0 %1794
    %v1797 = vsel %vm451, %v1286, %v1787
    %v1798 = vsel %vm1121, %v1797, %v1791
    %v1799 = vsel %vm1123, %v1798, %v1795
    %v1800 = vld [vmem:[#allocation8] sm:$0xff]
    %v1801 = vld [vmem:[#allocation8 + $0x8] sm:$0xff]
    %v1802 = vld [vmem:[#allocation8 + $0x10] sm:$0xff]
    %v1803 = vld [vmem:[#allocation8 + $0x18] sm:$0xff]
    %v1804 = vld [vmem:[%s11] sm:$0x1]
    %v1806 = vlaneseq
    %v1807 = vshrl.u32 %v1806, 7
    %v1808 = vsub.s32 0, %v1807
    %v1809 = vrot.slane %v1804, %v1808
    %v1812 = vsel %vm137, %v1124, 0
    %v1815 = vsel %vm137, %v1799, 0
    %1817 = vmatprep.subr.mxu0 0.0
    %1818 = vmatpush1.msra.mxu0 %v1800
    %1819 = vmatprep.subr.mxu0 0.0
    %1820 = vmatpush1.msra.mxu0 %v1801
    %1821 = vmatprep.subr.mxu0 0.0
    %1822 = vmatpush1.msra.mxu0 %v1802
    %1823 = vmatprep.subr.mxu0 0.0
    %1824 = vmatpush1.msra.mxu0 %v1803
    %1825 = vmatprep.subr.mxu0 0.0
    %1826 = vmatpush1.msra.mxu0 0.0
    %1827 = vmatprep.subr.mxu0 0.0
    %1828 = vmatpush1.msra.mxu0 0.0
    %1829 = vmatprep.subr.mxu0 0.0
    %1830 = vmatpush1.msra.mxu0 0.0
    %1831 = vmatprep.subr.mxu0 0.0
    %1832 = vmatpush1.msra.mxu0 0.0
    %1833 = vmatprep.subr.mxu0 0.0
    %1834 = vmatpush1.msra.mxu0 0.0
    %1835 = vmatprep.subr.mxu0 0.0
    %1836 = vmatpush1.msra.mxu0 0.0
    %1837 = vmatprep.subr.mxu0 0.0
    %1838 = vmatpush1.msra.mxu0 0.0
    %1839 = vmatprep.subr.mxu0 0.0
    %1840 = vmatpush1.msra.mxu0 0.0
    %1841 = vmatprep.subr.mxu0 0.0
    %1842 = vmatpush1.msra.mxu0 0.0
    %1843 = vmatprep.subr.mxu0 0.0
    %1844 = vmatpush1.msra.mxu0 0.0
    %1845 = vmatprep.subr.mxu0 0.0
    %1846 = vmatpush1.msra.mxu0 0.0
    %1847 = vmatprep.subr.mxu0 0.0
    %1848 = vmatpush1.msra.mxu0 0.0
    %1849 = vmatprep.subr.mxu0 0.0
    %1850 = vmatpush1.msra.mxu0 0.0
    %1851 = vmatprep.subr.mxu0 0.0
    %1852 = vmatpush1.msra.mxu0 0.0
    %1853 = vmatprep.subr.mxu0 0.0
    %1854 = vmatpush1.msra.mxu0 0.0
    %1855 = vmatprep.subr.mxu0 0.0
    %1856 = vmatpush1.msra.mxu0 0.0
    %1857 = vmatprep.subr.mxu0 0.0
    %1858 = vmatpush1.msra.mxu0 0.0
    %1859 = vmatprep.subr.mxu0 0.0
    %1860 = vmatpush1.msra.mxu0 0.0
    %1861 = vmatprep.subr.mxu0 0.0
    %1862 = vmatpush1.msra.mxu0 0.0
    %1863 = vmatprep.subr.mxu0 0.0
    %1864 = vmatpush1.msra.mxu0 0.0
    %1865 = vmatprep.subr.mxu0 0.0
    %1866 = vmatpush1.msra.mxu0 0.0
    %1867 = vmatprep.subr.mxu0 0.0
    %1868 = vmatpush1.msra.mxu0 0.0
    %1869 = vmatprep.subr.mxu0 0.0
    %1870 = vmatpush1.msra.mxu0 0.0
    %1871 = vmatprep.subr.mxu0 0.0
    %1872 = vmatpush1.msra.mxu0 0.0
    %1873 = vmatprep.subr.mxu0 0.0
    %1874 = vmatpush1.msra.mxu0 0.0
    %1875 = vmatprep.subr.mxu0 0.0
    %1876 = vmatpush1.msra.mxu0 0.0
    %1877 = vmatprep.subr.mxu0 0.0
    %1878 = vmatpush1.msra.mxu0 0.0
    %1879 = vmatprep.subr.mxu0 0.0
    %1880 = vmatpush1.msra.mxu0 0.0
    %1881 = vmatprep.mubr.f32.mxu0 0.0
    %1882 = vmatmul.mubr.f32.gmra.mrb[0].mxu0 %v1812
    %v1883 = vpop.f32.mrb[0].mxu0
    %v1884 = vadd.f32 %v1809, %v1883
    %v1885 = vpop.f32.mrb[0].mxu0
    %1886 = vmatprep.mubr.f32.mxu0 0.0
    %1887 = vmatmul.mubr.f32.gmra.mrb[0].mxu0 %v1815
    %v1888 = vpop.f32.mrb[0].mxu0
    %v1889 = vadd.f32 %v1809, %v1888
    %v1890 = vpop.f32.mrb[0].mxu0
    %1891 = vdwg.mxu0
    %v1892 = vadd.f32 %v179, %v1884
    %v1893 = vadd.f32 %v180, %v1889
    %v1894 = vld [vmem:[%s12] sm:$0x1]
    %v1895 = vld [vmem:[%s13] sm:$0x1]
    %v1896 = vsel %vm137, %v1892, 0.0
    %1897 = vadd.xlane.f32.xlu0 %v1896
    %v1898 = vpop.xlane.xlu0 %1897
    %v1899 = vsel %vm137, %v1893, 0.0
    %1900 = vadd.xlane.f32.xlu0 %v1899
    %v1901 = vpop.xlane.xlu0 %1900
    %v1902 = vmul.f32 %v1898, %v144
    %v1903 = vmul.f32 %v1901, %v144
    %v1904 = vsub.f32 %v1892, %v1902
    %v1905 = vsub.f32 %v1893, %v1903
    %v1906 = vmul.f32 %v1904, %v1904
    %v1907 = vmul.f32 %v1905, %v1905
    %v1908 = vsel %vm137, %v1906, 0.0
    %1909 = vadd.xlane.f32.xlu0 %v1908
    %v1910 = vpop.xlane.xlu0 %1909
    %v1911 = vsel %vm137, %v1907, 0.0
    %1912 = vadd.xlane.f32.xlu0 %v1911
    %v1913 = vpop.xlane.xlu0 %1912
    %v1914 = vmul.f32 %v1910, %v144
    %v1915 = vmul.f32 %v1913, %v144
    %v1916 = vadd.f32 %v1914, 1e-12
    %v1917 = vadd.f32 %v1915, 1e-12
    %v1918 = vrsqrt.pop %v1916
    %v1919 = vrsqrt.pop %v1917
    %v1920 = vmul.f32 %v1904, %v1918
    %v1921 = vmul.f32 %v1905, %v1919
    %v1923 = vlaneseq
    %v1924 = vshrl.u32 %v1923, 7
    %v1925 = vsub.s32 0, %v1924
    %v1926 = vrot.slane %v1894, %v1925
    %v1928 = vmul.f32 %v1920, %v1926
    %v1929 = vmul.f32 %v1921, %v1926
    %v1931 = vlaneseq
    %v1932 = vshrl.u32 %v1931, 7
    %v1933 = vsub.s32 0, %v1932
    %v1934 = vrot.slane %v1895, %v1933
    %v1936 = vadd.f32 %v1928, %v1934
    %v1937 = vadd.f32 %v1929, %v1934
    %v1938 = vld [vmem:[#allocation10] sm:$0xff]
    %v1939 = vld [vmem:[#allocation10 + $0x8] sm:$0xff]
    %v1940 = vld [vmem:[#allocation10 + $0x10] sm:$0xff]
    %v1941 = vld [vmem:[#allocation10 + $0x18] sm:$0xff]
    %v1942 = vld [vmem:[%s15] sm:$0x1]
    %v1944 = vlaneseq
    %v1945 = vshrl.u32 %v1944, 7
    %v1946 = vsub.s32 0, %v1945
    %v1947 = vrot.slane %v1942, %v1946
    %v1950 = vsel %vm137, %v1936, 0
    %v1953 = vsel %vm137, %v1937, 0
    %1955 = vmatprep.subr.mxu0 0.0
    %1956 = vmatpush1.msra.mxu0 %v1938
    %1957 = vmatprep.subr.mxu0 0.0
    %1958 = vmatpush1.msra.mxu0 %v1939
    %1959 = vmatprep.subr.mxu0 0.0
    %1960 = vmatpush1.msra.mxu0 %v1940
    %1961 = vmatprep.subr.mxu0 0.0
    %1962 = vmatpush1.msra.mxu0 %v1941
    %1963 = vmatprep.subr.mxu0 0.0
    %1964 = vmatpush1.msra.mxu0 0.0
    %1965 = vmatprep.subr.mxu0 0.0
    %1966 = vmatpush1.msra.mxu0 0.0
    %1967 = vmatprep.subr.mxu0 0.0
    %1968 = vmatpush1.msra.mxu0 0.0
    %1969 = vmatprep.subr.mxu0 0.0
    %1970 = vmatpush1.msra.mxu0 0.0
    %1971 = vmatprep.subr.mxu0 0.0
    %1972 = vmatpush1.msra.mxu0 0.0
    %1973 = vmatprep.subr.mxu0 0.0
    %1974 = vmatpush1.msra.mxu0 0.0
    %1975 = vmatprep.subr.mxu0 0.0
    %1976 = vmatpush1.msra.mxu0 0.0
    %1977 = vmatprep.subr.mxu0 0.0
    %1978 = vmatpush1.msra.mxu0 0.0
    %1979 = vmatprep.subr.mxu0 0.0
    %1980 = vmatpush1.msra.mxu0 0.0
    %1981 = vmatprep.subr.mxu0 0.0
    %1982 = vmatpush1.msra.mxu0 0.0
    %1983 = vmatprep.subr.mxu0 0.0
    %1984 = vmatpush1.msra.mxu0 0.0
    %1985 = vmatprep.subr.mxu0 0.0
    %1986 = vmatpush1.msra.mxu0 0.0
    %1987 = vmatprep.subr.mxu0 0.0
    %1988 = vmatpush1.msra.mxu0 0.0
    %1989 = vmatprep.subr.mxu0 0.0
    %1990 = vmatpush1.msra.mxu0 0.0
    %1991 = vmatprep.subr.mxu0 0.0
    %1992 = vmatpush1.msra.mxu0 0.0
    %1993 = vmatprep.subr.mxu0 0.0
    %1994 = vmatpush1.msra.mxu0 0.0
    %1995 = vmatprep.subr.mxu0 0.0
    %1996 = vmatpush1.msra.mxu0 0.0
    %1997 = vmatprep.subr.mxu0 0.0
    %1998 = vmatpush1.msra.mxu0 0.0
    %1999 = vmatprep.subr.mxu0 0.0
    %2000 = vmatpush1.msra.mxu0 0.0
    %2001 = vmatprep.subr.mxu0 0.0
    %2002 = vmatpush1.msra.mxu0 0.0
    %2003 = vmatprep.subr.mxu0 0.0
    %2004 = vmatpush1.msra.mxu0 0.0
    %2005 = vmatprep.subr.mxu0 0.0
    %2006 = vmatpush1.msra.mxu0 0.0
    %2007 = vmatprep.subr.mxu0 0.0
    %2008 = vmatpush1.msra.mxu0 0.0
    %2009 = vmatprep.subr.mxu0 0.0
    %2010 = vmatpush1.msra.mxu0 0.0
    %2011 = vmatprep.subr.mxu0 0.0
    %2012 = vmatpush1.msra.mxu0 0.0
    %2013 = vmatprep.subr.mxu0 0.0
    %2014 = vmatpush1.msra.mxu0 0.0
    %2015 = vmatprep.subr.mxu0 0.0
    %2016 = vmatpush1.msra.mxu0 0.0
    %2017 = vmatprep.subr.mxu0 0.0
    %2018 = vmatpush1.msra.mxu0 0.0
    %2019 = vmatprep.mubr.f32.mxu0 0.0
    %2020 = vmatmul.mubr.f32.gmra.mrb[0].mxu0 %v1950
    %v2021 = vpop.f32.mrb[0].mxu0
    %v2022 = vadd.f32 %v1947, %v2021
    %v2023 = vpop.f32.mrb[0].mxu0
    %2024 = vmatprep.mubr.f32.mxu0 0.0
    %2025 = vmatmul.mubr.f32.gmra.mrb[0].mxu0 %v1953
    %v2026 = vpop.f32.mrb[0].mxu0
    %v2027 = vadd.f32 %v1947, %v2026
    %v2028 = vpop.f32.mrb[0].mxu0
    %2029 = vdwg.mxu0
    %v2030 = vmul.f32 %v2022, %v2022
    %v2031 = vmul.f32 %v2027, %v2027
    %v2032 = vmul.f32 %v2022, %v2030
    %v2033 = vmul.f32 %v2027, %v2031
    %v2034 = vmul.f32 %v2032, 0.044715
    %v2035 = vmul.f32 %v2033, 0.044715
    %v2036 = vadd.f32 %v2022, %v2034
    %v2037 = vadd.f32 %v2027, %v2035
    %v2038 = vmul.f32 %v2036, 0.7978846
    %v2039 = vmul.f32 %v2037, 0.7978846
    %v2040 = vtanh.pop %v2038
    %v2041 = vtanh.pop %v2039
    %v2042 = vadd.f32 %v2040, 1.0
    %v2043 = vadd.f32 %v2041, 1.0
    %v2044 = vmul.f32 %v2042, 0.5
    %v2045 = vmul.f32 %v2043, 0.5
    %v2046 = vmul.f32 %v2022, %v2044
    %v2047 = vmul.f32 %v2027, %v2045
    %v2048 = vld [vmem:[%s16] sm:$0xff]
    %v2049 = vld [vmem:[%s16 + $0x8] sm:$0xff]
    %v2050 = vld [vmem:[%s16 + $0x10] sm:$0xff]
    %v2051 = vld [vmem:[%s16 + $0x18] sm:$0xff]
    %v2052 = vld [vmem:[%s16 + $0x20] sm:$0xff]
    %v2053 = vld [vmem:[%s16 + $0x28] sm:$0xff]
    %v2054 = vld [vmem:[%s16 + $0x30] sm:$0xff]
    %v2055 = vld [vmem:[%s16 + $0x38] sm:$0xff]
    %v2056 = vld [vmem:[%s17] sm:$0x1]
    %v2058 = vlaneseq
    %v2059 = vshrl.u32 %v2058, 7
    %v2060 = vsub.s32 0, %v2059
    %v2061 = vrot.slane %v2056, %v2060
    %vm2063 = vcmask 523264
    %v2065 = vsel %vm2063, %v2046, 0
    %v2068 = vsel %vm2063, %v2047, 0
    %2070 = vmatprep.subr.mxu0 0.0
    %2071 = vmatpush1.msra.mxu0 %v2048
    %2072 = vmatprep.subr.mxu0 0.0
    %2073 = vmatpush1.msra.mxu0 %v2049
    %2074 = vmatprep.subr.mxu0 0.0
    %2075 = vmatpush1.msra.mxu0 %v2050
    %2076 = vmatprep.subr.mxu0 0.0
    %2077 = vmatpush1.msra.mxu0 %v2051
    %2078 = vmatprep.subr.mxu0 0.0
    %2079 = vmatpush1.msra.mxu0 %v2052
    %2080 = vmatprep.subr.mxu0 0.0
    %2081 = vmatpush1.msra.mxu0 %v2053
    %2082 = vmatprep.subr.mxu0 0.0
    %2083 = vmatpush1.msra.mxu0 %v2054
    %2084 = vmatprep.subr.mxu0 0.0
    %2085 = vmatpush1.msra.mxu0 %v2055
    %2086 = vmatprep.subr.mxu0 0.0
    %2087 = vmatpush1.msra.mxu0 0.0
    %2088 = vmatprep.subr.mxu0 0.0
    %2089 = vmatpush1.msra.mxu0 0.0
    %2090 = vmatprep.subr.mxu0 0.0
    %2091 = vmatpush1.msra.mxu0 0.0
    %2092 = vmatprep.subr.mxu0 0.0
    %2093 = vmatpush1.msra.mxu0 0.0
    %2094 = vmatprep.subr.mxu0 0.0
    %2095 = vmatpush1.msra.mxu0 0.0
    %2096 = vmatprep.subr.mxu0 0.0
    %2097 = vmatpush1.msra.mxu0 0.0
    %2098 = vmatprep.subr.mxu0 0.0
    %2099 = vmatpush1.msra.mxu0 0.0
    %2100 = vmatprep.subr.mxu0 0.0
    %2101 = vmatpush1.msra.mxu0 0.0
    %2102 = vmatprep.subr.mxu0 0.0
    %2103 = vmatpush1.msra.mxu0 0.0
    %2104 = vmatprep.subr.mxu0 0.0
    %2105 = vmatpush1.msra.mxu0 0.0
    %2106 = vmatprep.subr.mxu0 0.0
    %2107 = vmatpush1.msra.mxu0 0.0
    %2108 = vmatprep.subr.mxu0 0.0
    %2109 = vmatpush1.msra.mxu0 0.0
    %2110 = vmatprep.subr.mxu0 0.0
    %2111 = vmatpush1.msra.mxu0 0.0
    %2112 = vmatprep.subr.mxu0 0.0
    %2113 = vmatpush1.msra.mxu0 0.0
    %2114 = vmatprep.subr.mxu0 0.0
    %2115 = vmatpush1.msra.mxu0 0.0
    %2116 = vmatprep.subr.mxu0 0.0
    %2117 = vmatpush1.msra.mxu0 0.0
    %2118 = vmatprep.subr.mxu0 0.0
    %2119 = vmatpush1.msra.mxu0 0.0
    %2120 = vmatprep.subr.mxu0 0.0
    %2121 = vmatpush1.msra.mxu0 0.0
    %2122 = vmatprep.subr.mxu0 0.0
    %2123 = vmatpush1.msra.mxu0 0.0
    %2124 = vmatprep.subr.mxu0 0.0
    %2125 = vmatpush1.msra.mxu0 0.0
    %2126 = vmatprep.subr.mxu0 0.0
    %2127 = vmatpush1.msra.mxu0 0.0
    %2128 = vmatprep.subr.mxu0 0.0
    %2129 = vmatpush1.msra.mxu0 0.0
    %2130 = vmatprep.subr.mxu0 0.0
    %2131 = vmatpush1.msra.mxu0 0.0
    %2132 = vmatprep.subr.mxu0 0.0
    %2133 = vmatpush1.msra.mxu0 0.0
    %2134 = vmatprep.mubr.f32.mxu0 0.0
    %2135 = vmatmul.mubr.f32.gmra.mrb[0].mxu0 %v2065
    %v2136 = vpop.f32.mrb[0].mxu0
    %v2137 = vadd.f32 %v2061, %v2136
    %v2138 = vpop.f32.mrb[0].mxu0
    %2139 = vmatprep.mubr.f32.mxu0 0.0
    %2140 = vmatmul.mubr.f32.gmra.mrb[0].mxu0 %v2068
    %v2141 = vpop.f32.mrb[0].mxu0
    %v2142 = vadd.f32 %v2061, %v2141
    %v2143 = vpop.f32.mrb[0].mxu0
    %2144 = vdwg.mxu0
    %v2145 = vadd.f32 %v1936, %v2137
    %v2146 = vadd.f32 %v1937, %v2142
    %v2147 = vld [vmem:[%s18] sm:$0x1]
    %v2148 = vld [vmem:[%s19] sm:$0x1]
    %v2149 = vsel %vm137, %v2145, 0.0
    %2150 = vadd.xlane.f32.xlu0 %v2149
    %v2151 = vpop.xlane.xlu0 %2150
    %v2152 = vsel %vm137, %v2146, 0.0
    %2153 = vadd.xlane.f32.xlu0 %v2152
    %v2154 = vpop.xlane.xlu0 %2153
    %v2155 = vmul.f32 %v2151, %v144
    %v2156 = vmul.f32 %v2154, %v144
    %v2157 = vsub.f32 %v2145, %v2155
    %v2158 = vsub.f32 %v2146, %v2156
    %v2159 = vmul.f32 %v2157, %v2157
    %v2160 = vmul.f32 %v2158, %v2158
    %v2161 = vsel %vm137, %v2159, 0.0
    %2162 = vadd.xlane.f32.xlu0 %v2161
    %v2163 = vpop.xlane.xlu0 %2162
    %v2164 = vsel %vm137, %v2160, 0.0
    %2165 = vadd.xlane.f32.xlu0 %v2164
    %v2166 = vpop.xlane.xlu0 %2165
    %v2167 = vmul.f32 %v2163, %v144
    %v2168 = vmul.f32 %v2166, %v144
    %v2169 = vadd.f32 %v2167, 1e-12
    %v2170 = vadd.f32 %v2168, 1e-12
    %v2171 = vrsqrt.pop %v2169
    %v2172 = vrsqrt.pop %v2170
    %v2173 = vmul.f32 %v2157, %v2171
    %v2174 = vmul.f32 %v2158, %v2172
    %v2176 = vlaneseq
    %v2177 = vshrl.u32 %v2176, 7
    %v2178 = vsub.s32 0, %v2177
    %v2179 = vrot.slane %v2147, %v2178
    %v2181 = vmul.f32 %v2173, %v2179
    %v2182 = vmul.f32 %v2174, %v2179
    %v2184 = vlaneseq
    %v2185 = vshrl.u32 %v2184, 7
    %v2186 = vsub.s32 0, %v2185
    %v2187 = vrot.slane %v2148, %v2186
    %v2189 = vadd.f32 %v2181, %v2187
    %v2190 = vadd.f32 %v2182, %v2187
    %s2191 = scalar_lea.vmem %s4, 32
    %v2192 = vld [vmem:[%s2191] sm:$0xff]
    %v2193 = vld [vmem:[%s2191 + $0x8] sm:$0xff]
    %v2194 = vld [vmem:[%s2191 + $0x10] sm:$0xff]
    %v2195 = vld [vmem:[%s2191 + $0x18] sm:$0xff]
    %s2196 = scalar_lea.vmem %s5, 1
    %v2197 = vld [vmem:[%s2196] sm:$0x1]
    %v2199 = vlaneseq
    %v2200 = vshrl.u32 %v2199, 7
    %v2201 = vsub.s32 0, %v2200
    %v2202 = vrot.slane %v2197, %v2201
    %v2205 = vsel %vm137, %v2189, 0
    %v2208 = vsel %vm137, %v2190, 0
    %2210 = vmatprep.subr.mxu0 0.0
    %2211 = vmatpush1.msra.mxu0 %v2192
    %2212 = vmatprep.subr.mxu0 0.0
    %2213 = vmatpush1.msra.mxu0 %v2193
    %2214 = vmatprep.subr.mxu0 0.0
    %2215 = vmatpush1.msra.mxu0 %v2194
    %2216 = vmatprep.subr.mxu0 0.0
    %2217 = vmatpush1.msra.mxu0 %v2195
    %2218 = vmatprep.subr.mxu0 0.0
    %2219 = vmatpush1.msra.mxu0 0.0
    %2220 = vmatprep.subr.mxu0 0.0
    %2221 = vmatpush1.msra.mxu0 0.0
    %2222 = vmatprep.subr.mxu0 0.0
    %2223 = vmatpush1.msra.mxu0 0.0
    %2224 = vmatprep.subr.mxu0 0.0
    %2225 = vmatpush1.msra.mxu0 0.0
    %2226 = vmatprep.subr.mxu0 0.0
    %2227 = vmatpush1.msra.mxu0 0.0
    %2228 = vmatprep.subr.mxu0 0.0
    %2229 = vmatpush1.msra.mxu0 0.0
    %2230 = vmatprep.subr.mxu0 0.0
    %2231 = vmatpush1.msra.mxu0 0.0
    %2232 = vmatprep.subr.mxu0 0.0
    %2233 = vmatpush1.msra.mxu0 0.0
    %2234 = vmatprep.subr.mxu0 0.0
    %2235 = vmatpush1.msra.mxu0 0.0
    %2236 = vmatprep.subr.mxu0 0.0
    %2237 = vmatpush1.msra.mxu0 0.0
    %2238 = vmatprep.subr.mxu0 0.0
    %2239 = vmatpush1.msra.mxu0 0.0
    %2240 = vmatprep.subr.mxu0 0.0
    %2241 = vmatpush1.msra.mxu0 0.0
    %2242 = vmatprep.subr.mxu0 0.0
    %2243 = vmatpush1.msra.mxu0 0.0
    %2244 = vmatprep.subr.mxu0 0.0
    %2245 = vmatpush1.msra.mxu0 0.0
    %2246 = vmatprep.subr.mxu0 0.0
    %2247 = vmatpush1.msra.mxu0 0.0
    %2248 = vmatprep.subr.mxu0 0.0
    %2249 = vmatpush1.msra.mxu0 0.0
    %2250 = vmatprep.subr.mxu0 0.0
    %2251 = vmatpush1.msra.mxu0 0.0
    %2252 = vmatprep.subr.mxu0 0.0
    %2253 = vmatpush1.msra.mxu0 0.0
    %2254 = vmatprep.subr.mxu0 0.0
    %2255 = vmatpush1.msra.mxu0 0.0
    %2256 = vmatprep.subr.mxu0 0.0
    %2257 = vmatpush1.msra.mxu0 0.0
    %2258 = vmatprep.subr.mxu0 0.0
    %2259 = vmatpush1.msra.mxu0 0.0
    %2260 = vmatprep.subr.mxu0 0.0
    %2261 = vmatpush1.msra.mxu0 0.0
    %2262 = vmatprep.subr.mxu0 0.0
    %2263 = vmatpush1.msra.mxu0 0.0
    %2264 = vmatprep.subr.mxu0 0.0
    %2265 = vmatpush1.msra.mxu0 0.0
    %2266 = vmatprep.subr.mxu0 0.0
    %2267 = vmatpush1.msra.mxu0 0.0
    %2268 = vmatprep.subr.mxu0 0.0
    %2269 = vmatpush1.msra.mxu0 0.0
    %2270 = vmatprep.subr.mxu0 0.0
    %2271 = vmatpush1.msra.mxu0 0.0
    %2272 = vmatprep.subr.mxu0 0.0
    %2273 = vmatpush1.msra.mxu0 0.0
    %2274 = vmatprep.mubr.f32.mxu0 0.0
    %2275 = vmatmul.mubr.f32.gmra.mrb[0].mxu0 %v2205
    %v2276 = vpop.f32.mrb[0].mxu0
    %v2277 = vadd.f32 %v2202, %v2276
    %v2278 = vpop.f32.mrb[0].mxu0
    %2279 = vmatprep.mubr.f32.mxu0 0.0
    %2280 = vmatmul.mubr.f32.gmra.mrb[0].mxu0 %v2208
    %v2281 = vpop.f32.mrb[0].mxu0
    %v2282 = vadd.f32 %v2202, %v2281
    %v2283 = vpop.f32.mrb[0].mxu0
    %2284 = vdwg.mxu0
    %v2285 = vmul.f32 %v2277, 0.35355338
    %v2286 = vmul.f32 %v2282, 0.35355338
    %s2287 = scalar_lea.vmem %s6, 32
    %v2288 = vld [vmem:[%s2287] sm:$0xff]
    %v2289 = vld [vmem:[%s2287 + $0x8] sm:$0xff]
    %v2290 = vld [vmem:[%s2287 + $0x10] sm:$0xff]
    %v2291 = vld [vmem:[%s2287 + $0x18] sm:$0xff]
    %s2292 = scalar_lea.vmem %s7, 1
    %v2293 = vld [vmem:[%s2292] sm:$0x1]
    %v2295 = vlaneseq
    %v2296 = vshrl.u32 %v2295, 7
    %v2297 = vsub.s32 0, %v2296
    %v2298 = vrot.slane %v2293, %v2297
    %2300 = vmatprep.subr.mxu0 0.0
    %2301 = vmatpush1.msra.mxu0 %v2288
    %2302 = vmatprep.subr.mxu0 0.0
    %2303 = vmatpush1.msra.mxu0 %v2289
    %2304 = vmatprep.subr.mxu0 0.0
    %2305 = vmatpush1.msra.mxu0 %v2290
    %2306 = vmatprep.subr.mxu0 0.0
    %2307 = vmatpush1.msra.mxu0 %v2291
    %2308 = vmatprep.subr.mxu0 0.0
    %2309 = vmatpush1.msra.mxu0 0.0
    %2310 = vmatprep.subr.mxu0 0.0
    %2311 = vmatpush1.msra.mxu0 0.0
    %2312 = vmatprep.subr.mxu0 0.0
    %2313 = vmatpush1.msra.mxu0 0.0
    %2314 = vmatprep.subr.mxu0 0.0
    %2315 = vmatpush1.msra.mxu0 0.0
    %2316 = vmatprep.subr.mxu0 0.0
    %2317 = vmatpush1.msra.mxu0 0.0
    %2318 = vmatprep.subr.mxu0 0.0
    %2319 = vmatpush1.msra.mxu0 0.0
    %2320 = vmatprep.subr.mxu0 0.0
    %2321 = vmatpush1.msra.mxu0 0.0
    %2322 = vmatprep.subr.mxu0 0.0
    %2323 = vmatpush1.msra.mxu0 0.0
    %2324 = vmatprep.subr.mxu0 0.0
    %2325 = vmatpush1.msra.mxu0 0.0
    %2326 = vmatprep.subr.mxu0 0.0
    %2327 = vmatpush1.msra.mxu0 0.0
    %2328 = vmatprep.subr.mxu0 0.0
    %2329 = vmatpush1.msra.mxu0 0.0
    %2330 = vmatprep.subr.mxu0 0.0
    %2331 = vmatpush1.msra.mxu0 0.0
    %2332 = vmatprep.subr.mxu0 0.0
    %2333 = vmatpush1.msra.mxu0 0.0
    %2334 = vmatprep.subr.mxu0 0.0
    %2335 = vmatpush1.msra.mxu0 0.0
    %2336 = vmatprep.subr.mxu0 0.0
    %2337 = vmatpush1.msra.mxu0 0.0
    %2338 = vmatprep.subr.mxu0 0.0
    %2339 = vmatpush1.msra.mxu0 0.0
    %2340 = vmatprep.subr.mxu0 0.0
    %2341 = vmatpush1.msra.mxu0 0.0
    %2342 = vmatprep.subr.mxu0 0.0
    %2343 = vmatpush1.msra.mxu0 0.0
    %2344 = vmatprep.subr.mxu0 0.0
    %2345 = vmatpush1.msra.mxu0 0.0
    %2346 = vmatprep.subr.mxu0 0.0
    %2347 = vmatpush1.msra.mxu0 0.0
    %2348 = vmatprep.subr.mxu0 0.0
    %2349 = vmatpush1.msra.mxu0 0.0
    %2350 = vmatprep.subr.mxu0 0.0
    %2351 = vmatpush1.msra.mxu0 0.0
    %2352 = vmatprep.subr.mxu0 0.0
    %2353 = vmatpush1.msra.mxu0 0.0
    %2354 = vmatprep.subr.mxu0 0.0
    %2355 = vmatpush1.msra.mxu0 0.0
    %2356 = vmatprep.subr.mxu0 0.0
    %2357 = vmatpush1.msra.mxu0 0.0
    %2358 = vmatprep.subr.mxu0 0.0
    %2359 = vmatpush1.msra.mxu0 0.0
    %2360 = vmatprep.subr.mxu0 0.0
    %2361 = vmatpush1.msra.mxu0 0.0
    %2362 = vmatprep.subr.mxu0 0.0
    %2363 = vmatpush1.msra.mxu0 0.0
    %2364 = vmatprep.mubr.f32.mxu0 0.0
    %2365 = vmatmul.mubr.f32.gmra.mrb[0].mxu0 %v2205
    %v2366 = vpop.f32.mrb[0].mxu0
    %v2367 = vadd.f32 %v2298, %v2366
    %v2368 = vpop.f32.mrb[0].mxu0
    %2369 = vmatprep.mubr.f32.mxu0 0.0
    %2370 = vmatmul.mubr.f32.gmra.mrb[0].mxu0 %v2208
    %v2371 = vpop.f32.mrb[0].mxu0
    %v2372 = vadd.f32 %v2298, %v2371
    %v2373 = vpop.f32.mrb[0].mxu0
    %2374 = vdwg.mxu0
    %s2375 = scalar_lea.vmem %s8, 32
    %v2376 = vld [vmem:[%s2375] sm:$0xff]
    %v2377 = vld [vmem:[%s2375 + $0x8] sm:$0xff]
    %v2378 = vld [vmem:[%s2375 + $0x10] sm:$0xff]
    %v2379 = vld [vmem:[%s2375 + $0x18] sm:$0xff]
    %s2380 = scalar_lea.vmem %s9, 1
    %v2381 = vld [vmem:[%s2380] sm:$0x1]
    %v2383 = vlaneseq
    %v2384 = vshrl.u32 %v2383, 7
    %v2385 = vsub.s32 0, %v2384
    %v2386 = vrot.slane %v2381, %v2385
    %2388 = vmatprep.subr.mxu0 0.0
    %2389 = vmatpush1.msra.mxu0 %v2376
    %2390 = vmatprep.subr.mxu0 0.0
    %2391 = vmatpush1.msra.mxu0 %v2377
    %2392 = vmatprep.subr.mxu0 0.0
    %2393 = vmatpush1.msra.mxu0 %v2378
    %2394 = vmatprep.subr.mxu0 0.0
    %2395 = vmatpush1.msra.mxu0 %v2379
    %2396 = vmatprep.subr.mxu0 0.0
    %2397 = vmatpush1.msra.mxu0 0.0
    %2398 = vmatprep.subr.mxu0 0.0
    %2399 = vmatpush1.msra.mxu0 0.0
    %2400 = vmatprep.subr.mxu0 0.0
    %2401 = vmatpush1.msra.mxu0 0.0
    %2402 = vmatprep.subr.mxu0 0.0
    %2403 = vmatpush1.msra.mxu0 0.0
    %2404 = vmatprep.subr.mxu0 0.0
    %2405 = vmatpush1.msra.mxu0 0.0
    %2406 = vmatprep.subr.mxu0 0.0
    %2407 = vmatpush1.msra.mxu0 0.0
    %2408 = vmatprep.subr.mxu0 0.0
    %2409 = vmatpush1.msra.mxu0 0.0
    %2410 = vmatprep.subr.mxu0 0.0
    %2411 = vmatpush1.msra.mxu0 0.0
    %2412 = vmatprep.subr.mxu0 0.0
    %2413 = vmatpush1.msra.mxu0 0.0
    %2414 = vmatprep.subr.mxu0 0.0
    %2415 = vmatpush1.msra.mxu0 0.0
    %2416 = vmatprep.subr.mxu0 0.0
    %2417 = vmatpush1.msra.mxu0 0.0
    %2418 = vmatprep.subr.mxu0 0.0
    %2419 = vmatpush1.msra.mxu0 0.0
    %2420 = vmatprep.subr.mxu0 0.0
    %2421 = vmatpush1.msra.mxu0 0.0
    %2422 = vmatprep.subr.mxu0 0.0
    %2423 = vmatpush1.msra.mxu0 0.0
    %2424 = vmatprep.subr.mxu0 0.0
    %2425 = vmatpush1.msra.mxu0 0.0
    %2426 = vmatprep.subr.mxu0 0.0
    %2427 = vmatpush1.msra.mxu0 0.0
    %2428 = vmatprep.subr.mxu0 0.0
    %2429 = vmatpush1.msra.mxu0 0.0
    %2430 = vmatprep.subr.mxu0 0.0
    %2431 = vmatpush1.msra.mxu0 0.0
    %2432 = vmatprep.subr.mxu0 0.0
    %2433 = vmatpush1.msra.mxu0 0.0
    %2434 = vmatprep.subr.mxu0 0.0
    %2435 = vmatpush1.msra.mxu0 0.0
    %2436 = vmatprep.subr.mxu0 0.0
    %2437 = vmatpush1.msra.mxu0 0.0
    %2438 = vmatprep.subr.mxu0 0.0
    %2439 = vmatpush1.msra.mxu0 0.0
    %2440 = vmatprep.subr.mxu0 0.0
    %2441 = vmatpush1.msra.mxu0 0.0
    %2442 = vmatprep.subr.mxu0 0.0
    %2443 = vmatpush1.msra.mxu0 0.0
    %2444 = vmatprep.subr.mxu0 0.0
    %2445 = vmatpush1.msra.mxu0 0.0
    %2446 = vmatprep.subr.mxu0 0.0
    %2447 = vmatpush1.msra.mxu0 0.0
    %2448 = vmatprep.subr.mxu0 0.0
    %2449 = vmatpush1.msra.mxu0 0.0
    %2450 = vmatprep.subr.mxu0 0.0
    %2451 = vmatpush1.msra.mxu0 0.0
    %2452 = vmatprep.mubr.f32.mxu0 0.0
    %2453 = vmatmul.mubr.f32.gmra.mrb[0].mxu0 %v2205
    %v2454 = vpop.f32.mrb[0].mxu0
    %v2455 = vadd.f32 %v2386, %v2454
    %v2456 = vpop.f32.mrb[0].mxu0
    %2457 = vmatprep.mubr.f32.mxu0 0.0
    %2458 = vmatmul.mubr.f32.gmra.mrb[0].mxu0 %v2208
    %v2459 = vpop.f32.mrb[0].mxu0
    %v2460 = vadd.f32 %v2386, %v2459
    %v2461 = vpop.f32.mrb[0].mxu0
    %2462 = vdwg.mxu0
    %v2464 = vsel %vm451, %v2285, 0
    %v2467 = vsel %vm451, %v2367, 0
    %2469 = vmatprep.subr.mxu0 0.0
    %2470 = vmatpush1.xpose.msra.mxu0 %v2467
    %2471 = vmatprep.subr.mxu0 0.0
    %2472 = vmatpush1.xpose.msra.mxu0 0.0
    %2473 = vmatprep.subr.mxu0 0.0
    %2474 = vmatpush1.xpose.msra.mxu0 0.0
    %2475 = vmatprep.subr.mxu0 0.0
    %2476 = vmatpush1.xpose.msra.mxu0 0.0
    %2477 = vmatprep.subr.mxu0 0.0
    %2478 = vmatpush1.xpose.msra.mxu0 0.0
    %2479 = vmatprep.subr.mxu0 0.0
    %2480 = vmatpush1.xpose.msra.mxu0 0.0
    %2481 = vmatprep.subr.mxu0 0.0
    %2482 = vmatpush1.xpose.msra.mxu0 0.0
    %2483 = vmatprep.subr.mxu0 0.0
    %2484 = vmatpush1.xpose.msra.mxu0 0.0
    %2485 = vmatprep.subr.mxu0 0.0
    %2486 = vmatpush1.xpose.msra.mxu0 0.0
    %2487 = vmatprep.subr.mxu0 0.0
    %2488 = vmatpush1.xpose.msra.mxu0 0.0
    %2489 = vmatprep.subr.mxu0 0.0
    %2490 = vmatpush1.xpose.msra.mxu0 0.0
    %2491 = vmatprep.subr.mxu0 0.0
    %2492 = vmatpush1.xpose.msra.mxu0 0.0
    %2493 = vmatprep.subr.mxu0 0.0
    %2494 = vmatpush1.xpose.msra.mxu0 0.0
    %2495 = vmatprep.subr.mxu0 0.0
    %2496 = vmatpush1.xpose.msra.mxu0 0.0
    %2497 = vmatprep.subr.mxu0 0.0
    %2498 = vmatpush1.xpose.msra.mxu0 0.0
    %2499 = vmatprep.subr.mxu0 0.0
    %2500 = vmatpush1.xpose.msra.mxu0 0.0
    %2501 = vmatprep.subr.mxu0 0.0
    %2502 = vmatpush1.xpose.msra.mxu0 0.0
    %2503 = vmatprep.subr.mxu0 0.0
    %2504 = vmatpush1.xpose.msra.mxu0 0.0
    %2505 = vmatprep.subr.mxu0 0.0
    %2506 = vmatpush1.xpose.msra.mxu0 0.0
    %2507 = vmatprep.subr.mxu0 0.0
    %2508 = vmatpush1.xpose.msra.mxu0 0.0
    %2509 = vmatprep.subr.mxu0 0.0
    %2510 = vmatpush1.xpose.msra.mxu0 0.0
    %2511 = vmatprep.subr.mxu0 0.0
    %2512 = vmatpush1.xpose.msra.mxu0 0.0
    %2513 = vmatprep.subr.mxu0 0.0
    %2514 = vmatpush1.xpose.msra.mxu0 0.0
    %2515 = vmatprep.subr.mxu0 0.0
    %2516 = vmatpush1.xpose.msra.mxu0 0.0
    %2517 = vmatprep.subr.mxu0 0.0
    %2518 = vmatpush1.xpose.msra.mxu0 0.0
    %2519 = vmatprep.subr.mxu0 0.0
    %2520 = vmatpush1.xpose.msra.mxu0 0.0
    %2521 = vmatprep.subr.mxu0 0.0
    %2522 = vmatpush1.xpose.msra.mxu0 0.0
    %2523 = vmatprep.subr.mxu0 0.0
    %2524 = vmatpush1.xpose.msra.mxu0 0.0
    %2525 = vmatprep.subr.mxu0 0.0
    %2526 = vmatpush1.xpose.msra.mxu0 0.0
    %2527 = vmatprep.subr.mxu0 0.0
    %2528 = vmatpush1.xpose.msra.mxu0 0.0
    %2529 = vmatprep.subr.mxu0 0.0
    %2530 = vmatpush1.xpose.msra.mxu0 0.0
    %2531 = vmatprep.subr.mxu0 0.0
    %2532 = vmatpush1.xpose.msra.mxu0 0.0
    %2533 = vmatprep.mubr.f32.mxu0 0.0
    %2534 = vmatmul.mubr.f32.gmra.mrb[0].mxu0 %v2464
    %v2535 = vpop.f32.mrb[0].mxu0
    %v2536 = vadd.f32 %v450, %v2535
    %v2537 = vpop.f32.mrb[0].mxu0
    %2538 = vdwg.mxu0
    %v2539 = vsel %vm451, %v2536, -inf
    %2540 = vmax.xlane.f32.xlu0 %v2539
    %v2541 = vpop.xlane.xlu0 %2540
    %v2542 = vsub.f32 %v2536, %v2541
    %v2543 = vmul.f32 %v2542, 1.442695
    %v2544 = vpow.pop %v2543
    %v2545 = vsel %vm451, %v2544, 0.0
    %2546 = vadd.xlane.f32.xlu0 %v2545
    %v2547 = vpop.xlane.xlu0 %2546
    %v2548 = vrcp.pop %v2547
    %v2549 = vmul.f32 %v2544, %v2548
    %v2551 = vsel %vm451, %v2549, 0
    %2553 = vmatprep.subr.mxu0 0.0
    %2554 = vmatpush1.msra.mxu0 %v2455
    %2555 = vmatprep.subr.mxu0 0.0
    %2556 = vmatpush1.msra.mxu0 0.0
    %2557 = vmatprep.subr.mxu0 0.0
    %2558 = vmatpush1.msra.mxu0 0.0
    %2559 = vmatprep.subr.mxu0 0.0
    %2560 = vmatpush1.msra.mxu0 0.0
    %2561 = vmatprep.subr.mxu0 0.0
    %2562 = vmatpush1.msra.mxu0 0.0
    %2563 = vmatprep.subr.mxu0 0.0
    %2564 = vmatpush1.msra.mxu0 0.0
    %2565 = vmatprep.subr.mxu0 0.0
    %2566 = vmatpush1.msra.mxu0 0.0
    %2567 = vmatprep.subr.mxu0 0.0
    %2568 = vmatpush1.msra.mxu0 0.0
    %2569 = vmatprep.subr.mxu0 0.0
    %2570 = vmatpush1.msra.mxu0 0.0
    %2571 = vmatprep.subr.mxu0 0.0
    %2572 = vmatpush1.msra.mxu0 0.0
    %2573 = vmatprep.subr.mxu0 0.0
    %2574 = vmatpush1.msra.mxu0 0.0
    %2575 = vmatprep.subr.mxu0 0.0
    %2576 = vmatpush1.msra.mxu0 0.0
    %2577 = vmatprep.subr.mxu0 0.0
    %2578 = vmatpush1.msra.mxu0 0.0
    %2579 = vmatprep.subr.mxu0 0.0
    %2580 = vmatpush1.msra.mxu0 0.0
    %2581 = vmatprep.subr.mxu0 0.0
    %2582 = vmatpush1.msra.mxu0 0.0
    %2583 = vmatprep.subr.mxu0 0.0
    %2584 = vmatpush1.msra.mxu0 0.0
    %2585 = vmatprep.subr.mxu0 0.0
    %2586 = vmatpush1.msra.mxu0 0.0
    %2587 = vmatprep.subr.mxu0 0.0
    %2588 = vmatpush1.msra.mxu0 0.0
    %2589 = vmatprep.subr.mxu0 0.0
    %2590 = vmatpush1.msra.mxu0 0.0
    %2591 = vmatprep.subr.mxu0 0.0
    %2592 = vmatpush1.msra.mxu0 0.0
    %2593 = vmatprep.subr.mxu0 0.0
    %2594 = vmatpush1.msra.mxu0 0.0
    %2595 = vmatprep.subr.mxu0 0.0
    %2596 = vmatpush1.msra.mxu0 0.0
    %2597 = vmatprep.subr.mxu0 0.0
    %2598 = vmatpush1.msra.mxu0 0.0
    %2599 = vmatprep.subr.mxu0 0.0
    %2600 = vmatpush1.msra.mxu0 0.0
    %2601 = vmatprep.subr.mxu0 0.0
    %2602 = vmatpush1.msra.mxu0 0.0
    %2603 = vmatprep.subr.mxu0 0.0
    %2604 = vmatpush1.msra.mxu0 0.0
    %2605 = vmatprep.subr.mxu0 0.0
    %2606 = vmatpush1.msra.mxu0 0.0
    %2607 = vmatprep.subr.mxu0 0.0
    %2608 = vmatpush1.msra.mxu0 0.0
    %2609 = vmatprep.subr.mxu0 0.0
    %2610 = vmatpush1.msra.mxu0 0.0
    %2611 = vmatprep.subr.mxu0 0.0
    %2612 = vmatpush1.msra.mxu0 0.0
    %2613 = vmatprep.subr.mxu0 0.0
    %2614 = vmatpush1.msra.mxu0 0.0
    %2615 = vmatprep.subr.mxu0 0.0
    %2616 = vmatpush1.msra.mxu0 0.0
    %2617 = vmatprep.mubr.f32.mxu0 0.0
    %2618 = vmatmul.mubr.f32.gmra.mrb[0].mxu0 %v2551
    %v2619 = vpop.f32.mrb[0].mxu0
    %v2620 = vadd.f32 0.0, %v2619
    %v2621 = vpop.f32.mrb[0].mxu0
    %2622 = vdwg.mxu0
    %2623 = vrot.lane.b32.xlu0 %v2285, 120
    %v2624 = vpop.permute.xlu0 %2623
    %2625 = vrot.lane.b32.xlu0 %v2367, 120
    %v2626 = vpop.permute.xlu0 %2625
    %v2627 = vsel %vm451, %v2624, 0
    %v2629 = vsel %vm451, %v2626, 0
    %2631 = vmatprep.subr.mxu0 0.0
    %2632 = vmatpush1.xpose.msra.mxu0 %v2629
    %2633 = vmatprep.subr.mxu0 0.0
    %2634 = vmatpush1.xpose.msra.mxu0 0.0
    %2635 = vmatprep.subr.mxu0 0.0
    %2636 = vmatpush1.xpose.msra.mxu0 0.0
    %2637 = vmatprep.subr.mxu0 0.0
    %2638 = vmatpush1.xpose.msra.mxu0 0.0
    %2639 = vmatprep.subr.mxu0 0.0
    %2640 = vmatpush1.xpose.msra.mxu0 0.0
    %2641 = vmatprep.subr.mxu0 0.0
    %2642 = vmatpush1.xpose.msra.mxu0 0.0
    %2643 = vmatprep.subr.mxu0 0.0
    %2644 = vmatpush1.xpose.msra.mxu0 0.0
    %2645 = vmatprep.subr.mxu0 0.0
    %2646 = vmatpush1.xpose.msra.mxu0 0.0
    %2647 = vmatprep.subr.mxu0 0.0
    %2648 = vmatpush1.xpose.msra.mxu0 0.0
    %2649 = vmatprep.subr.mxu0 0.0
    %2650 = vmatpush1.xpose.msra.mxu0 0.0
    %2651 = vmatprep.subr.mxu0 0.0
    %2652 = vmatpush1.xpose.msra.mxu0 0.0
    %2653 = vmatprep.subr.mxu0 0.0
    %2654 = vmatpush1.xpose.msra.mxu0 0.0
    %2655 = vmatprep.subr.mxu0 0.0
    %2656 = vmatpush1.xpose.msra.mxu0 0.0
    %2657 = vmatprep.subr.mxu0 0.0
    %2658 = vmatpush1.xpose.msra.mxu0 0.0
    %2659 = vmatprep.subr.mxu0 0.0
    %2660 = vmatpush1.xpose.msra.mxu0 0.0
    %2661 = vmatprep.subr.mxu0 0.0
    %2662 = vmatpush1.xpose.msra.mxu0 0.0
    %2663 = vmatprep.subr.mxu0 0.0
    %2664 = vmatpush1.xpose.msra.mxu0 0.0
    %2665 = vmatprep.subr.mxu0 0.0
    %2666 = vmatpush1.xpose.msra.mxu0 0.0
    %2667 = vmatprep.subr.mxu0 0.0
    %2668 = vmatpush1.xpose.msra.mxu0 0.0
    %2669 = vmatprep.subr.mxu0 0.0
    %2670 = vmatpush1.xpose.msra.mxu0 0.0
    %2671 = vmatprep.subr.mxu0 0.0
    %2672 = vmatpush1.xpose.msra.mxu0 0.0
    %2673 = vmatprep.subr.mxu0 0.0
    %2674 = vmatpush1.xpose.msra.mxu0 0.0
    %2675 = vmatprep.subr.mxu0 0.0
    %2676 = vmatpush1.xpose.msra.mxu0 0.0
    %2677 = vmatprep.subr.mxu0 0.0
    %2678 = vmatpush1.xpose.msra.mxu0 0.0
    %2679 = vmatprep.subr.mxu0 0.0
    %2680 = vmatpush1.xpose.msra.mxu0 0.0
    %2681 = vmatprep.subr.mxu0 0.0
    %2682 = vmatpush1.xpose.msra.mxu0 0.0
    %2683 = vmatprep.subr.mxu0 0.0
    %2684 = vmatpush1.xpose.msra.mxu0 0.0
    %2685 = vmatprep.subr.mxu0 0.0
    %2686 = vmatpush1.xpose.msra.mxu0 0.0
    %2687 = vmatprep.subr.mxu0 0.0
    %2688 = vmatpush1.xpose.msra.mxu0 0.0
    %2689 = vmatprep.subr.mxu0 0.0
    %2690 = vmatpush1.xpose.msra.mxu0 0.0
    %2691 = vmatprep.subr.mxu0 0.0
    %2692 = vmatpush1.xpose.msra.mxu0 0.0
    %2693 = vmatprep.subr.mxu0 0.0
    %2694 = vmatpush1.xpose.msra.mxu0 0.0
    %2695 = vmatprep.mubr.f32.mxu0 0.0
    %2696 = vmatmul.mubr.f32.gmra.mrb[0].mxu0 %v2627
    %v2697 = vpop.f32.mrb[0].mxu0
    %v2698 = vadd.f32 %v450, %v2697
    %v2699 = vpop.f32.mrb[0].mxu0
    %2700 = vdwg.mxu0
    %v2701 = vsel %vm451, %v2698, -inf
    %2702 = vmax.xlane.f32.xlu0 %v2701
    %v2703 = vpop.xlane.xlu0 %2702
    %v2704 = vsub.f32 %v2698, %v2703
    %v2705 = vmul.f32 %v2704, 1.442695
    %v2706 = vpow.pop %v2705
    %v2707 = vsel %vm451, %v2706, 0.0
    %2708 = vadd.xlane.f32.xlu0 %v2707
    %v2709 = vpop.xlane.xlu0 %2708
    %v2710 = vrcp.pop %v2709
    %v2711 = vmul.f32 %v2706, %v2710
    %2713 = vrot.lane.b32.xlu0 %v2455, 120
    %v2714 = vpop.permute.xlu0 %2713
    %v2717 = vsel %vm451, %v2711, 0
    %2719 = vmatprep.subr.mxu0 0.0
    %2720 = vmatpush1.msra.mxu0 %v2714
    %2721 = vmatprep.subr.mxu0 0.0
    %2722 = vmatpush1.msra.mxu0 0.0
    %2723 = vmatprep.subr.mxu0 0.0
    %2724 = vmatpush1.msra.mxu0 0.0
    %2725 = vmatprep.subr.mxu0 0.0
    %2726 = vmatpush1.msra.mxu0 0.0
    %2727 = vmatprep.subr.mxu0 0.0
    %2728 = vmatpush1.msra.mxu0 0.0
    %2729 = vmatprep.subr.mxu0 0.0
    %2730 = vmatpush1.msra.mxu0 0.0
    %2731 = vmatprep.subr.mxu0 0.0
    %2732 = vmatpush1.msra.mxu0 0.0
    %2733 = vmatprep.subr.mxu0 0.0
    %2734 = vmatpush1.msra.mxu0 0.0
    %2735 = vmatprep.subr.mxu0 0.0
    %2736 = vmatpush1.msra.mxu0 0.0
    %2737 = vmatprep.subr.mxu0 0.0
    %2738 = vmatpush1.msra.mxu0 0.0
    %2739 = vmatprep.subr.mxu0 0.0
    %2740 = vmatpush1.msra.mxu0 0.0
    %2741 = vmatprep.subr.mxu0 0.0
    %2742 = vmatpush1.msra.mxu0 0.0
    %2743 = vmatprep.subr.mxu0 0.0
    %2744 = vmatpush1.msra.mxu0 0.0
    %2745 = vmatprep.subr.mxu0 0.0
    %2746 = vmatpush1.msra.mxu0 0.0
    %2747 = vmatprep.subr.mxu0 0.0
    %2748 = vmatpush1.msra.mxu0 0.0
    %2749 = vmatprep.subr.mxu0 0.0
    %2750 = vmatpush1.msra.mxu0 0.0
    %2751 = vmatprep.subr.mxu0 0.0
    %2752 = vmatpush1.msra.mxu0 0.0
    %2753 = vmatprep.subr.mxu0 0.0
    %2754 = vmatpush1.msra.mxu0 0.0
    %2755 = vmatprep.subr.mxu0 0.0
    %2756 = vmatpush1.msra.mxu0 0.0
    %2757 = vmatprep.subr.mxu0 0.0
    %2758 = vmatpush1.msra.mxu0 0.0
    %2759 = vmatprep.subr.mxu0 0.0
    %2760 = vmatpush1.msra.mxu0 0.0
    %2761 = vmatprep.subr.mxu0 0.0
    %2762 = vmatpush1.msra.mxu0 0.0
    %2763 = vmatprep.subr.mxu0 0.0
    %2764 = vmatpush1.msra.mxu0 0.0
    %2765 = vmatprep.subr.mxu0 0.0
    %2766 = vmatpush1.msra.mxu0 0.0
    %2767 = vmatprep.subr.mxu0 0.0
    %2768 = vmatpush1.msra.mxu0 0.0
    %2769 = vmatprep.subr.mxu0 0.0
    %2770 = vmatpush1.msra.mxu0 0.0
    %2771 = vmatprep.subr.mxu0 0.0
    %2772 = vmatpush1.msra.mxu0 0.0
    %2773 = vmatprep.subr.mxu0 0.0
    %2774 = vmatpush1.msra.mxu0 0.0
    %2775 = vmatprep.subr.mxu0 0.0
    %2776 = vmatpush1.msra.mxu0 0.0
    %2777 = vmatprep.subr.mxu0 0.0
    %2778 = vmatpush1.msra.mxu0 0.0
    %2779 = vmatprep.subr.mxu0 0.0
    %2780 = vmatpush1.msra.mxu0 0.0
    %2781 = vmatprep.subr.mxu0 0.0
    %2782 = vmatpush1.msra.mxu0 0.0
    %2783 = vmatprep.mubr.f32.mxu0 0.0
    %2784 = vmatmul.mubr.f32.gmra.mrb[0].mxu0 %v2717
    %v2785 = vpop.f32.mrb[0].mxu0
    %v2786 = vadd.f32 0.0, %v2785
    %v2787 = vpop.f32.mrb[0].mxu0
    %2788 = vdwg.mxu0
    %2789 = vrot.lane.b32.xlu0 %v2285, 112
    %v2790 = vpop.permute.xlu0 %2789
    %2791 = vrot.lane.b32.xlu0 %v2367, 112
    %v2792 = vpop.permute.xlu0 %2791
    %v2793 = vsel %vm451, %v2790, 0
    %v2795 = vsel %vm451, %v2792, 0
    %2797 = vmatprep.subr.mxu0 0.0
    %2798 = vmatpush1.xpose.msra.mxu0 %v2795
    %2799 = vmatprep.subr.mxu0 0.0
    %2800 = vmatpush1.xpose.msra.mxu0 0.0
    %2801 = vmatprep.subr.mxu0 0.0
    %2802 = vmatpush1.xpose.msra.mxu0 0.0
    %2803 = vmatprep.subr.mxu0 0.0
    %2804 = vmatpush1.xpose.msra.mxu0 0.0
    %2805 = vmatprep.subr.mxu0 0.0
    %2806 = vmatpush1.xpose.msra.mxu0 0.0
    %2807 = vmatprep.subr.mxu0 0.0
    %2808 = vmatpush1.xpose.msra.mxu0 0.0
    %2809 = vmatprep.subr.mxu0 0.0
    %2810 = vmatpush1.xpose.msra.mxu0 0.0
    %2811 = vmatprep.subr.mxu0 0.0
    %2812 = vmatpush1.xpose.msra.mxu0 0.0
    %2813 = vmatprep.subr.mxu0 0.0
    %2814 = vmatpush1.xpose.msra.mxu0 0.0
    %2815 = vmatprep.subr.mxu0 0.0
    %2816 = vmatpush1.xpose.msra.mxu0 0.0
    %2817 = vmatprep.subr.mxu0 0.0
    %2818 = vmatpush1.xpose.msra.mxu0 0.0
    %2819 = vmatprep.subr.mxu0 0.0
    %2820 = vmatpush1.xpose.msra.mxu0 0.0
    %2821 = vmatprep.subr.mxu0 0.0
    %2822 = vmatpush1.xpose.msra.mxu0 0.0
    %2823 = vmatprep.subr.mxu0 0.0
    %2824 = vmatpush1.xpose.msra.mxu0 0.0
    %2825 = vmatprep.subr.mxu0 0.0
    %2826 = vmatpush1.xpose.msra.mxu0 0.0
    %2827 = vmatprep.subr.mxu0 0.0
    %2828 = vmatpush1.xpose.msra.mxu0 0.0
    %2829 = vmatprep.subr.mxu0 0.0
    %2830 = vmatpush1.xpose.msra.mxu0 0.0
    %2831 = vmatprep.subr.mxu0 0.0
    %2832 = vmatpush1.xpose.msra.mxu0 0.0
    %2833 = vmatprep.subr.mxu0 0.0
    %2834 = vmatpush1.xpose.msra.mxu0 0.0
    %2835 = vmatprep.subr.mxu0 0.0
    %2836 = vmatpush1.xpose.msra.mxu0 0.0
    %2837 = vmatprep.subr.mxu0 0.0
    %2838 = vmatpush1.xpose.msra.mxu0 0.0
    %2839 = vmatprep.subr.mxu0 0.0
    %2840 = vmatpush1.xpose.msra.mxu0 0.0
    %2841 = vmatprep.subr.mxu0 0.0
    %2842 = vmatpush1.xpose.msra.mxu0 0.0
    %2843 = vmatprep.subr.mxu0 0.0
    %2844 = vmatpush1.xpose.msra.mxu0 0.0
    %2845 = vmatprep.subr.mxu0 0.0
    %2846 = vmatpush1.xpose.msra.mxu0 0.0
    %2847 = vmatprep.subr.mxu0 0.0
    %2848 = vmatpush1.xpose.msra.mxu0 0.0
    %2849 = vmatprep.subr.mxu0 0.0
    %2850 = vmatpush1.xpose.msra.mxu0 0.0
    %2851 = vmatprep.subr.mxu0 0.0
    %2852 = vmatpush1.xpose.msra.mxu0 0.0
    %2853 = vmatprep.subr.mxu0 0.0
    %2854 = vmatpush1.xpose.msra.mxu0 0.0
    %2855 = vmatprep.subr.mxu0 0.0
    %2856 = vmatpush1.xpose.msra.mxu0 0.0
    %2857 = vmatprep.subr.mxu0 0.0
    %2858 = vmatpush1.xpose.msra.mxu0 0.0
    %2859 = vmatprep.subr.mxu0 0.0
    %2860 = vmatpush1.xpose.msra.mxu0 0.0
    %2861 = vmatprep.mubr.f32.mxu0 0.0
    %2862 = vmatmul.mubr.f32.gmra.mrb[0].mxu0 %v2793
    %v2863 = vpop.f32.mrb[0].mxu0
    %v2864 = vadd.f32 %v450, %v2863
    %v2865 = vpop.f32.mrb[0].mxu0
    %2866 = vdwg.mxu0
    %v2867 = vsel %vm451, %v2864, -inf
    %2868 = vmax.xlane.f32.xlu0 %v2867
    %v2869 = vpop.xlane.xlu0 %2868
    %v2870 = vsub.f32 %v2864, %v2869
    %v2871 = vmul.f32 %v2870, 1.442695
    %v2872 = vpow.pop %v2871
    %v2873 = vsel %vm451, %v2872, 0.0
    %2874 = vadd.xlane.f32.xlu0 %v2873
    %v2875 = vpop.xlane.xlu0 %2874
    %v2876 = vrcp.pop %v2875
    %v2877 = vmul.f32 %v2872, %v2876
    %2878 = vrot.lane.b32.xlu0 %v2455, 112
    %v2879 = vpop.permute.xlu0 %2878
    %v2882 = vsel %vm451, %v2877, 0
    %2884 = vmatprep.subr.mxu0 0.0
    %2885 = vmatpush1.msra.mxu0 %v2879
    %2886 = vmatprep.subr.mxu0 0.0
    %2887 = vmatpush1.msra.mxu0 0.0
    %2888 = vmatprep.subr.mxu0 0.0
    %2889 = vmatpush1.msra.mxu0 0.0
    %2890 = vmatprep.subr.mxu0 0.0
    %2891 = vmatpush1.msra.mxu0 0.0
    %2892 = vmatprep.subr.mxu0 0.0
    %2893 = vmatpush1.msra.mxu0 0.0
    %2894 = vmatprep.subr.mxu0 0.0
    %2895 = vmatpush1.msra.mxu0 0.0
    %2896 = vmatprep.subr.mxu0 0.0
    %2897 = vmatpush1.msra.mxu0 0.0
    %2898 = vmatprep.subr.mxu0 0.0
    %2899 = vmatpush1.msra.mxu0 0.0
    %2900 = vmatprep.subr.mxu0 0.0
    %2901 = vmatpush1.msra.mxu0 0.0
    %2902 = vmatprep.subr.mxu0 0.0
    %2903 = vmatpush1.msra.mxu0 0.0
    %2904 = vmatprep.subr.mxu0 0.0
    %2905 = vmatpush1.msra.mxu0 0.0
    %2906 = vmatprep.subr.mxu0 0.0
    %2907 = vmatpush1.msra.mxu0 0.0
    %2908 = vmatprep.subr.mxu0 0.0
    %2909 = vmatpush1.msra.mxu0 0.0
    %2910 = vmatprep.subr.mxu0 0.0
    %2911 = vmatpush1.msra.mxu0 0.0
    %2912 = vmatprep.subr.mxu0 0.0
    %2913 = vmatpush1.msra.mxu0 0.0
    %2914 = vmatprep.subr.mxu0 0.0
    %2915 = vmatpush1.msra.mxu0 0.0
    %2916 = vmatprep.subr.mxu0 0.0
    %2917 = vmatpush1.msra.mxu0 0.0
    %2918 = vmatprep.subr.mxu0 0.0
    %2919 = vmatpush1.msra.mxu0 0.0
    %2920 = vmatprep.subr.mxu0 0.0
    %2921 = vmatpush1.msra.mxu0 0.0
    %2922 = vmatprep.subr.mxu0 0.0
    %2923 = vmatpush1.msra.mxu0 0.0
    %2924 = vmatprep.subr.mxu0 0.0
    %2925 = vmatpush1.msra.mxu0 0.0
    %2926 = vmatprep.subr.mxu0 0.0
    %2927 = vmatpush1.msra.mxu0 0.0
    %2928 = vmatprep.subr.mxu0 0.0
    %2929 = vmatpush1.msra.mxu0 0.0
    %2930 = vmatprep.subr.mxu0 0.0
    %2931 = vmatpush1.msra.mxu0 0.0
    %2932 = vmatprep.subr.mxu0 0.0
    %2933 = vmatpush1.msra.mxu0 0.0
    %2934 = vmatprep.subr.mxu0 0.0
    %2935 = vmatpush1.msra.mxu0 0.0
    %2936 = vmatprep.subr.mxu0 0.0
    %2937 = vmatpush1.msra.mxu0 0.0
    %2938 = vmatprep.subr.mxu0 0.0
    %2939 = vmatpush1.msra.mxu0 0.0
    %2940 = vmatprep.subr.mxu0 0.0
    %2941 = vmatpush1.msra.mxu0 0.0
    %2942 = vmatprep.subr.mxu0 0.0
    %2943 = vmatpush1.msra.mxu0 0.0
    %2944 = vmatprep.subr.mxu0 0.0
    %2945 = vmatpush1.msra.mxu0 0.0
    %2946 = vmatprep.subr.mxu0 0.0
    %2947 = vmatpush1.msra.mxu0 0.0
    %2948 = vmatprep.mubr.f32.mxu0 0.0
    %2949 = vmatmul.mubr.f32.gmra.mrb[0].mxu0 %v2882
    %v2950 = vpop.f32.mrb[0].mxu0
    %v2951 = vadd.f32 0.0, %v2950
    %v2952 = vpop.f32.mrb[0].mxu0
    %2953 = vdwg.mxu0
    %2954 = vrot.lane.b32.xlu0 %v2285, 104
    %v2955 = vpop.permute.xlu0 %2954
    %2956 = vrot.lane.b32.xlu0 %v2367, 104
    %v2957 = vpop.permute.xlu0 %2956
    %v2958 = vsel %vm451, %v2955, 0
    %v2960 = vsel %vm451, %v2957, 0
    %2962 = vmatprep.subr.mxu0 0.0
    %2963 = vmatpush1.xpose.msra.mxu0 %v2960
    %2964 = vmatprep.subr.mxu0 0.0
    %2965 = vmatpush1.xpose.msra.mxu0 0.0
    %2966 = vmatprep.subr.mxu0 0.0
    %2967 = vmatpush1.xpose.msra.mxu0 0.0
    %2968 = vmatprep.subr.mxu0 0.0
    %2969 = vmatpush1.xpose.msra.mxu0 0.0
    %2970 = vmatprep.subr.mxu0 0.0
    %2971 = vmatpush1.xpose.msra.mxu0 0.0
    %2972 = vmatprep.subr.mxu0 0.0
    %2973 = vmatpush1.xpose.msra.mxu0 0.0
    %2974 = vmatprep.subr.mxu0 0.0
    %2975 = vmatpush1.xpose.msra.mxu0 0.0
    %2976 = vmatprep.subr.mxu0 0.0
    %2977 = vmatpush1.xpose.msra.mxu0 0.0
    %2978 = vmatprep.subr.mxu0 0.0
    %2979 = vmatpush1.xpose.msra.mxu0 0.0
    %2980 = vmatprep.subr.mxu0 0.0
    %2981 = vmatpush1.xpose.msra.mxu0 0.0
    %2982 = vmatprep.subr.mxu0 0.0
    %2983 = vmatpush1.xpose.msra.mxu0 0.0
    %2984 = vmatprep.subr.mxu0 0.0
    %2985 = vmatpush1.xpose.msra.mxu0 0.0
    %2986 = vmatprep.subr.mxu0 0.0
    %2987 = vmatpush1.xpose.msra.mxu0 0.0
    %2988 = vmatprep.subr.mxu0 0.0
    %2989 = vmatpush1.xpose.msra.mxu0 0.0
    %2990 = vmatprep.subr.mxu0 0.0
    %2991 = vmatpush1.xpose.msra.mxu0 0.0
    %2992 = vmatprep.subr.mxu0 0.0
    %2993 = vmatpush1.xpose.msra.mxu0 0.0
    %2994 = vmatprep.subr.mxu0 0.0
    %2995 = vmatpush1.xpose.msra.mxu0 0.0
    %2996 = vmatprep.subr.mxu0 0.0
    %2997 = vmatpush1.xpose.msra.mxu0 0.0
    %2998 = vmatprep.subr.mxu0 0.0
    %2999 = vmatpush1.xpose.msra.mxu0 0.0
    %3000 = vmatprep.subr.mxu0 0.0
    %3001 = vmatpush1.xpose.msra.mxu0 0.0
    %3002 = vmatprep.subr.mxu0 0.0
    %3003 = vmatpush1.xpose.msra.mxu0 0.0
    %3004 = vmatprep.subr.mxu0 0.0
    %3005 = vmatpush1.xpose.msra.mxu0 0.0
    %3006 = vmatprep.subr.mxu0 0.0
    %3007 = vmatpush1.xpose.msra.mxu0 0.0
    %3008 = vmatprep.subr.mxu0 0.0
    %3009 = vmatpush1.xpose.msra.mxu0 0.0
    %3010 = vmatprep.subr.mxu0 0.0
    %3011 = vmatpush1.xpose.msra.mxu0 0.0
    %3012 = vmatprep.subr.mxu0 0.0
    %3013 = vmatpush1.xpose.msra.mxu0 0.0
    %3014 = vmatprep.subr.mxu0 0.0
    %3015 = vmatpush1.xpose.msra.mxu0 0.0
    %3016 = vmatprep.subr.mxu0 0.0
    %3017 = vmatpush1.xpose.msra.mxu0 0.0
    %3018 = vmatprep.subr.mxu0 0.0
    %3019 = vmatpush1.xpose.msra.mxu0 0.0
    %3020 = vmatprep.subr.mxu0 0.0
    %3021 = vmatpush1.xpose.msra.mxu0 0.0
    %3022 = vmatprep.subr.mxu0 0.0
    %3023 = vmatpush1.xpose.msra.mxu0 0.0
    %3024 = vmatprep.subr.mxu0 0.0
    %3025 = vmatpush1.xpose.msra.mxu0 0.0
    %3026 = vmatprep.mubr.f32.mxu0 0.0
    %3027 = vmatmul.mubr.f32.gmra.mrb[0].mxu0 %v2958
    %v3028 = vpop.f32.mrb[0].mxu0
    %v3029 = vadd.f32 %v450, %v3028
    %v3030 = vpop.f32.mrb[0].mxu0
    %3031 = vdwg.mxu0
    %v3032 = vsel %vm451, %v3029, -inf
    %3033 = vmax.xlane.f32.xlu0 %v3032
    %v3034 = vpop.xlane.xlu0 %3033
    %v3035 = vsub.f32 %v3029, %v3034
    %v3036 = vmul.f32 %v3035, 1.442695
    %v3037 = vpow.pop %v3036
    %v3038 = vsel %vm451, %v3037, 0.0
    %3039 = vadd.xlane.f32.xlu0 %v3038
    %v3040 = vpop.xlane.xlu0 %3039
    %v3041 = vrcp.pop %v3040
    %v3042 = vmul.f32 %v3037, %v3041
    %3043 = vrot.lane.b32.xlu0 %v2455, 104
    %v3044 = vpop.permute.xlu0 %3043
    %v3047 = vsel %vm451, %v3042, 0
    %3049 = vmatprep.subr.mxu0 0.0
    %3050 = vmatpush1.msra.mxu0 %v3044
    %3051 = vmatprep.subr.mxu0 0.0
    %3052 = vmatpush1.msra.mxu0 0.0
    %3053 = vmatprep.subr.mxu0 0.0
    %3054 = vmatpush1.msra.mxu0 0.0
    %3055 = vmatprep.subr.mxu0 0.0
    %3056 = vmatpush1.msra.mxu0 0.0
    %3057 = vmatprep.subr.mxu0 0.0
    %3058 = vmatpush1.msra.mxu0 0.0
    %3059 = vmatprep.subr.mxu0 0.0
    %3060 = vmatpush1.msra.mxu0 0.0
    %3061 = vmatprep.subr.mxu0 0.0
    %3062 = vmatpush1.msra.mxu0 0.0
    %3063 = vmatprep.subr.mxu0 0.0
    %3064 = vmatpush1.msra.mxu0 0.0
    %3065 = vmatprep.subr.mxu0 0.0
    %3066 = vmatpush1.msra.mxu0 0.0
    %3067 = vmatprep.subr.mxu0 0.0
    %3068 = vmatpush1.msra.mxu0 0.0
    %3069 = vmatprep.subr.mxu0 0.0
    %3070 = vmatpush1.msra.mxu0 0.0
    %3071 = vmatprep.subr.mxu0 0.0
    %3072 = vmatpush1.msra.mxu0 0.0
    %3073 = vmatprep.subr.mxu0 0.0
    %3074 = vmatpush1.msra.mxu0 0.0
    %3075 = vmatprep.subr.mxu0 0.0
    %3076 = vmatpush1.msra.mxu0 0.0
    %3077 = vmatprep.subr.mxu0 0.0
    %3078 = vmatpush1.msra.mxu0 0.0
    %3079 = vmatprep.subr.mxu0 0.0
    %3080 = vmatpush1.msra.mxu0 0.0
    %3081 = vmatprep.subr.mxu0 0.0
    %3082 = vmatpush1.msra.mxu0 0.0
    %3083 = vmatprep.subr.mxu0 0.0
    %3084 = vmatpush1.msra.mxu0 0.0
    %3085 = vmatprep.subr.mxu0 0.0
    %3086 = vmatpush1.msra.mxu0 0.0
    %3087 = vmatprep.subr.mxu0 0.0
    %3088 = vmatpush1.msra.mxu0 0.0
    %3089 = vmatprep.subr.mxu0 0.0
    %3090 = vmatpush1.msra.mxu0 0.0
    %3091 = vmatprep.subr.mxu0 0.0
    %3092 = vmatpush1.msra.mxu0 0.0
    %3093 = vmatprep.subr.mxu0 0.0
    %3094 = vmatpush1.msra.mxu0 0.0
    %3095 = vmatprep.subr.mxu0 0.0
    %3096 = vmatpush1.msra.mxu0 0.0
    %3097 = vmatprep.subr.mxu0 0.0
    %3098 = vmatpush1.msra.mxu0 0.0
    %3099 = vmatprep.subr.mxu0 0.0
    %3100 = vmatpush1.msra.mxu0 0.0
    %3101 = vmatprep.subr.mxu0 0.0
    %3102 = vmatpush1.msra.mxu0 0.0
    %3103 = vmatprep.subr.mxu0 0.0
    %3104 = vmatpush1.msra.mxu0 0.0
    %3105 = vmatprep.subr.mxu0 0.0
    %3106 = vmatpush1.msra.mxu0 0.0
    %3107 = vmatprep.subr.mxu0 0.0
    %3108 = vmatpush1.msra.mxu0 0.0
    %3109 = vmatprep.subr.mxu0 0.0
    %3110 = vmatpush1.msra.mxu0 0.0
    %3111 = vmatprep.subr.mxu0 0.0
    %3112 = vmatpush1.msra.mxu0 0.0
    %3113 = vmatprep.mubr.f32.mxu0 0.0
    %3114 = vmatmul.mubr.f32.gmra.mrb[0].mxu0 %v3047
    %v3115 = vpop.f32.mrb[0].mxu0
    %v3116 = vadd.f32 0.0, %v3115
    %v3117 = vpop.f32.mrb[0].mxu0
    %3118 = vdwg.mxu0
    %3120 = vrot.lane.b32.xlu0 %v2786, 8
    %v3121 = vpop.permute.xlu0 %3120
    %3124 = vrot.lane.b32.xlu0 %v2951, 16
    %v3125 = vpop.permute.xlu0 %3124
    %3128 = vrot.lane.b32.xlu0 %v3116, 24
    %v3129 = vpop.permute.xlu0 %3128
    %v3131 = vsel %vm451, %v2620, %v3121
    %v3132 = vsel %vm1121, %v3131, %v3125
    %v3133 = vsel %vm1123, %v3132, %v3129
    %v3135 = vsel %vm451, %v2286, 0
    %v3138 = vsel %vm451, %v2372, 0
    %3140 = vmatprep.subr.mxu0 0.0
    %3141 = vmatpush1.xpose.msra.mxu0 %v3138
    %3142 = vmatprep.subr.mxu0 0.0
    %3143 = vmatpush1.xpose.msra.mxu0 0.0
    %3144 = vmatprep.subr.mxu0 0.0
    %3145 = vmatpush1.xpose.msra.mxu0 0.0
    %3146 = vmatprep.subr.mxu0 0.0
    %3147 = vmatpush1.xpose.msra.mxu0 0.0
    %3148 = vmatprep.subr.mxu0 0.0
    %3149 = vmatpush1.xpose.msra.mxu0 0.0
    %3150 = vmatprep.subr.mxu0 0.0
    %3151 = vmatpush1.xpose.msra.mxu0 0.0
    %3152 = vmatprep.subr.mxu0 0.0
    %3153 = vmatpush1.xpose.msra.mxu0 0.0
    %3154 = vmatprep.subr.mxu0 0.0
    %3155 = vmatpush1.xpose.msra.mxu0 0.0
    %3156 = vmatprep.subr.mxu0 0.0
    %3157 = vmatpush1.xpose.msra.mxu0 0.0
    %3158 = vmatprep.subr.mxu0 0.0
    %3159 = vmatpush1.xpose.msra.mxu0 0.0
    %3160 = vmatprep.subr.mxu0 0.0
    %3161 = vmatpush1.xpose.msra.mxu0 0.0
    %3162 = vmatprep.subr.mxu0 0.0
    %3163 = vmatpush1.xpose.msra.mxu0 0.0
    %3164 = vmatprep.subr.mxu0 0.0
    %3165 = vmatpush1.xpose.msra.mxu0 0.0
    %3166 = vmatprep.subr.mxu0 0.0
    %3167 = vmatpush1.xpose.msra.mxu0 0.0
    %3168 = vmatprep.subr.mxu0 0.0
    %3169 = vmatpush1.xpose.msra.mxu0 0.0
    %3170 = vmatprep.subr.mxu0 0.0
    %3171 = vmatpush1.xpose.msra.mxu0 0.0
    %3172 = vmatprep.subr.mxu0 0.0
    %3173 = vmatpush1.xpose.msra.mxu0 0.0
    %3174 = vmatprep.subr.mxu0 0.0
    %3175 = vmatpush1.xpose.msra.mxu0 0.0
    %3176 = vmatprep.subr.mxu0 0.0
    %3177 = vmatpush1.xpose.msra.mxu0 0.0
    %3178 = vmatprep.subr.mxu0 0.0
    %3179 = vmatpush1.xpose.msra.mxu0 0.0
    %3180 = vmatprep.subr.mxu0 0.0
    %3181 = vmatpush1.xpose.msra.mxu0 0.0
    %3182 = vmatprep.subr.mxu0 0.0
    %3183 = vmatpush1.xpose.msra.mxu0 0.0
    %3184 = vmatprep.subr.mxu0 0.0
    %3185 = vmatpush1.xpose.msra.mxu0 0.0
    %3186 = vmatprep.subr.mxu0 0.0
    %3187 = vmatpush1.xpose.msra.mxu0 0.0
    %3188 = vmatprep.subr.mxu0 0.0
    %3189 = vmatpush1.xpose.msra.mxu0 0.0
    %3190 = vmatprep.subr.mxu0 0.0
    %3191 = vmatpush1.xpose.msra.mxu0 0.0
    %3192 = vmatprep.subr.mxu0 0.0
    %3193 = vmatpush1.xpose.msra.mxu0 0.0
    %3194 = vmatprep.subr.mxu0 0.0
    %3195 = vmatpush1.xpose.msra.mxu0 0.0
    %3196 = vmatprep.subr.mxu0 0.0
    %3197 = vmatpush1.xpose.msra.mxu0 0.0
    %3198 = vmatprep.subr.mxu0 0.0
    %3199 = vmatpush1.xpose.msra.mxu0 0.0
    %3200 = vmatprep.subr.mxu0 0.0
    %3201 = vmatpush1.xpose.msra.mxu0 0.0
    %3202 = vmatprep.subr.mxu0 0.0
    %3203 = vmatpush1.xpose.msra.mxu0 0.0
    %3204 = vmatprep.mubr.f32.mxu0 0.0
    %3205 = vmatmul.mubr.f32.gmra.mrb[0].mxu0 %v3135
    %v3206 = vpop.f32.mrb[0].mxu0
    %v3207 = vadd.f32 %v1128, %v3206
    %v3208 = vpop.f32.mrb[0].mxu0
    %3209 = vdwg.mxu0
    %v3210 = vsel %vm451, %v3207, -inf
    %3211 = vmax.xlane.f32.xlu0 %v3210
    %v3212 = vpop.xlane.xlu0 %3211
    %v3213 = vsub.f32 %v3207, %v3212
    %v3214 = vmul.f32 %v3213, 1.442695
    %v3215 = vpow.pop %v3214
    %v3216 = vsel %vm451, %v3215, 0.0
    %3217 = vadd.xlane.f32.xlu0 %v3216
    %v3218 = vpop.xlane.xlu0 %3217
    %v3219 = vrcp.pop %v3218
    %v3220 = vmul.f32 %v3215, %v3219
    %v3222 = vsel %vm451, %v3220, 0
    %3224 = vmatprep.subr.mxu0 0.0
    %3225 = vmatpush1.msra.mxu0 %v2460
    %3226 = vmatprep.subr.mxu0 0.0
    %3227 = vmatpush1.msra.mxu0 0.0
    %3228 = vmatprep.subr.mxu0 0.0
    %3229 = vmatpush1.msra.mxu0 0.0
    %3230 = vmatprep.subr.mxu0 0.0
    %3231 = vmatpush1.msra.mxu0 0.0
    %3232 = vmatprep.subr.mxu0 0.0
    %3233 = vmatpush1.msra.mxu0 0.0
    %3234 = vmatprep.subr.mxu0 0.0
    %3235 = vmatpush1.msra.mxu0 0.0
    %3236 = vmatprep.subr.mxu0 0.0
    %3237 = vmatpush1.msra.mxu0 0.0
    %3238 = vmatprep.subr.mxu0 0.0
    %3239 = vmatpush1.msra.mxu0 0.0
    %3240 = vmatprep.subr.mxu0 0.0
    %3241 = vmatpush1.msra.mxu0 0.0
    %3242 = vmatprep.subr.mxu0 0.0
    %3243 = vmatpush1.msra.mxu0 0.0
    %3244 = vmatprep.subr.mxu0 0.0
    %3245 = vmatpush1.msra.mxu0 0.0
    %3246 = vmatprep.subr.mxu0 0.0
    %3247 = vmatpush1.msra.mxu0 0.0
    %3248 = vmatprep.subr.mxu0 0.0
    %3249 = vmatpush1.msra.mxu0 0.0
    %3250 = vmatprep.subr.mxu0 0.0
    %3251 = vmatpush1.msra.mxu0 0.0
    %3252 = vmatprep.subr.mxu0 0.0
    %3253 = vmatpush1.msra.mxu0 0.0
    %3254 = vmatprep.subr.mxu0 0.0
    %3255 = vmatpush1.msra.mxu0 0.0
    %3256 = vmatprep.subr.mxu0 0.0
    %3257 = vmatpush1.msra.mxu0 0.0
    %3258 = vmatprep.subr.mxu0 0.0
    %3259 = vmatpush1.msra.mxu0 0.0
    %3260 = vmatprep.subr.mxu0 0.0
    %3261 = vmatpush1.msra.mxu0 0.0
    %3262 = vmatprep.subr.mxu0 0.0
    %3263 = vmatpush1.msra.mxu0 0.0
    %3264 = vmatprep.subr.mxu0 0.0
    %3265 = vmatpush1.msra.mxu0 0.0
    %3266 = vmatprep.subr.mxu0 0.0
    %3267 = vmatpush1.msra.mxu0 0.0
    %3268 = vmatprep.subr.mxu0 0.0
    %3269 = vmatpush1.msra.mxu0 0.0
    %3270 = vmatprep.subr.mxu0 0.0
    %3271 = vmatpush1.msra.mxu0 0.0
    %3272 = vmatprep.subr.mxu0 0.0
    %3273 = vmatpush1.msra.mxu0 0.0
    %3274 = vmatprep.subr.mxu0 0.0
    %3275 = vmatpush1.msra.mxu0 0.0
    %3276 = vmatprep.subr.mxu0 0.0
    %3277 = vmatpush1.msra.mxu0 0.0
    %3278 = vmatprep.subr.mxu0 0.0
    %3279 = vmatpush1.msra.mxu0 0.0
    %3280 = vmatprep.subr.mxu0 0.0
    %3281 = vmatpush1.msra.mxu0 0.0
    %3282 = vmatprep.subr.mxu0 0.0
    %3283 = vmatpush1.msra.mxu0 0.0
    %3284 = vmatprep.subr.mxu0 0.0
    %3285 = vmatpush1.msra.mxu0 0.0
    %3286 = vmatprep.subr.mxu0 0.0
    %3287 = vmatpush1.msra.mxu0 0.0
    %3288 = vmatprep.mubr.f32.mxu0 0.0
    %3289 = vmatmul.mubr.f32.gmra.mrb[0].mxu0 %v3222
    %v3290 = vpop.f32.mrb[0].mxu0
    %v3291 = vadd.f32 0.0, %v3290
    %v3292 = vpop.f32.mrb[0].mxu0
    %3293 = vdwg.mxu0
    %3294 = vrot.lane.b32.xlu0 %v2286, 120
    %v3295 = vpop.permute.xlu0 %3294
    %3296 = vrot.lane.b32.xlu0 %v2372, 120
    %v3297 = vpop.permute.xlu0 %3296
    %v3298 = vsel %vm451, %v3295, 0
    %v3300 = vsel %vm451, %v3297, 0
    %3302 = vmatprep.subr.mxu0 0.0
    %3303 = vmatpush1.xpose.msra.mxu0 %v3300
    %3304 = vmatprep.subr.mxu0 0.0
    %3305 = vmatpush1.xpose.msra.mxu0 0.0
    %3306 = vmatprep.subr.mxu0 0.0
    %3307 = vmatpush1.xpose.msra.mxu0 0.0
    %3308 = vmatprep.subr.mxu0 0.0
    %3309 = vmatpush1.xpose.msra.mxu0 0.0
    %3310 = vmatprep.subr.mxu0 0.0
    %3311 = vmatpush1.xpose.msra.mxu0 0.0
    %3312 = vmatprep.subr.mxu0 0.0
    %3313 = vmatpush1.xpose.msra.mxu0 0.0
    %3314 = vmatprep.subr.mxu0 0.0
    %3315 = vmatpush1.xpose.msra.mxu0 0.0
    %3316 = vmatprep.subr.mxu0 0.0
    %3317 = vmatpush1.xpose.msra.mxu0 0.0
    %3318 = vmatprep.subr.mxu0 0.0
    %3319 = vmatpush1.xpose.msra.mxu0 0.0
    %3320 = vmatprep.subr.mxu0 0.0
    %3321 = vmatpush1.xpose.msra.mxu0 0.0
    %3322 = vmatprep.subr.mxu0 0.0
    %3323 = vmatpush1.xpose.msra.mxu0 0.0
    %3324 = vmatprep.subr.mxu0 0.0
    %3325 = vmatpush1.xpose.msra.mxu0 0.0
    %3326 = vmatprep.subr.mxu0 0.0
    %3327 = vmatpush1.xpose.msra.mxu0 0.0
    %3328 = vmatprep.subr.mxu0 0.0
    %3329 = vmatpush1.xpose.msra.mxu0 0.0
    %3330 = vmatprep.subr.mxu0 0.0
    %3331 = vmatpush1.xpose.msra.mxu0 0.0
    %3332 = vmatprep.subr.mxu0 0.0
    %3333 = vmatpush1.xpose.msra.mxu0 0.0
    %3334 = vmatprep.subr.mxu0 0.0
    %3335 = vmatpush1.xpose.msra.mxu0 0.0
    %3336 = vmatprep.subr.mxu0 0.0
    %3337 = vmatpush1.xpose.msra.mxu0 0.0
    %3338 = vmatprep.subr.mxu0 0.0
    %3339 = vmatpush1.xpose.msra.mxu0 0.0
    %3340 = vmatprep.subr.mxu0 0.0
    %3341 = vmatpush1.xpose.msra.mxu0 0.0
    %3342 = vmatprep.subr.mxu0 0.0
    %3343 = vmatpush1.xpose.msra.mxu0 0.0
    %3344 = vmatprep.subr.mxu0 0.0
    %3345 = vmatpush1.xpose.msra.mxu0 0.0
    %3346 = vmatprep.subr.mxu0 0.0
    %3347 = vmatpush1.xpose.msra.mxu0 0.0
    %3348 = vmatprep.subr.mxu0 0.0
    %3349 = vmatpush1.xpose.msra.mxu0 0.0
    %3350 = vmatprep.subr.mxu0 0.0
    %3351 = vmatpush1.xpose.msra.mxu0 0.0
    %3352 = vmatprep.subr.mxu0 0.0
    %3353 = vmatpush1.xpose.msra.mxu0 0.0
    %3354 = vmatprep.subr.mxu0 0.0
    %3355 = vmatpush1.xpose.msra.mxu0 0.0
    %3356 = vmatprep.subr.mxu0 0.0
    %3357 = vmatpush1.xpose.msra.mxu0 0.0
    %3358 = vmatprep.subr.mxu0 0.0
    %3359 = vmatpush1.xpose.msra.mxu0 0.0
    %3360 = vmatprep.subr.mxu0 0.0
    %3361 = vmatpush1.xpose.msra.mxu0 0.0
    %3362 = vmatprep.subr.mxu0 0.0
    %3363 = vmatpush1.xpose.msra.mxu0 0.0
    %3364 = vmatprep.subr.mxu0 0.0
    %3365 = vmatpush1.xpose.msra.mxu0 0.0
    %3366 = vmatprep.mubr.f32.mxu0 0.0
    %3367 = vmatmul.mubr.f32.gmra.mrb[0].mxu0 %v3298
    %v3368 = vpop.f32.mrb[0].mxu0
    %v3369 = vadd.f32 %v1128, %v3368
    %v3370 = vpop.f32.mrb[0].mxu0
    %3371 = vdwg.mxu0
    %v3372 = vsel %vm451, %v3369, -inf
    %3373 = vmax.xlane.f32.xlu0 %v3372
    %v3374 = vpop.xlane.xlu0 %3373
    %v3375 = vsub.f32 %v3369, %v3374
    %v3376 = vmul.f32 %v3375, 1.442695
    %v3377 = vpow.pop %v3376
    %v3378 = vsel %vm451, %v3377, 0.0
    %3379 = vadd.xlane.f32.xlu0 %v3378
    %v3380 = vpop.xlane.xlu0 %3379
    %v3381 = vrcp.pop %v3380
    %v3382 = vmul.f32 %v3377, %v3381
    %3384 = vrot.lane.b32.xlu0 %v2460, 120
    %v3385 = vpop.permute.xlu0 %3384
    %v3388 = vsel %vm451, %v3382, 0
    %3390 = vmatprep.subr.mxu0 0.0
    %3391 = vmatpush1.msra.mxu0 %v3385
    %3392 = vmatprep.subr.mxu0 0.0
    %3393 = vmatpush1.msra.mxu0 0.0
    %3394 = vmatprep.subr.mxu0 0.0
    %3395 = vmatpush1.msra.mxu0 0.0
    %3396 = vmatprep.subr.mxu0 0.0
    %3397 = vmatpush1.msra.mxu0 0.0
    %3398 = vmatprep.subr.mxu0 0.0
    %3399 = vmatpush1.msra.mxu0 0.0
    %3400 = vmatprep.subr.mxu0 0.0
    %3401 = vmatpush1.msra.mxu0 0.0
    %3402 = vmatprep.subr.mxu0 0.0
    %3403 = vmatpush1.msra.mxu0 0.0
    %3404 = vmatprep.subr.mxu0 0.0
    %3405 = vmatpush1.msra.mxu0 0.0
    %3406 = vmatprep.subr.mxu0 0.0
    %3407 = vmatpush1.msra.mxu0 0.0
    %3408 = vmatprep.subr.mxu0 0.0
    %3409 = vmatpush1.msra.mxu0 0.0
    %3410 = vmatprep.subr.mxu0 0.0
    %3411 = vmatpush1.msra.mxu0 0.0
    %3412 = vmatprep.subr.mxu0 0.0
    %3413 = vmatpush1.msra.mxu0 0.0
    %3414 = vmatprep.subr.mxu0 0.0
    %3415 = vmatpush1.msra.mxu0 0.0
    %3416 = vmatprep.subr.mxu0 0.0
    %3417 = vmatpush1.msra.mxu0 0.0
    %3418 = vmatprep.subr.mxu0 0.0
    %3419 = vmatpush1.msra.mxu0 0.0
    %3420 = vmatprep.subr.mxu0 0.0
    %3421 = vmatpush1.msra.mxu0 0.0
    %3422 = vmatprep.subr.mxu0 0.0
    %3423 = vmatpush1.msra.mxu0 0.0
    %3424 = vmatprep.subr.mxu0 0.0
    %3425 = vmatpush1.msra.mxu0 0.0
    %3426 = vmatprep.subr.mxu0 0.0
    %3427 = vmatpush1.msra.mxu0 0.0
    %3428 = vmatprep.subr.mxu0 0.0
    %3429 = vmatpush1.msra.mxu0 0.0
    %3430 = vmatprep.subr.mxu0 0.0
    %3431 = vmatpush1.msra.mxu0 0.0
    %3432 = vmatprep.subr.mxu0 0.0
    %3433 = vmatpush1.msra.mxu0 0.0
    %3434 = vmatprep.subr.mxu0 0.0
    %3435 = vmatpush1.msra.mxu0 0.0
    %3436 = vmatprep.subr.mxu0 0.0
    %3437 = vmatpush1.msra.mxu0 0.0
    %3438 = vmatprep.subr.mxu0 0.0
    %3439 = vmatpush1.msra.mxu0 0.0
    %3440 = vmatprep.subr.mxu0 0.0
    %3441 = vmatpush1.msra.mxu0 0.0
    %3442 = vmatprep.subr.mxu0 0.0
    %3443 = vmatpush1.msra.mxu0 0.0
    %3444 = vmatprep.subr.mxu0 0.0
    %3445 = vmatpush1.msra.mxu0 0.0
    %3446 = vmatprep.subr.mxu0 0.0
    %3447 = vmatpush1.msra.mxu0 0.0
    %3448 = vmatprep.subr.mxu0 0.0
    %3449 = vmatpush1.msra.mxu0 0.0
    %3450 = vmatprep.subr.mxu0 0.0
    %3451 = vmatpush1.msra.mxu0 0.0
    %3452 = vmatprep.subr.mxu0 0.0
    %3453 = vmatpush1.msra.mxu0 0.0
    %3454 = vmatprep.mubr.f32.mxu0 0.0
    %3455 = vmatmul.mubr.f32.gmra.mrb[0].mxu0 %v3388
    %v3456 = vpop.f32.mrb[0].mxu0
    %v3457 = vadd.f32 0.0, %v3456
    %v3458 = vpop.f32.mrb[0].mxu0
    %3459 = vdwg.mxu0
    %3460 = vrot.lane.b32.xlu0 %v2286, 112
    %v3461 = vpop.permute.xlu0 %3460
    %3462 = vrot.lane.b32.xlu0 %v2372, 112
    %v3463 = vpop.permute.xlu0 %3462
    %v3464 = vsel %vm451, %v3461, 0
    %v3466 = vsel %vm451, %v3463, 0
    %3468 = vmatprep.subr.mxu0 0.0
    %3469 = vmatpush1.xpose.msra.mxu0 %v3466
    %3470 = vmatprep.subr.mxu0 0.0
    %3471 = vmatpush1.xpose.msra.mxu0 0.0
    %3472 = vmatprep.subr.mxu0 0.0
    %3473 = vmatpush1.xpose.msra.mxu0 0.0
    %3474 = vmatprep.subr.mxu0 0.0
    %3475 = vmatpush1.xpose.msra.mxu0 0.0
    %3476 = vmatprep.subr.mxu0 0.0
    %3477 = vmatpush1.xpose.msra.mxu0 0.0
    %3478 = vmatprep.subr.mxu0 0.0
    %3479 = vmatpush1.xpose.msra.mxu0 0.0
    %3480 = vmatprep.subr.mxu0 0.0
    %3481 = vmatpush1.xpose.msra.mxu0 0.0
    %3482 = vmatprep.subr.mxu0 0.0
    %3483 = vmatpush1.xpose.msra.mxu0 0.0
    %3484 = vmatprep.subr.mxu0 0.0
    %3485 = vmatpush1.xpose.msra.mxu0 0.0
    %3486 = vmatprep.subr.mxu0 0.0
    %3487 = vmatpush1.xpose.msra.mxu0 0.0
    %3488 = vmatprep.subr.mxu0 0.0
    %3489 = vmatpush1.xpose.msra.mxu0 0.0
    %3490 = vmatprep.subr.mxu0 0.0
    %3491 = vmatpush1.xpose.msra.mxu0 0.0
    %3492 = vmatprep.subr.mxu0 0.0
    %3493 = vmatpush1.xpose.msra.mxu0 0.0
    %3494 = vmatprep.subr.mxu0 0.0
    %3495 = vmatpush1.xpose.msra.mxu0 0.0
    %3496 = vmatprep.subr.mxu0 0.0
    %3497 = vmatpush1.xpose.msra.mxu0 0.0
    %3498 = vmatprep.subr.mxu0 0.0
    %3499 = vmatpush1.xpose.msra.mxu0 0.0
    %3500 = vmatprep.subr.mxu0 0.0
    %3501 = vmatpush1.xpose.msra.mxu0 0.0
    %3502 = vmatprep.subr.mxu0 0.0
    %3503 = vmatpush1.xpose.msra.mxu0 0.0
    %3504 = vmatprep.subr.mxu0 0.0
    %3505 = vmatpush1.xpose.msra.mxu0 0.0
    %3506 = vmatprep.subr.mxu0 0.0
    %3507 = vmatpush1.xpose.msra.mxu0 0.0
    %3508 = vmatprep.subr.mxu0 0.0
    %3509 = vmatpush1.xpose.msra.mxu0 0.0
    %3510 = vmatprep.subr.mxu0 0.0
    %3511 = vmatpush1.xpose.msra.mxu0 0.0
    %3512 = vmatprep.subr.mxu0 0.0
    %3513 = vmatpush1.xpose.msra.mxu0 0.0
    %3514 = vmatprep.subr.mxu0 0.0
    %3515 = vmatpush1.xpose.msra.mxu0 0.0
    %3516 = vmatprep.subr.mxu0 0.0
    %3517 = vmatpush1.xpose.msra.mxu0 0.0
    %3518 = vmatprep.subr.mxu0 0.0
    %3519 = vmatpush1.xpose.msra.mxu0 0.0
    %3520 = vmatprep.subr.mxu0 0.0
    %3521 = vmatpush1.xpose.msra.mxu0 0.0
    %3522 = vmatprep.subr.mxu0 0.0
    %3523 = vmatpush1.xpose.msra.mxu0 0.0
    %3524 = vmatprep.subr.mxu0 0.0
    %3525 = vmatpush1.xpose.msra.mxu0 0.0
    %3526 = vmatprep.subr.mxu0 0.0
    %3527 = vmatpush1.xpose.msra.mxu0 0.0
    %3528 = vmatprep.subr.mxu0 0.0
    %3529 = vmatpush1.xpose.msra.mxu0 0.0
    %3530 = vmatprep.subr.mxu0 0.0
    %3531 = vmatpush1.xpose.msra.mxu0 0.0
    %3532 = vmatprep.mubr.f32.mxu0 0.0
    %3533 = vmatmul.mubr.f32.gmra.mrb[0].mxu0 %v3464
    %v3534 = vpop.f32.mrb[0].mxu0
    %v3535 = vadd.f32 %v1128, %v3534
    %v3536 = vpop.f32.mrb[0].mxu0
    %3537 = vdwg.mxu0
    %v3538 = vsel %vm451, %v3535, -inf
    %3539 = vmax.xlane.f32.xlu0 %v3538
    %v3540 = vpop.xlane.xlu0 %3539
    %v3541 = vsub.f32 %v3535, %v3540
    %v3542 = vmul.f32 %v3541, 1.442695
    %v3543 = vpow.pop %v3542
    %v3544 = vsel %vm451, %v3543, 0.0
    %3545 = vadd.xlane.f32.xlu0 %v3544
    %v3546 = vpop.xlane.xlu0 %3545
    %v3547 = vrcp.pop %v3546
    %v3548 = vmul.f32 %v3543, %v3547
    %3549 = vrot.lane.b32.xlu0 %v2460, 112
    %v3550 = vpop.permute.xlu0 %3549
    %v3553 = vsel %vm451, %v3548, 0
    %3555 = vmatprep.subr.mxu0 0.0
    %3556 = vmatpush1.msra.mxu0 %v3550
    %3557 = vmatprep.subr.mxu0 0.0
    %3558 = vmatpush1.msra.mxu0 0.0
    %3559 = vmatprep.subr.mxu0 0.0
    %3560 = vmatpush1.msra.mxu0 0.0
    %3561 = vmatprep.subr.mxu0 0.0
    %3562 = vmatpush1.msra.mxu0 0.0
    %3563 = vmatprep.subr.mxu0 0.0
    %3564 = vmatpush1.msra.mxu0 0.0
    %3565 = vmatprep.subr.mxu0 0.0
    %3566 = vmatpush1.msra.mxu0 0.0
    %3567 = vmatprep.subr.mxu0 0.0
    %3568 = vmatpush1.msra.mxu0 0.0
    %3569 = vmatprep.subr.mxu0 0.0
    %3570 = vmatpush1.msra.mxu0 0.0
    %3571 = vmatprep.subr.mxu0 0.0
    %3572 = vmatpush1.msra.mxu0 0.0
    %3573 = vmatprep.subr.mxu0 0.0
    %3574 = vmatpush1.msra.mxu0 0.0
    %3575 = vmatprep.subr.mxu0 0.0
    %3576 = vmatpush1.msra.mxu0 0.0
    %3577 = vmatprep.subr.mxu0 0.0
    %3578 = vmatpush1.msra.mxu0 0.0
    %3579 = vmatprep.subr.mxu0 0.0
    %3580 = vmatpush1.msra.mxu0 0.0
    %3581 = vmatprep.subr.mxu0 0.0
    %3582 = vmatpush1.msra.mxu0 0.0
    %3583 = vmatprep.subr.mxu0 0.0
    %3584 = vmatpush1.msra.mxu0 0.0
    %3585 = vmatprep.subr.mxu0 0.0
    %3586 = vmatpush1.msra.mxu0 0.0
    %3587 = vmatprep.subr.mxu0 0.0
    %3588 = vmatpush1.msra.mxu0 0.0
    %3589 = vmatprep.subr.mxu0 0.0
    %3590 = vmatpush1.msra.mxu0 0.0
    %3591 = vmatprep.subr.mxu0 0.0
    %3592 = vmatpush1.msra.mxu0 0.0
    %3593 = vmatprep.subr.mxu0 0.0
    %3594 = vmatpush1.msra.mxu0 0.0
    %3595 = vmatprep.subr.mxu0 0.0
    %3596 = vmatpush1.msra.mxu0 0.0
    %3597 = vmatprep.subr.mxu0 0.0
    %3598 = vmatpush1.msra.mxu0 0.0
    %3599 = vmatprep.subr.mxu0 0.0
    %3600 = vmatpush1.msra.mxu0 0.0
    %3601 = vmatprep.subr.mxu0 0.0
    %3602 = vmatpush1.msra.mxu0 0.0
    %3603 = vmatprep.subr.mxu0 0.0
    %3604 = vmatpush1.msra.mxu0 0.0
    %3605 = vmatprep.subr.mxu0 0.0
    %3606 = vmatpush1.msra.mxu0 0.0
    %3607 = vmatprep.subr.mxu0 0.0
    %3608 = vmatpush1.msra.mxu0 0.0
    %3609 = vmatprep.subr.mxu0 0.0
    %3610 = vmatpush1.msra.mxu0 0.0
    %3611 = vmatprep.subr.mxu0 0.0
    %3612 = vmatpush1.msra.mxu0 0.0
    %3613 = vmatprep.subr.mxu0 0.0
    %3614 = vmatpush1.msra.mxu0 0.0
    %3615 = vmatprep.subr.mxu0 0.0
    %3616 = vmatpush1.msra.mxu0 0.0
    %3617 = vmatprep.subr.mxu0 0.0
    %3618 = vmatpush1.msra.mxu0 0.0
    %3619 = vmatprep.mubr.f32.mxu0 0.0
    %3620 = vmatmul.mubr.f32.gmra.mrb[0].mxu0 %v3553
    %v3621 = vpop.f32.mrb[0].mxu0
    %v3622 = vadd.f32 0.0, %v3621
    %v3623 = vpop.f32.mrb[0].mxu0
    %3624 = vdwg.mxu0
    %3625 = vrot.lane.b32.xlu0 %v2286, 104
    %v3626 = vpop.permute.xlu0 %3625
    %3627 = vrot.lane.b32.xlu0 %v2372, 104
    %v3628 = vpop.permute.xlu0 %3627
    %v3629 = vsel %vm451, %v3626, 0
    %v3631 = vsel %vm451, %v3628, 0
    %3633 = vmatprep.subr.mxu0 0.0
    %3634 = vmatpush1.xpose.msra.mxu0 %v3631
    %3635 = vmatprep.subr.mxu0 0.0
    %3636 = vmatpush1.xpose.msra.mxu0 0.0
    %3637 = vmatprep.subr.mxu0 0.0
    %3638 = vmatpush1.xpose.msra.mxu0 0.0
    %3639 = vmatprep.subr.mxu0 0.0
    %3640 = vmatpush1.xpose.msra.mxu0 0.0
    %3641 = vmatprep.subr.mxu0 0.0
    %3642 = vmatpush1.xpose.msra.mxu0 0.0
    %3643 = vmatprep.subr.mxu0 0.0
    %3644 = vmatpush1.xpose.msra.mxu0 0.0
    %3645 = vmatprep.subr.mxu0 0.0
    %3646 = vmatpush1.xpose.msra.mxu0 0.0
    %3647 = vmatprep.subr.mxu0 0.0
    %3648 = vmatpush1.xpose.msra.mxu0 0.0
    %3649 = vmatprep.subr.mxu0 0.0
    %3650 = vmatpush1.xpose.msra.mxu0 0.0
    %3651 = vmatprep.subr.mxu0 0.0
    %3652 = vmatpush1.xpose.msra.mxu0 0.0
    %3653 = vmatprep.subr.mxu0 0.0
    %3654 = vmatpush1.xpose.msra.mxu0 0.0
    %3655 = vmatprep.subr.mxu0 0.0
    %3656 = vmatpush1.xpose.msra.mxu0 0.0
    %3657 = vmatprep.subr.mxu0 0.0
    %3658 = vmatpush1.xpose.msra.mxu0 0.0
    %3659 = vmatprep.subr.mxu0 0.0
    %3660 = vmatpush1.xpose.msra.mxu0 0.0
    %3661 = vmatprep.subr.mxu0 0.0
    %3662 = vmatpush1.xpose.msra.mxu0 0.0
    %3663 = vmatprep.subr.mxu0 0.0
    %3664 = vmatpush1.xpose.msra.mxu0 0.0
    %3665 = vmatprep.subr.mxu0 0.0
    %3666 = vmatpush1.xpose.msra.mxu0 0.0
    %3667 = vmatprep.subr.mxu0 0.0
    %3668 = vmatpush1.xpose.msra.mxu0 0.0
    %3669 = vmatprep.subr.mxu0 0.0
    %3670 = vmatpush1.xpose.msra.mxu0 0.0
    %3671 = vmatprep.subr.mxu0 0.0
    %3672 = vmatpush1.xpose.msra.mxu0 0.0
    %3673 = vmatprep.subr.mxu0 0.0
    %3674 = vmatpush1.xpose.msra.mxu0 0.0
    %3675 = vmatprep.subr.mxu0 0.0
    %3676 = vmatpush1.xpose.msra.mxu0 0.0
    %3677 = vmatprep.subr.mxu0 0.0
    %3678 = vmatpush1.xpose.msra.mxu0 0.0
    %3679 = vmatprep.subr.mxu0 0.0
    %3680 = vmatpush1.xpose.msra.mxu0 0.0
    %3681 = vmatprep.subr.mxu0 0.0
    %3682 = vmatpush1.xpose.msra.mxu0 0.0
    %3683 = vmatprep.subr.mxu0 0.0
    %3684 = vmatpush1.xpose.msra.mxu0 0.0
    %3685 = vmatprep.subr.mxu0 0.0
    %3686 = vmatpush1.xpose.msra.mxu0 0.0
    %3687 = vmatprep.subr.mxu0 0.0
    %3688 = vmatpush1.xpose.msra.mxu0 0.0
    %3689 = vmatprep.subr.mxu0 0.0
    %3690 = vmatpush1.xpose.msra.mxu0 0.0
    %3691 = vmatprep.subr.mxu0 0.0
    %3692 = vmatpush1.xpose.msra.mxu0 0.0
    %3693 = vmatprep.subr.mxu0 0.0
    %3694 = vmatpush1.xpose.msra.mxu0 0.0
    %3695 = vmatprep.subr.mxu0 0.0
    %3696 = vmatpush1.xpose.msra.mxu0 0.0
    %3697 = vmatprep.mubr.f32.mxu0 0.0
    %3698 = vmatmul.mubr.f32.gmra.mrb[0].mxu0 %v3629
    %v3699 = vpop.f32.mrb[0].mxu0
    %v3700 = vadd.f32 %v1128, %v3699
    %v3701 = vpop.f32.mrb[0].mxu0
    %3702 = vdwg.mxu0
    %v3703 = vsel %vm451, %v3700, -inf
    %3704 = vmax.xlane.f32.xlu0 %v3703
    %v3705 = vpop.xlane.xlu0 %3704
    %v3706 = vsub.f32 %v3700, %v3705
    %v3707 = vmul.f32 %v3706, 1.442695
    %v3708 = vpow.pop %v3707
    %v3709 = vsel %vm451, %v3708, 0.0
    %3710 = vadd.xlane.f32.xlu0 %v3709
    %v3711 = vpop.xlane.xlu0 %3710
    %v3712 = vrcp.pop %v3711
    %v3713 = vmul.f32 %v3708, %v3712
    %3714 = vrot.lane.b32.xlu0 %v2460, 104
    %v3715 = vpop.permute.xlu0 %3714
    %v3718 = vsel %vm451, %v3713, 0
    %3720 = vmatprep.subr.mxu0 0.0
    %3721 = vmatpush1.msra.mxu0 %v3715
    %3722 = vmatprep.subr.mxu0 0.0
    %3723 = vmatpush1.msra.mxu0 0.0
    %3724 = vmatprep.subr.mxu0 0.0
    %3725 = vmatpush1.msra.mxu0 0.0
    %3726 = vmatprep.subr.mxu0 0.0
    %3727 = vmatpush1.msra.mxu0 0.0
    %3728 = vmatprep.subr.mxu0 0.0
    %3729 = vmatpush1.msra.mxu0 0.0
    %3730 = vmatprep.subr.mxu0 0.0
    %3731 = vmatpush1.msra.mxu0 0.0
    %3732 = vmatprep.subr.mxu0 0.0
    %3733 = vmatpush1.msra.mxu0 0.0
    %3734 = vmatprep.subr.mxu0 0.0
    %3735 = vmatpush1.msra.mxu0 0.0
    %3736 = vmatprep.subr.mxu0 0.0
    %3737 = vmatpush1.msra.mxu0 0.0
    %3738 = vmatprep.subr.mxu0 0.0
    %3739 = vmatpush1.msra.mxu0 0.0
    %3740 = vmatprep.subr.mxu0 0.0
    %3741 = vmatpush1.msra.mxu0 0.0
    %3742 = vmatprep.subr.mxu0 0.0
    %3743 = vmatpush1.msra.mxu0 0.0
    %3744 = vmatprep.subr.mxu0 0.0
    %3745 = vmatpush1.msra.mxu0 0.0
    %3746 = vmatprep.subr.mxu0 0.0
    %3747 = vmatpush1.msra.mxu0 0.0
    %3748 = vmatprep.subr.mxu0 0.0
    %3749 = vmatpush1.msra.mxu0 0.0
    %3750 = vmatprep.subr.mxu0 0.0
    %3751 = vmatpush1.msra.mxu0 0.0
    %3752 = vmatprep.subr.mxu0 0.0
    %3753 = vmatpush1.msra.mxu0 0.0
    %3754 = vmatprep.subr.mxu0 0.0
    %3755 = vmatpush1.msra.mxu0 0.0
    %3756 = vmatprep.subr.mxu0 0.0
    %3757 = vmatpush1.msra.mxu0 0.0
    %3758 = vmatprep.subr.mxu0 0.0
    %3759 = vmatpush1.msra.mxu0 0.0
    %3760 = vmatprep.subr.mxu0 0.0
    %3761 = vmatpush1.msra.mxu0 0.0
    %3762 = vmatprep.subr.mxu0 0.0
    %3763 = vmatpush1.msra.mxu0 0.0
    %3764 = vmatprep.subr.mxu0 0.0
    %3765 = vmatpush1.msra.mxu0 0.0
    %3766 = vmatprep.subr.mxu0 0.0
    %3767 = vmatpush1.msra.mxu0 0.0
    %3768 = vmatprep.subr.mxu0 0.0
    %3769 = vmatpush1.msra.mxu0 0.0
    %3770 = vmatprep.subr.mxu0 0.0
    %3771 = vmatpush1.msra.mxu0 0.0
    %3772 = vmatprep.subr.mxu0 0.0
    %3773 = vmatpush1.msra.mxu0 0.0
    %3774 = vmatprep.subr.mxu0 0.0
    %3775 = vmatpush1.msra.mxu0 0.0
    %3776 = vmatprep.subr.mxu0 0.0
    %3777 = vmatpush1.msra.mxu0 0.0
    %3778 = vmatprep.subr.mxu0 0.0
    %3779 = vmatpush1.msra.mxu0 0.0
    %3780 = vmatprep.subr.mxu0 0.0
    %3781 = vmatpush1.msra.mxu0 0.0
    %3782 = vmatprep.subr.mxu0 0.0
    %3783 = vmatpush1.msra.mxu0 0.0
    %3784 = vmatprep.mubr.f32.mxu0 0.0
    %3785 = vmatmul.mubr.f32.gmra.mrb[0].mxu0 %v3718
    %v3786 = vpop.f32.mrb[0].mxu0
    %v3787 = vadd.f32 0.0, %v3786
    %v3788 = vpop.f32.mrb[0].mxu0
    %3789 = vdwg.mxu0
    %3791 = vrot.lane.b32.xlu0 %v3457, 8
    %v3792 = vpop.permute.xlu0 %3791
    %3795 = vrot.lane.b32.xlu0 %v3622, 16
    %v3796 = vpop.permute.xlu0 %3795
    %3799 = vrot.lane.b32.xlu0 %v3787, 24
    %v3800 = vpop.permute.xlu0 %3799
    %v3802 = vsel %vm451, %v3291, %v3792
    %v3803 = vsel %vm1121, %v3802, %v3796
    %v3804 = vsel %vm1123, %v3803, %v3800
    %s3805 = scalar_lea.vmem [#allocation8], 32
    %v3806 = vld [vmem:[%s3805] sm:$0xff]
    %v3807 = vld [vmem:[%s3805 + $0x8] sm:$0xff]
    %v3808 = vld [vmem:[%s3805 + $0x10] sm:$0xff]
    %v3809 = vld [vmem:[%s3805 + $0x18] sm:$0xff]
    %s3810 = scalar_lea.vmem %s11, 1
    %v3811 = vld [vmem:[%s3810] sm:$0x1]
    %v3813 = vlaneseq
    %v3814 = vshrl.u32 %v3813, 7
    %v3815 = vsub.s32 0, %v3814
    %v3816 = vrot.slane %v3811, %v3815
    %v3819 = vsel %vm137, %v3133, 0
    %v3822 = vsel %vm137, %v3804, 0
    %3824 = vmatprep.subr.mxu0 0.0
    %3825 = vmatpush1.msra.mxu0 %v3806
    %3826 = vmatprep.subr.mxu0 0.0
    %3827 = vmatpush1.msra.mxu0 %v3807
    %3828 = vmatprep.subr.mxu0 0.0
    %3829 = vmatpush1.msra.mxu0 %v3808
    %3830 = vmatprep.subr.mxu0 0.0
    %3831 = vmatpush1.msra.mxu0 %v3809
    %3832 = vmatprep.subr.mxu0 0.0
    %3833 = vmatpush1.msra.mxu0 0.0
    %3834 = vmatprep.subr.mxu0 0.0
    %3835 = vmatpush1.msra.mxu0 0.0
    %3836 = vmatprep.subr.mxu0 0.0
    %3837 = vmatpush1.msra.mxu0 0.0
    %3838 = vmatprep.subr.mxu0 0.0
    %3839 = vmatpush1.msra.mxu0 0.0
    %3840 = vmatprep.subr.mxu0 0.0
    %3841 = vmatpush1.msra.mxu0 0.0
    %3842 = vmatprep.subr.mxu0 0.0
    %3843 = vmatpush1.msra.mxu0 0.0
    %3844 = vmatprep.subr.mxu0 0.0
    %3845 = vmatpush1.msra.mxu0 0.0
    %3846 = vmatprep.subr.mxu0 0.0
    %3847 = vmatpush1.msra.mxu0 0.0
    %3848 = vmatprep.subr.mxu0 0.0
    %3849 = vmatpush1.msra.mxu0 0.0
    %3850 = vmatprep.subr.mxu0 0.0
    %3851 = vmatpush1.msra.mxu0 0.0
    %3852 = vmatprep.subr.mxu0 0.0
    %3853 = vmatpush1.msra.mxu0 0.0
    %3854 = vmatprep.subr.mxu0 0.0
    %3855 = vmatpush1.msra.mxu0 0.0
    %3856 = vmatprep.subr.mxu0 0.0
    %3857 = vmatpush1.msra.mxu0 0.0
    %3858 = vmatprep.subr.mxu0 0.0
    %3859 = vmatpush1.msra.mxu0 0.0
    %3860 = vmatprep.subr.mxu0 0.0
    %3861 = vmatpush1.msra.mxu0 0.0
    %3862 = vmatprep.subr.mxu0 0.0
    %3863 = vmatpush1.msra.mxu0 0.0
    %3864 = vmatprep.subr.mxu0 0.0
    %3865 = vmatpush1.msra.mxu0 0.0
    %3866 = vmatprep.subr.mxu0 0.0
    %3867 = vmatpush1.msra.mxu0 0.0
    %3868 = vmatprep.subr.mxu0 0.0
    %3869 = vmatpush1.msra.mxu0 0.0
    %3870 = vmatprep.subr.mxu0 0.0
    %3871 = vmatpush1.msra.mxu0 0.0
    %3872 = vmatprep.subr.mxu0 0.0
    %3873 = vmatpush1.msra.mxu0 0.0
    %3874 = vmatprep.subr.mxu0 0.0
    %3875 = vmatpush1.msra.mxu0 0.0
    %3876 = vmatprep.subr.mxu0 0.0
    %3877 = vmatpush1.msra.mxu0 0.0
    %3878 = vmatprep.subr.mxu0 0.0
    %3879 = vmatpush1.msra.mxu0 0.0
    %3880 = vmatprep.subr.mxu0 0.0
    %3881 = vmatpush1.msra.mxu0 0.0
    %3882 = vmatprep.subr.mxu0 0.0
    %3883 = vmatpush1.msra.mxu0 0.0
    %3884 = vmatprep.subr.mxu0 0.0
    %3885 = vmatpush1.msra.mxu0 0.0
    %3886 = vmatprep.subr.mxu0 0.0
    %3887 = vmatpush1.msra.mxu0 0.0
    %3888 = vmatprep.mubr.f32.mxu0 0.0
    %3889 = vmatmul.mubr.f32.gmra.mrb[0].mxu0 %v3819
    %v3890 = vpop.f32.mrb[0].mxu0
    %v3891 = vadd.f32 %v3816, %v3890
    %v3892 = vpop.f32.mrb[0].mxu0
    %3893 = vmatprep.mubr.f32.mxu0 0.0
    %3894 = vmatmul.mubr.f32.gmra.mrb[0].mxu0 %v3822
    %v3895 = vpop.f32.mrb[0].mxu0
    %v3896 = vadd.f32 %v3816, %v3895
    %v3897 = vpop.f32.mrb[0].mxu0
    %3898 = vdwg.mxu0
    %v3899 = vadd.f32 %v2189, %v3891
    %v3900 = vadd.f32 %v2190, %v3896
    %s3901 = scalar_lea.vmem %s12, 1
    %v3902 = vld [vmem:[%s3901] sm:$0x1]
    %s3903 = scalar_lea.vmem %s13, 1
    %v3904 = vld [vmem:[%s3903] sm:$0x1]
    %v3905 = vsel %vm137, %v3899, 0.0
    %3906 = vadd.xlane.f32.xlu0 %v3905
    %v3907 = vpop.xlane.xlu0 %3906
    %v3908 = vsel %vm137, %v3900, 0.0
    %3909 = vadd.xlane.f32.xlu0 %v3908
    %v3910 = vpop.xlane.xlu0 %3909
    %v3911 = vmul.f32 %v3907, %v144
    %v3912 = vmul.f32 %v3910, %v144
    %v3913 = vsub.f32 %v3899, %v3911
    %v3914 = vsub.f32 %v3900, %v3912
    %v3915 = vmul.f32 %v3913, %v3913
    %v3916 = vmul.f32 %v3914, %v3914
    %v3917 = vsel %vm137, %v3915, 0.0
    %3918 = vadd.xlane.f32.xlu0 %v3917
    %v3919 = vpop.xlane.xlu0 %3918
    %v3920 = vsel %vm137, %v3916, 0.0
    %3921 = vadd.xlane.f32.xlu0 %v3920
    %v3922 = vpop.xlane.xlu0 %3921
    %v3923 = vmul.f32 %v3919, %v144
    %v3924 = vmul.f32 %v3922, %v144
    %v3925 = vadd.f32 %v3923, 1e-12
    %v3926 = vadd.f32 %v3924, 1e-12
    %v3927 = vrsqrt.pop %v3925
    %v3928 = vrsqrt.pop %v3926
    %v3929 = vmul.f32 %v3913, %v3927
    %v3930 = vmul.f32 %v3914, %v3928
    %v3932 = vlaneseq
    %v3933 = vshrl.u32 %v3932, 7
    %v3934 = vsub.s32 0, %v3933
    %v3935 = vrot.slane %v3902, %v3934
    %v3937 = vmul.f32 %v3929, %v3935
    %v3938 = vmul.f32 %v3930, %v3935
    %v3940 = vlaneseq
    %v3941 = vshrl.u32 %v3940, 7
    %v3942 = vsub.s32 0, %v3941
    %v3943 = vrot.slane %v3904, %v3942
    %v3945 = vadd.f32 %v3937, %v3943
    %v3946 = vadd.f32 %v3938, %v3943
    %s3947 = scalar_lea.vmem [#allocation10], 32
    %v3948 = vld [vmem:[%s3947] sm:$0xff]
    %v3949 = vld [vmem:[%s3947 + $0x8] sm:$0xff]
    %v3950 = vld [vmem:[%s3947 + $0x10] sm:$0xff]
    %v3951 = vld [vmem:[%s3947 + $0x18] sm:$0xff]
    %s3952 = scalar_lea.vmem %s15, 1
    %v3953 = vld [vmem:[%s3952] sm:$0x1]
    %v3955 = vlaneseq
    %v3956 = vshrl.u32 %v3955, 7
    %v3957 = vsub.s32 0, %v3956
    %v3958 = vrot.slane %v3953, %v3957
    %v3961 = vsel %vm137, %v3945, 0
    %v3964 = vsel %vm137, %v3946, 0
    %3966 = vmatprep.subr.mxu0 0.0
    %3967 = vmatpush1.msra.mxu0 %v3948
    %3968 = vmatprep.subr.mxu0 0.0
    %3969 = vmatpush1.msra.mxu0 %v3949
    %3970 = vmatprep.subr.mxu0 0.0
    %3971 = vmatpush1.msra.mxu0 %v3950
    %3972 = vmatprep.subr.mxu0 0.0
    %3973 = vmatpush1.msra.mxu0 %v3951
    %3974 = vmatprep.subr.mxu0 0.0
    %3975 = vmatpush1.msra.mxu0 0.0
    %3976 = vmatprep.subr.mxu0 0.0
    %3977 = vmatpush1.msra.mxu0 0.0
    %3978 = vmatprep.subr.mxu0 0.0
    %3979 = vmatpush1.msra.mxu0 0.0
    %3980 = vmatprep.subr.mxu0 0.0
    %3981 = vmatpush1.msra.mxu0 0.0
    %3982 = vmatprep.subr.mxu0 0.0
    %3983 = vmatpush1.msra.mxu0 0.0
    %3984 = vmatprep.subr.mxu0 0.0
    %3985 = vmatpush1.msra.mxu0 0.0
    %3986 = vmatprep.subr.mxu0 0.0
    %3987 = vmatpush1.msra.mxu0 0.0
    %3988 = vmatprep.subr.mxu0 0.0
    %3989 = vmatpush1.msra.mxu0 0.0
    %3990 = vmatprep.subr.mxu0 0.0
    %3991 = vmatpush1.msra.mxu0 0.0
    %3992 = vmatprep.subr.mxu0 0.0
    %3993 = vmatpush1.msra.mxu0 0.0
    %3994 = vmatprep.subr.mxu0 0.0
    %3995 = vmatpush1.msra.mxu0 0.0
    %3996 = vmatprep.subr.mxu0 0.0
    %3997 = vmatpush1.msra.mxu0 0.0
    %3998 = vmatprep.subr.mxu0 0.0
    %3999 = vmatpush1.msra.mxu0 0.0
    %4000 = vmatprep.subr.mxu0 0.0
    %4001 = vmatpush1.msra.mxu0 0.0
    %4002 = vmatprep.subr.mxu0 0.0
    %4003 = vmatpush1.msra.mxu0 0.0
    %4004 = vmatprep.subr.mxu0 0.0
    %4005 = vmatpush1.msra.mxu0 0.0
    %4006 = vmatprep.subr.mxu0 0.0
    %4007 = vmatpush1.msra.mxu0 0.0
    %4008 = vmatprep.subr.mxu0 0.0
    %4009 = vmatpush1.msra.mxu0 0.0
    %4010 = vmatprep.subr.mxu0 0.0
    %4011 = vmatpush1.msra.mxu0 0.0
    %4012 = vmatprep.subr.mxu0 0.0
    %4013 = vmatpush1.msra.mxu0 0.0
    %4014 = vmatprep.subr.mxu0 0.0
    %4015 = vmatpush1.msra.mxu0 0.0
    %4016 = vmatprep.subr.mxu0 0.0
    %4017 = vmatpush1.msra.mxu0 0.0
    %4018 = vmatprep.subr.mxu0 0.0
    %4019 = vmatpush1.msra.mxu0 0.0
    %4020 = vmatprep.subr.mxu0 0.0
    %4021 = vmatpush1.msra.mxu0 0.0
    %4022 = vmatprep.subr.mxu0 0.0
    %4023 = vmatpush1.msra.mxu0 0.0
    %4024 = vmatprep.subr.mxu0 0.0
    %4025 = vmatpush1.msra.mxu0 0.0
    %4026 = vmatprep.subr.mxu0 0.0
    %4027 = vmatpush1.msra.mxu0 0.0
    %4028 = vmatprep.subr.mxu0 0.0
    %4029 = vmatpush1.msra.mxu0 0.0
    %4030 = vmatprep.mubr.f32.mxu0 0.0
    %4031 = vmatmul.mubr.f32.gmra.mrb[0].mxu0 %v3961
    %v4032 = vpop.f32.mrb[0].mxu0
    %v4033 = vadd.f32 %v3958, %v4032
    %v4034 = vpop.f32.mrb[0].mxu0
    %4035 = vmatprep.mubr.f32.mxu0 0.0
    %4036 = vmatmul.mubr.f32.gmra.mrb[0].mxu0 %v3964
    %v4037 = vpop.f32.mrb[0].mxu0
    %v4038 = vadd.f32 %v3958, %v4037
    %v4039 = vpop.f32.mrb[0].mxu0
    %4040 = vdwg.mxu0
    %v4041 = vmul.f32 %v4033, %v4033
    %v4042 = vmul.f32 %v4038, %v4038
    %v4043 = vmul.f32 %v4033, %v4041
    %v4044 = vmul.f32 %v4038, %v4042
    %v4045 = vmul.f32 %v4043, 0.044715
    %v4046 = vmul.f32 %v4044, 0.044715
    %v4047 = vadd.f32 %v4033, %v4045
    %v4048 = vadd.f32 %v4038, %v4046
    %v4049 = vmul.f32 %v4047, 0.7978846
    %v4050 = vmul.f32 %v4048, 0.7978846
    %v4051 = vtanh.pop %v4049
    %v4052 = vtanh.pop %v4050
    %v4053 = vadd.f32 %v4051, 1.0
    %v4054 = vadd.f32 %v4052, 1.0
    %v4055 = vmul.f32 %v4053, 0.5
    %v4056 = vmul.f32 %v4054, 0.5
    %v4057 = vmul.f32 %v4033, %v4055
    %v4058 = vmul.f32 %v4038, %v4056
    %s4059 = scalar_lea.vmem %s16, 64
    %v4060 = vld [vmem:[%s4059] sm:$0xff]
    %v4061 = vld [vmem:[%s4059 + $0x8] sm:$0xff]
    %v4062 = vld [vmem:[%s4059 + $0x10] sm:$0xff]
    %v4063 = vld [vmem:[%s4059 + $0x18] sm:$0xff]
    %v4064 = vld [vmem:[%s4059 + $0x20] sm:$0xff]
    %v4065 = vld [vmem:[%s4059 + $0x28] sm:$0xff]
    %v4066 = vld [vmem:[%s4059 + $0x30] sm:$0xff]
    %v4067 = vld [vmem:[%s4059 + $0x38] sm:$0xff]
    %s4068 = scalar_lea.vmem %s17, 1
    %v4069 = vld [vmem:[%s4068] sm:$0x1]
    %v4071 = vlaneseq
    %v4072 = vshrl.u32 %v4071, 7
    %v4073 = vsub.s32 0, %v4072
    %v4074 = vrot.slane %v4069, %v4073
    %v4077 = vsel %vm2063, %v4057, 0
    %v4080 = vsel %vm2063, %v4058, 0
    %4082 = vmatprep.subr.mxu0 0.0
    %4083 = vmatpush1.msra.mxu0 %v4060
    %4084 = vmatprep.subr.mxu0 0.0
    %4085 = vmatpush1.msra.mxu0 %v4061
    %4086 = vmatprep.subr.mxu0 0.0
    %4087 = vmatpush1.msra.mxu0 %v4062
    %4088 = vmatprep.subr.mxu0 0.0
    %4089 = vmatpush1.msra.mxu0 %v4063
    %4090 = vmatprep.subr.mxu0 0.0
    %4091 = vmatpush1.msra.mxu0 %v4064
    %4092 = vmatprep.subr.mxu0 0.0
    %4093 = vmatpush1.msra.mxu0 %v4065
    %4094 = vmatprep.subr.mxu0 0.0
    %4095 = vmatpush1.msra.mxu0 %v4066
    %4096 = vmatprep.subr.mxu0 0.0
    %4097 = vmatpush1.msra.mxu0 %v4067
    %4098 = vmatprep.subr.mxu0 0.0
    %4099 = vmatpush1.msra.mxu0 0.0
    %4100 = vmatprep.subr.mxu0 0.0
    %4101 = vmatpush1.msra.mxu0 0.0
    %4102 = vmatprep.subr.mxu0 0.0
    %4103 = vmatpush1.msra.mxu0 0.0
    %4104 = vmatprep.subr.mxu0 0.0
    %4105 = vmatpush1.msra.mxu0 0.0
    %4106 = vmatprep.subr.mxu0 0.0
    %4107 = vmatpush1.msra.mxu0 0.0
    %4108 = vmatprep.subr.mxu0 0.0
    %4109 = vmatpush1.msra.mxu0 0.0
    %4110 = vmatprep.subr.mxu0 0.0
    %4111 = vmatpush1.msra.mxu0 0.0
    %4112 = vmatprep.subr.mxu0 0.0
    %4113 = vmatpush1.msra.mxu0 0.0
    %4114 = vmatprep.subr.mxu0 0.0
    %4115 = vmatpush1.msra.mxu0 0.0
    %4116 = vmatprep.subr.mxu0 0.0
    %4117 = vmatpush1.msra.mxu0 0.0
    %4118 = vmatprep.subr.mxu0 0.0
    %4119 = vmatpush1.msra.mxu0 0.0
    %4120 = vmatprep.subr.mxu0 0.0
    %4121 = vmatpush1.msra.mxu0 0.0
    %4122 = vmatprep.subr.mxu0 0.0
    %4123 = vmatpush1.msra.mxu0 0.0
    %4124 = vmatprep.subr.mxu0 0.0
    %4125 = vmatpush1.msra.mxu0 0.0
    %4126 = vmatprep.subr.mxu0 0.0
    %4127 = vmatpush1.msra.mxu0 0.0
    %4128 = vmatprep.subr.mxu0 0.0
    %4129 = vmatpush1.msra.mxu0 0.0
    %4130 = vmatprep.subr.mxu0 0.0
    %4131 = vmatpush1.msra.mxu0 0.0
    %4132 = vmatprep.subr.mxu0 0.0
    %4133 = vmatpush1.msra.mxu0 0.0
    %4134 = vmatprep.subr.mxu0 0.0
    %4135 = vmatpush1.msra.mxu0 0.0
    %4136 = vmatprep.subr.mxu0 0.0
    %4137 = vmatpush1.msra.mxu0 0.0
    %4138 = vmatprep.subr.mxu0 0.0
    %4139 = vmatpush1.msra.mxu0 0.0
    %4140 = vmatprep.subr.mxu0 0.0
    %4141 = vmatpush1.msra.mxu0 0.0
    %4142 = vmatprep.subr.mxu0 0.0
    %4143 = vmatpush1.msra.mxu0 0.0
    %4144 = vmatprep.subr.mxu0 0.0
    %4145 = vmatpush1.msra.mxu0 0.0
    %4146 = vmatprep.mubr.f32.mxu0 0.0
    %4147 = vmatmul.mubr.f32.gmra.mrb[0].mxu0 %v4077
    %v4148 = vpop.f32.mrb[0].mxu0
    %v4149 = vadd.f32 %v4074, %v4148
    %v4150 = vpop.f32.mrb[0].mxu0
    %4151 = vmatprep.mubr.f32.mxu0 0.0
    %4152 = vmatmul.mubr.f32.gmra.mrb[0].mxu0 %v4080
    %v4153 = vpop.f32.mrb[0].mxu0
    %v4154 = vadd.f32 %v4074, %v4153
    %v4155 = vpop.f32.mrb[0].mxu0
    %4156 = vdwg.mxu0
    %v4157 = vadd.f32 %v3945, %v4149
    %v4158 = vadd.f32 %v3946, %v4154
    %s4159 = scalar_lea.vmem %s18, 1
    %v4160 = vld [vmem:[%s4159] sm:$0x1]
    %s4161 = scalar_lea.vmem %s19, 1
    %v4162 = vld [vmem:[%s4161] sm:$0x1]
    %v4163 = vsel %vm137, %v4157, 0.0
    %4164 = vadd.xlane.f32.xlu0 %v4163
    %v4165 = vpop.xlane.xlu0 %4164
    %v4166 = vsel %vm137, %v4158, 0.0
    %4167 = vadd.xlane.f32.xlu0 %v4166
    %v4168 = vpop.xlane.xlu0 %4167
    %v4169 = vmul.f32 %v4165, %v144
    %v4170 = vmul.f32 %v4168, %v144
    %v4171 = vsub.f32 %v4157, %v4169
    %v4172 = vsub.f32 %v4158, %v4170
    %v4173 = vmul.f32 %v4171, %v4171
    %v4174 = vmul.f32 %v4172, %v4172
    %v4175 = vsel %vm137, %v4173, 0.0
    %4176 = vadd.xlane.f32.xlu0 %v4175
    %v4177 = vpop.xlane.xlu0 %4176
    %v4178 = vsel %vm137, %v4174, 0.0
    %4179 = vadd.xlane.f32.xlu0 %v4178
    %v4180 = vpop.xlane.xlu0 %4179
    %v4181 = vmul.f32 %v4177, %v144
    %v4182 = vmul.f32 %v4180, %v144
    %v4183 = vadd.f32 %v4181, 1e-12
    %v4184 = vadd.f32 %v4182, 1e-12
    %v4185 = vrsqrt.pop %v4183
    %v4186 = vrsqrt.pop %v4184
    %v4187 = vmul.f32 %v4171, %v4185
    %v4188 = vmul.f32 %v4172, %v4186
    %v4190 = vlaneseq
    %v4191 = vshrl.u32 %v4190, 7
    %v4192 = vsub.s32 0, %v4191
    %v4193 = vrot.slane %v4160, %v4192
    %v4195 = vmul.f32 %v4187, %v4193
    %v4196 = vmul.f32 %v4188, %v4193
    %v4198 = vlaneseq
    %v4199 = vshrl.u32 %v4198, 7
    %v4200 = vsub.s32 0, %v4199
    %v4201 = vrot.slane %v4162, %v4200
    %v4203 = vadd.f32 %v4195, %v4201
    %v4204 = vadd.f32 %v4196, %v4201
    %4205 = vst.msk [vmem:[#allocation11] sm:$0xff] %vm137, %v4203
    %4206 = vst.msk [vmem:[#allocation11 + $0x8] sm:$0xff] %vm137, %v4204
    // Predicated region
    $region102: #{tpu_custom_call.1} parent=1 // pred_check
      _
    $region103: #{tpu_custom_call.1} parent=1 // pred_check_branch
      %4208 = sbr.rel (0) target = $region105
    $region104: #{tpu_custom_call.1} parent=1 // pred_region
      %s4210 = ssub.s32 256, 256
      %4211 = vsyncadd [#allocation4], %s4210
      %s4212 = sshll.u32 [#allocation11], 4
      %s4213 = int_to_ptr.vmem [resolvable:$true] %s4212
      %4218 = dma.vmem_to_hbm [thread:$0]  %s4213, 256, %s20, [#allocation4], 128, 128, 8
    $region105: #{tpu_custom_call.1} parent=1 // pred_fallthru
      _
    // Predicated region
    $region106: #{tpu_custom_call.1} parent=1 // pred_check
      _
    $region107: #{tpu_custom_call.1} parent=1 // pred_check_branch
      %4220 = sbr.rel (0) target = $region109
    $region108: #{tpu_custom_call.1} parent=1 // pred_region
      %4221 = dma.done [#allocation4], 256
    $region109: #{tpu_custom_call.1} parent=1 // pred_fallthru
      _
    %4222 = vsyncpa [#allocation3], 1
    %4223 = vsyncpa [#allocation6], 1
    %4224 = vsyncpa [#allocation9], 1
    %4225 = vsyncpa [#allocation4], 1

</llo_original>
